<compile_context>
chip_gen: v5e
topology: v5e:2x2
jax: 0.10.0
libtpu: 0.0.40
codegen_flags: <defaults>
</compile_context>

<pallas_src>
import jax
import jax.numpy as jnp
from jax import lax
from jax.experimental import pallas as pl

# ---------------- config (small shapes consistent with the module) -----------
B = 2                         # batch
L = 8                         # sequence length
H = 64                        # hidden size (original hard-wires 768; shrunk)
HEADS = 8
HEAD_DIM = H // HEADS
LSTM_HID = H // 2             # per-direction hidden of the bidirectional LSTM
NUM_LABELS = 3
INNER_DIM = 64                # RoPE dim (hard-coded in the module)
DENSE_DIM = NUM_LABELS * 2 * INNER_DIM   # 384

F32 = jnp.float32


def _dot_nt(a, b):
    """a[m,d] , b[n,d] -> a @ b.T without an explicit transpose."""
    return lax.dot_general(a, b, (((1,), (1,)), ((), ())),
                           preferred_element_type=F32)


# ------------------------------ fused kernel ---------------------------------
def _fused_kernel(x_ref, mask_ref, wqkv_ref, wo_ref, bo_ref,
                  wih_ref, bih_ref, whh_ref,
                  wd_ref, bd_ref, cos_ref, sin_ref, perm_ref, out_ref):
    x = x_ref[...]                          # [B*L, H] = [16, 64]
    neg_mask = mask_ref[...]                # [16, 16] 0 / -1e30 cross-batch

    # ---------------- multi-head self-attention ----------------
    # fused block-diagonal QKV projection: one lane-dense matmul
    qkv = jnp.dot(x, wqkv_ref[...], preferred_element_type=F32)    # [16, 192]
    q, k, v = qkv[:, :H], qkv[:, H:2 * H], qkv[:, 2 * H:]
    scale = 1.0 / jnp.sqrt(F32(H))          # energy / sqrt(embed_size)
    head_outs = []
    for h in range(HEADS):
        lo, hi = h * HEAD_DIM, (h + 1) * HEAD_DIM
        e = _dot_nt(q[:, lo:hi], k[:, lo:hi]) * scale + neg_mask    # [16, 16]
        a = jax.nn.softmax(e, axis=-1)      # cross-batch entries -> exactly 0
        head_outs.append(jnp.dot(a, v[:, lo:hi], preferred_element_type=F32))
    attn = (jnp.dot(jnp.concatenate(head_outs, axis=1), wo_ref[...],
                    preferred_element_type=F32) + bo_ref[...])      # [16, 64]

    # ---------------- bidirectional LSTM ----------------
    # input projection (both directions, bias folded) hoisted out of recurrence
    xp = jnp.dot(attn, wih_ref[...], preferred_element_type=F32) + bih_ref[...]
    G = 4 * LSTM_HID
    xpf, xpb = xp[:, :G], xp[:, G:]         # [16, 128] each
    whh = whh_ref[...]                      # [64, 256] block-diag fwd|bwd
    hcat = jnp.zeros((B, 2 * LSTM_HID), F32)
    c_f = jnp.zeros((B, LSTM_HID), F32)
    c_b = jnp.zeros((B, LSTM_HID), F32)
    fwd_outs = [None] * L
    bwd_outs = [None] * L
    for s in range(L):                      # unrolled: short, latency-bound
        sb = L - 1 - s
        xg_f = jnp.concatenate([xpf[s:s + 1], xpf[L + s:L + s + 1]], axis=0)
        xg_b = jnp.concatenate([xpb[sb:sb + 1], xpb[L + sb:L + sb + 1]], axis=0)
        gates = (jnp.concatenate([xg_f, xg_b], axis=1)
                 + jnp.dot(hcat, whh, preferred_element_type=F32))  # [2, 256]
        gf, gb = gates[:, :G], gates[:, G:]
        i_f = jax.nn.sigmoid(gf[:, :LSTM_HID])
        f_f = jax.nn.sigmoid(gf[:, LSTM_HID:2 * LSTM_HID])
        g_f = jnp.tanh(gf[:, 2 * LSTM_HID:3 * LSTM_HID])
        o_f = jax.nn.sigmoid(gf[:, 3 * LSTM_HID:])
        i_b = jax.nn.sigmoid(gb[:, :LSTM_HID])
        f_b = jax.nn.sigmoid(gb[:, LSTM_HID:2 * LSTM_HID])
        g_b = jnp.tanh(gb[:, 2 * LSTM_HID:3 * LSTM_HID])
        o_b = jax.nn.sigmoid(gb[:, 3 * LSTM_HID:])
        c_f = f_f * c_f + i_f * g_f
        c_b = f_b * c_b + i_b * g_b
        h_f = o_f * jnp.tanh(c_f)           # [2, 32]
        h_b = o_b * jnp.tanh(c_b)
        hcat = jnp.concatenate([h_f, h_b], axis=1)
        fwd_outs[s] = h_f
        bwd_outs[sb] = h_b
    lstm_rows = []                          # row order = b*L + t
    for b in range(B):
        for t in range(L):
            lstm_rows.append(jnp.concatenate(
                [fwd_outs[t][b:b + 1], bwd_outs[t][b:b + 1]], axis=1))
    lstm = jnp.concatenate(lstm_rows, axis=0)                       # [16, 64]

    # ---------------- dense + RoPE + per-label qk^T logits ----------------
    d = jnp.dot(lstm, wd_ref[...], preferred_element_type=F32) + bd_ref[...]
    # pair-swap (+sign) of ALL 384 lanes in one permutation matmul
    rot = (d * cos_ref[...]
           + jnp.dot(d, perm_ref[...], preferred_element_type=F32) * sin_ref[...])
    inv = 1.0 / jnp.sqrt(F32(INNER_DIM))
    for n in range(NUM_LABELS):
        base = n * 2 * INNER_DIM
        qn = rot[:, base:base + INNER_DIM]                          # [16, 64]
        kn = rot[:, base + INNER_DIM:base + 2 * INNER_DIM]
        e = _dot_nt(qn, kn) * inv                                   # [16, 16]
        out_ref[0:L, n * L:(n + 1) * L] = e[0:L, 0:L]           # batch 0 block
        out_ref[L:2 * L, n * L:(n + 1) * L] = e[L:2 * L, L:2 * L]  # batch 1


# ------------------------------ glue / wrapper --------------------------------
def sinusoidal_cos_sin(seq_len, output_dim):
    pos = jnp.arange(seq_len, dtype=F32)[:, None]                   # [L, 1]
    idx = jnp.arange(output_dim // 2, dtype=F32)
    theta = jnp.power(10000.0, -2.0 * idx / output_dim)
    ang = pos * theta                                               # [L, D/2]
    cos_pos = jnp.repeat(jnp.cos(ang), 2, axis=-1)                  # [c0,c0,...]
    sin_pos = jnp.repeat(jnp.sin(ang), 2, axis=-1)
    return cos_pos, sin_pos


def rope_swap_matrix(dim):
    # (x @ P)[2i] = -x[2i+1] ; (x @ P)[2i+1] = x[2i]
    P = jnp.zeros((dim, dim), F32)
    i = jnp.arange(dim // 2)
    P = P.at[2 * i + 1, 2 * i].set(-1.0)
    P = P.at[2 * i, 2 * i + 1].set(1.0)
    return P


def build_fused_inputs(p):
    eye = jnp.eye(HEADS, dtype=F32)
    # block-diagonal per-head QKV weights, fused along lanes -> [64, 192]
    w_qkv = jnp.concatenate([jnp.kron(eye, p["wq_t"]),
                             jnp.kron(eye, p["wk_t"]),
                             jnp.kron(eye, p["wv_t"])], axis=1)
    rows = jnp.arange(B * L) // L
    neg_mask = jnp.where(rows[:, None] == rows[None, :], 0.0, -1e30).astype(F32)
    # LSTM: fwd|bwd input projections concatenated, W_hh block-diagonal
    wih_cat = jnp.concatenate([p["wih_f_t"], p["wih_b_t"]], axis=1)   # [64, 256]
    b_cat = jnp.concatenate([p["b_f"], p["b_b"]], axis=1)             # [1, 256]
    whh_comb = jnp.zeros((2 * LSTM_HID, 8 * LSTM_HID), F32)
    whh_comb = whh_comb.at[:LSTM_HID, :4 * LSTM_HID].set(p["whh_f_t"])
    whh_comb = whh_comb.at[LSTM_HID:, 4 * LSTM_HID:].set(p["whh_b_t"])
    # RoPE tables expanded to the full [B*L, 384] dense layout
    cos_pos, sin_pos = sinusoidal_cos_sin(L, INNER_DIM)               # [8, 64]
    cos_big = jnp.tile(jnp.tile(cos_pos, (B, 1)), (1, 2 * NUM_LABELS))  # [16,384]
    sin_big = jnp.tile(jnp.tile(sin_pos, (B, 1)), (1, 2 * NUM_LABELS))
    p_big = rope_swap_matrix(DENSE_DIM)                               # [384,384]
    return dict(w_qkv=w_qkv, neg_mask=neg_mask, wih_cat=wih_cat, b_cat=b_cat,
                whh_comb=whh_comb, cos_big=cos_big, sin_big=sin_big, p_big=p_big)


def _gather_and_loss(logits, target, labels):
    bidx = jnp.arange(B)
    token_logits = logits[bidx[:, None], jnp.arange(NUM_LABELS)[None, :],
                          target[:, 0:1], target[:, 1:2]]            # [B, labels]
    logp = jax.nn.log_softmax(token_logits, axis=-1)
    loss = -jnp.mean(logp[bidx, labels])                             # CE loss
    return {"logits": token_logits, "loss": loss}


def model_forward(hidden_token, target, labels, params):
    # TODO(synk): BertModel (pretrained encoder) has no clean Pallas equivalent;
    # `hidden_token` stands in for the averaged last-4 BERT hidden states.
    # (self.dropout is declared in __init__ but never used in forward.)
    f = build_fused_inputs(params)
    x2d = hidden_token.reshape(B * L, H)
    out = pl.pallas_call(
        _fused_kernel,
        out_shape=jax.ShapeDtypeStruct((B * L, NUM_LABELS * L), F32),
    )(x2d, f["neg_mask"], f["w_qkv"], params["wo_t"], params["bo"],
      f["wih_cat"], f["b_cat"], f["whh_comb"],
      params["wd_t"], params["bd"], f["cos_big"], f["sin_big"], f["p_big"])
    logits = out.reshape(B, L, NUM_LABELS, L).transpose(0, 2, 1, 3)  # [B,N,L,L]
    return _gather_and_loss(logits, target, labels)


model_forward_jit = jax.jit(model_forward)


# --------------------------------- params -------------------------------------
def init_params(key):
    ks = jax.random.split(key, 13)
    s = 0.1

    def n(k, shape):
        return s * jax.random.normal(k, shape, F32)

    # "_t" weights are stored pre-transposed (so x @ W^T is x @ W_t)
    return {
        "wq_t": n(ks[0], (HEAD_DIM, HEAD_DIM)),
        "wk_t": n(ks[1], (HEAD_DIM, HEAD_DIM)),
        "wv_t": n(ks[2], (HEAD_DIM, HEAD_DIM)),
        "wo_t": n(ks[3], (H, H)),
        "bo":   n(ks[4], (1, H)),
        "wih_f_t": n(ks[5], (H, 4 * LSTM_HID)),
        "whh_f_t": n(ks[6], (LSTM_HID, 4 * LSTM_HID)),
        "b_f":     n(ks[7], (1, 4 * LSTM_HID)),      # b_ih + b_hh combined
        "wih_b_t": n(ks[8], (H, 4 * LSTM_HID)),
        "whh_b_t": n(ks[9], (LSTM_HID, 4 * LSTM_HID)),
        "b_b":     n(ks[10], (1, 4 * LSTM_HID)),
        "wd_t": n(ks[11], (H, DENSE_DIM)),
        "bd":   n(ks[12], (1, DENSE_DIM)),
    }


# ------------------------ pure-JAX reference (for checking) -------------------
def reference_forward(x, target, labels, p):
    xh = x.reshape(B, L, HEADS, HEAD_DIM)
    q = jnp.einsum("blhd,de->blhe", xh, p["wq_t"])
    k = jnp.einsum("blhd,de->blhe", xh, p["wk_t"])
    v = jnp.einsum("blhd,de->blhe", xh, p["wv_t"])
    e = jnp.einsum("bqhd,bkhd->bhqk", q, k) / jnp.sqrt(F32(H))
    a = jax.nn.softmax(e, axis=-1)
    attn = jnp.einsum("bhqk,bkhd->bqhd", a, v).reshape(B, L, H)
    attn = attn @ p["wo_t"] + p["bo"]

    def lstm_dir(xs, wih_t, whh_t, b, reverse):
        h = jnp.zeros((B, LSTM_HID), F32)
        c = jnp.zeros((B, LSTM_HID), F32)
        outs = [None] * L
        order = range(L - 1, -1, -1) if reverse else range(L)
        for t in order:
            g = xs[:, t] @ wih_t + h @ whh_t + b
            i = jax.nn.sigmoid(g[:, :LSTM_HID])
            f = jax.nn.sigmoid(g[:, LSTM_HID:2 * LSTM_HID])
            gg = jnp.tanh(g[:, 2 * LSTM_HID:3 * LSTM_HID])
            o = jax.nn.sigmoid(g[:, 3 * LSTM_HID:])
            c = f * c + i * gg
            h = o * jnp.tanh(c)
            outs[t] = h
        return jnp.stack(outs, axis=1)

    fwd = lstm_dir(attn, p["wih_f_t"], p["whh_f_t"], p["b_f"], False)
    bwd = lstm_dir(attn, p["wih_b_t"], p["whh_b_t"], p["b_b"], True)
    lstm_out = jnp.concatenate([fwd, bwd], axis=-1)

    d = (lstm_out @ p["wd_t"] + p["bd"]).reshape(B, L, NUM_LABELS, 2 * INNER_DIM)
    qw, kw = d[..., :INNER_DIM], d[..., INNER_DIM:]
    cos, sin = sinusoidal_cos_sin(L, INNER_DIM)
    cos = cos[None, :, None, :]
    sin = sin[None, :, None, :]
    qw2 = jnp.stack([-qw[..., 1::2], qw[..., ::2]], axis=-1).reshape(qw.shape)
    kw2 = jnp.stack([-kw[..., 1::2], kw[..., ::2]], axis=-1).reshape(kw.shape)
    qwr = qw * cos + qw2 * sin
    kwr = kw * cos + kw2 * sin
    logits = jnp.einsum("bmhd,bnhd->bhmn", qwr, kwr) / jnp.sqrt(F32(INNER_DIM))
    return _gather_and_loss(logits, target, labels)


# ----------------------------------- main --------------------------------------
if __name__ == "__main__":
    key = jax.random.PRNGKey(0)
    k_x, k_p = jax.random.split(key)
    hidden_token = jax.random.normal(k_x, (B, L, H), F32)
    params = init_params(k_p)
    target = jnp.array([[1, 3], [2, 5]], dtype=jnp.int32)   # [B, 2] index pairs
    labels = jnp.array([0, 2], dtype=jnp.int32)             # [B]

    out = model_forward_jit(hidden_token, target, labels, params)
    jax.block_until_ready(out["loss"])

    ref = reference_forward(hidden_token, target, labels, params)
    assert jnp.allclose(out["logits"], ref["logits"], atol=2e-2, rtol=2e-2)
    assert jnp.allclose(out["loss"], ref["loss"], atol=2e-2, rtol=2e-2)

    print("KERNEL_OK")
</pallas_src>

<mosaic_0001>
module attributes {stable_mosaic.version = 11 : i64} {
  func.func @_fused_kernel(%arg0: memref<16x64xf32, #tpu.memory_space<vmem>>, %arg1: memref<16x16xf32, #tpu.memory_space<vmem>>, %arg2: memref<64x192xf32, #tpu.memory_space<vmem>>, %arg3: memref<64x64xf32, #tpu.memory_space<vmem>>, %arg4: memref<1x64xf32, #tpu.memory_space<vmem>>, %arg5: memref<64x256xf32, #tpu.memory_space<vmem>>, %arg6: memref<1x256xf32, #tpu.memory_space<vmem>>, %arg7: memref<64x256xf32, #tpu.memory_space<vmem>>, %arg8: memref<64x384xf32, #tpu.memory_space<vmem>>, %arg9: memref<1x384xf32, #tpu.memory_space<vmem>>, %arg10: memref<16x384xf32, #tpu.memory_space<vmem>>, %arg11: memref<16x384xf32, #tpu.memory_space<vmem>>, %arg12: memref<384x384xf32, #tpu.memory_space<vmem>>, %arg13: memref<16x24xf32, #tpu.memory_space<vmem>>) attributes {dimension_semantics = [], scalar_prefetch = 0 : i64, scratch_operands = 0 : i64, tpu.core_type = #tpu.core_type<tc>} {
    %c0 = arith.constant 0 : index
    %c0_0 = arith.constant 0 : index
    %0 = vector.load %arg0[%c0, %c0_0] : memref<16x64xf32, #tpu.memory_space<vmem>>, vector<16x64xf32>
    %c0_1 = arith.constant 0 : index
    %c0_2 = arith.constant 0 : index
    %1 = vector.load %arg1[%c0_1, %c0_2] : memref<16x16xf32, #tpu.memory_space<vmem>>, vector<16x16xf32>
    %c0_3 = arith.constant 0 : index
    %c0_4 = arith.constant 0 : index
    %2 = vector.load %arg2[%c0_3, %c0_4] : memref<64x192xf32, #tpu.memory_space<vmem>>, vector<64x192xf32>
    %cst = arith.constant dense<0.000000e+00> : vector<16x192xf32>
    %3 = tpu.matmul %0, %2, %cst {dimension_numbers = #tpu.dot_dimension_numbers<[1], [0], [0], [1], [0, 0, 1, 1], [], []>} : vector<16x64xf32>, vector<64x192xf32>, vector<16x192xf32> -> vector<16x192xf32>
    %4 = vector.extract_strided_slice %3 {offsets = [0, 0], sizes = [16, 64], strides = [1, 1]} : vector<16x192xf32> to vector<16x64xf32>
    %5 = vector.extract_strided_slice %3 {offsets = [0, 64], sizes = [16, 64], strides = [1, 1]} : vector<16x192xf32> to vector<16x64xf32>
    %6 = vector.extract_strided_slice %3 {offsets = [0, 128], sizes = [16, 64], strides = [1, 1]} : vector<16x192xf32> to vector<16x64xf32>
    %cst_5 = arith.constant 6.400000e+01 : f32
    %7 = math.sqrt %cst_5 : f32
    %cst_6 = arith.constant 1.000000e+00 : f32
    %8 = arith.divf %cst_6, %7 : f32
    %9 = vector.extract_strided_slice %4 {offsets = [0, 0], sizes = [16, 8], strides = [1, 1]} : vector<16x64xf32> to vector<16x8xf32>
    %10 = vector.extract_strided_slice %5 {offsets = [0, 0], sizes = [16, 8], strides = [1, 1]} : vector<16x64xf32> to vector<16x8xf32>
    %cst_7 = arith.constant dense<0.000000e+00> : vector<16x16xf32>
    %11 = tpu.matmul %9, %10, %cst_7 {dimension_numbers = #tpu.dot_dimension_numbers<[1], [1], [0], [0], [0, 0, 1, 0], [], []>} : vector<16x8xf32>, vector<16x8xf32>, vector<16x16xf32> -> vector<16x16xf32>
    %12 = vector.broadcast %8 : f32 to vector<16x16xf32>
    %13 = arith.mulf %11, %12 : vector<16x16xf32>
    %14 = arith.addf %13, %1 : vector<16x16xf32>
    %cst_8 = arith.constant dense<0xFF800000> : vector<16xf32>
    %15 = vector.multi_reduction <maximumf>, %14, %cst_8 [1] : vector<16x16xf32> to vector<16xf32>
    %cst_9 = arith.constant 0xFF800000 : f32
    %16 = vector.broadcast %cst_9 : f32 to vector<16xf32>
    %17 = arith.maximumf %16, %15 : vector<16xf32>
    %18 = vector.shape_cast %17 : vector<16xf32> to vector<16x1xf32>
    %19 = vector.broadcast %18 : vector<16x1xf32> to vector<16x16xf32>
    %20 = arith.subf %14, %19 : vector<16x16xf32>
    %21 = math.exp %20 : vector<16x16xf32>
    %cst_10 = arith.constant dense<0.000000e+00> : vector<16xf32>
    %22 = vector.multi_reduction <add>, %21, %cst_10 [1] : vector<16x16xf32> to vector<16xf32>
    %23 = vector.shape_cast %22 : vector<16xf32> to vector<16x1xf32>
    %24 = vector.broadcast %23 : vector<16x1xf32> to vector<16x16xf32>
    %25 = arith.divf %21, %24 : vector<16x16xf32>
    %26 = vector.extract_strided_slice %6 {offsets = [0, 0], sizes = [16, 8], strides = [1, 1]} : vector<16x64xf32> to vector<16x8xf32>
    %cst_11 = arith.constant dense<0.000000e+00> : vector<16x8xf32>
    %27 = tpu.matmul %25, %26, %cst_11 {dimension_numbers = #tpu.dot_dimension_numbers<[1], [0], [0], [1], [0, 0, 1, 1], [], []>} : vector<16x16xf32>, vector<16x8xf32>, vector<16x8xf32> -> vector<16x8xf32>
    %28 = vector.extract_strided_slice %4 {offsets = [0, 8], sizes = [16, 8], strides = [1, 1]} : vector<16x64xf32> to vector<16x8xf32>
    %29 = vector.extract_strided_slice %5 {offsets = [0, 8], sizes = [16, 8], strides = [1, 1]} : vector<16x64xf32> to vector<16x8xf32>
    %cst_12 = arith.constant dense<0.000000e+00> : vector<16x16xf32>
    %30 = tpu.matmul %28, %29, %cst_12 {dimension_numbers = #tpu.dot_dimension_numbers<[1], [1], [0], [0], [0, 0, 1, 0], [], []>} : vector<16x8xf32>, vector<16x8xf32>, vector<16x16xf32> -> vector<16x16xf32>
    %31 = vector.broadcast %8 : f32 to vector<16x16xf32>
    %32 = arith.mulf %30, %31 : vector<16x16xf32>
    %33 = arith.addf %32, %1 : vector<16x16xf32>
    %cst_13 = arith.constant dense<0xFF800000> : vector<16xf32>
    %34 = vector.multi_reduction <maximumf>, %33, %cst_13 [1] : vector<16x16xf32> to vector<16xf32>
    %cst_14 = arith.constant 0xFF800000 : f32
    %35 = vector.broadcast %cst_14 : f32 to vector<16xf32>
    %36 = arith.maximumf %35, %34 : vector<16xf32>
    %37 = vector.shape_cast %36 : vector<16xf32> to vector<16x1xf32>
    %38 = vector.broadcast %37 : vector<16x1xf32> to vector<16x16xf32>
    %39 = arith.subf %33, %38 : vector<16x16xf32>
    %40 = math.exp %39 : vector<16x16xf32>
    %cst_15 = arith.constant dense<0.000000e+00> : vector<16xf32>
    %41 = vector.multi_reduction <add>, %40, %cst_15 [1] : vector<16x16xf32> to vector<16xf32>
    %42 = vector.shape_cast %41 : vector<16xf32> to vector<16x1xf32>
    %43 = vector.broadcast %42 : vector<16x1xf32> to vector<16x16xf32>
    %44 = arith.divf %40, %43 : vector<16x16xf32>
    %45 = vector.extract_strided_slice %6 {offsets = [0, 8], sizes = [16, 8], strides = [1, 1]} : vector<16x64xf32> to vector<16x8xf32>
    %cst_16 = arith.constant dense<0.000000e+00> : vector<16x8xf32>
    %46 = tpu.matmul %44, %45, %cst_16 {dimension_numbers = #tpu.dot_dimension_numbers<[1], [0], [0], [1], [0, 0, 1, 1], [], []>} : vector<16x16xf32>, vector<16x8xf32>, vector<16x8xf32> -> vector<16x8xf32>
    %47 = vector.extract_strided_slice %4 {offsets = [0, 16], sizes = [16, 8], strides = [1, 1]} : vector<16x64xf32> to vector<16x8xf32>
    %48 = vector.extract_strided_slice %5 {offsets = [0, 16], sizes = [16, 8], strides = [1, 1]} : vector<16x64xf32> to vector<16x8xf32>
    %cst_17 = arith.constant dense<0.000000e+00> : vector<16x16xf32>
    %49 = tpu.matmul %47, %48, %cst_17 {dimension_numbers = #tpu.dot_dimension_numbers<[1], [1], [0], [0], [0, 0, 1, 0], [], []>} : vector<16x8xf32>, vector<16x8xf32>, vector<16x16xf32> -> vector<16x16xf32>
    %50 = vector.broadcast %8 : f32 to vector<16x16xf32>
    %51 = arith.mulf %49, %50 : vector<16x16xf32>
    %52 = arith.addf %51, %1 : vector<16x16xf32>
    %cst_18 = arith.constant dense<0xFF800000> : vector<16xf32>
    %53 = vector.multi_reduction <maximumf>, %52, %cst_18 [1] : vector<16x16xf32> to vector<16xf32>
    %cst_19 = arith.constant 0xFF800000 : f32
    %54 = vector.broadcast %cst_19 : f32 to vector<16xf32>
    %55 = arith.maximumf %54, %53 : vector<16xf32>
    %56 = vector.shape_cast %55 : vector<16xf32> to vector<16x1xf32>
    %57 = vector.broadcast %56 : vector<16x1xf32> to vector<16x16xf32>
    %58 = arith.subf %52, %57 : vector<16x16xf32>
    %59 = math.exp %58 : vector<16x16xf32>
    %cst_20 = arith.constant dense<0.000000e+00> : vector<16xf32>
    %60 = vector.multi_reduction <add>, %59, %cst_20 [1] : vector<16x16xf32> to vector<16xf32>
    %61 = vector.shape_cast %60 : vector<16xf32> to vector<16x1xf32>
    %62 = vector.broadcast %61 : vector<16x1xf32> to vector<16x16xf32>
    %63 = arith.divf %59, %62 : vector<16x16xf32>
    %64 = vector.extract_strided_slice %6 {offsets = [0, 16], sizes = [16, 8], strides = [1, 1]} : vector<16x64xf32> to vector<16x8xf32>
    %cst_21 = arith.constant dense<0.000000e+00> : vector<16x8xf32>
    %65 = tpu.matmul %63, %64, %cst_21 {dimension_numbers = #tpu.dot_dimension_numbers<[1], [0], [0], [1], [0, 0, 1, 1], [], []>} : vector<16x16xf32>, vector<16x8xf32>, vector<16x8xf32> -> vector<16x8xf32>
    %66 = vector.extract_strided_slice %4 {offsets = [0, 24], sizes = [16, 8], strides = [1, 1]} : vector<16x64xf32> to vector<16x8xf32>
    %67 = vector.extract_strided_slice %5 {offsets = [0, 24], sizes = [16, 8], strides = [1, 1]} : vector<16x64xf32> to vector<16x8xf32>
    %cst_22 = arith.constant dense<0.000000e+00> : vector<16x16xf32>
    %68 = tpu.matmul %66, %67, %cst_22 {dimension_numbers = #tpu.dot_dimension_numbers<[1], [1], [0], [0], [0, 0, 1, 0], [], []>} : vector<16x8xf32>, vector<16x8xf32>, vector<16x16xf32> -> vector<16x16xf32>
    %69 = vector.broadcast %8 : f32 to vector<16x16xf32>
    %70 = arith.mulf %68, %69 : vector<16x16xf32>
    %71 = arith.addf %70, %1 : vector<16x16xf32>
    %cst_23 = arith.constant dense<0xFF800000> : vector<16xf32>
    %72 = vector.multi_reduction <maximumf>, %71, %cst_23 [1] : vector<16x16xf32> to vector<16xf32>
    %cst_24 = arith.constant 0xFF800000 : f32
    %73 = vector.broadcast %cst_24 : f32 to vector<16xf32>
    %74 = arith.maximumf %73, %72 : vector<16xf32>
    %75 = vector.shape_cast %74 : vector<16xf32> to vector<16x1xf32>
    %76 = vector.broadcast %75 : vector<16x1xf32> to vector<16x16xf32>
    %77 = arith.subf %71, %76 : vector<16x16xf32>
    %78 = math.exp %77 : vector<16x16xf32>
    %cst_25 = arith.constant dense<0.000000e+00> : vector<16xf32>
    %79 = vector.multi_reduction <add>, %78, %cst_25 [1] : vector<16x16xf32> to vector<16xf32>
    %80 = vector.shape_cast %79 : vector<16xf32> to vector<16x1xf32>
    %81 = vector.broadcast %80 : vector<16x1xf32> to vector<16x16xf32>
    %82 = arith.divf %78, %81 : vector<16x16xf32>
    %83 = vector.extract_strided_slice %6 {offsets = [0, 24], sizes = [16, 8], strides = [1, 1]} : vector<16x64xf32> to vector<16x8xf32>
    %cst_26 = arith.constant dense<0.000000e+00> : vector<16x8xf32>
    %84 = tpu.matmul %82, %83, %cst_26 {dimension_numbers = #tpu.dot_dimension_numbers<[1], [0], [0], [1], [0, 0, 1, 1], [], []>} : vector<16x16xf32>, vector<16x8xf32>, vector<16x8xf32> -> vector<16x8xf32>
    %85 = vector.extract_strided_slice %4 {offsets = [0, 32], sizes = [16, 8], strides = [1, 1]} : vector<16x64xf32> to vector<16x8xf32>
    %86 = vector.extract_strided_slice %5 {offsets = [0, 32], sizes = [16, 8], strides = [1, 1]} : vector<16x64xf32> to vector<16x8xf32>
    %cst_27 = arith.constant dense<0.000000e+00> : vector<16x16xf32>
    %87 = tpu.matmul %85, %86, %cst_27 {dimension_numbers = #tpu.dot_dimension_numbers<[1], [1], [0], [0], [0, 0, 1, 0], [], []>} : vector<16x8xf32>, vector<16x8xf32>, vector<16x16xf32> -> vector<16x16xf32>
    %88 = vector.broadcast %8 : f32 to vector<16x16xf32>
    %89 = arith.mulf %87, %88 : vector<16x16xf32>
    %90 = arith.addf %89, %1 : vector<16x16xf32>
    %cst_28 = arith.constant dense<0xFF800000> : vector<16xf32>
    %91 = vector.multi_reduction <maximumf>, %90, %cst_28 [1] : vector<16x16xf32> to vector<16xf32>
    %cst_29 = arith.constant 0xFF800000 : f32
    %92 = vector.broadcast %cst_29 : f32 to vector<16xf32>
    %93 = arith.maximumf %92, %91 : vector<16xf32>
    %94 = vector.shape_cast %93 : vector<16xf32> to vector<16x1xf32>
    %95 = vector.broadcast %94 : vector<16x1xf32> to vector<16x16xf32>
    %96 = arith.subf %90, %95 : vector<16x16xf32>
    %97 = math.exp %96 : vector<16x16xf32>
    %cst_30 = arith.constant dense<0.000000e+00> : vector<16xf32>
    %98 = vector.multi_reduction <add>, %97, %cst_30 [1] : vector<16x16xf32> to vector<16xf32>
    %99 = vector.shape_cast %98 : vector<16xf32> to vector<16x1xf32>
    %100 = vector.broadcast %99 : vector<16x1xf32> to vector<16x16xf32>
    %101 = arith.divf %97, %100 : vector<16x16xf32>
    %102 = vector.extract_strided_slice %6 {offsets = [0, 32], sizes = [16, 8], strides = [1, 1]} : vector<16x64xf32> to vector<16x8xf32>
    %cst_31 = arith.constant dense<0.000000e+00> : vector<16x8xf32>
    %103 = tpu.matmul %101, %102, %cst_31 {dimension_numbers = #tpu.dot_dimension_numbers<[1], [0], [0], [1], [0, 0, 1, 1], [], []>} : vector<16x16xf32>, vector<16x8xf32>, vector<16x8xf32> -> vector<16x8xf32>
    %104 = vector.extract_strided_slice %4 {offsets = [0, 40], sizes = [16, 8], strides = [1, 1]} : vector<16x64xf32> to vector<16x8xf32>
    %105 = vector.extract_strided_slice %5 {offsets = [0, 40], sizes = [16, 8], strides = [1, 1]} : vector<16x64xf32> to vector<16x8xf32>
    %cst_32 = arith.constant dense<0.000000e+00> : vector<16x16xf32>
    %106 = tpu.matmul %104, %105, %cst_32 {dimension_numbers = #tpu.dot_dimension_numbers<[1], [1], [0], [0], [0, 0, 1, 0], [], []>} : vector<16x8xf32>, vector<16x8xf32>, vector<16x16xf32> -> vector<16x16xf32>
    %107 = vector.broadcast %8 : f32 to vector<16x16xf32>
    %108 = arith.mulf %106, %107 : vector<16x16xf32>
    %109 = arith.addf %108, %1 : vector<16x16xf32>
    %cst_33 = arith.constant dense<0xFF800000> : vector<16xf32>
    %110 = vector.multi_reduction <maximumf>, %109, %cst_33 [1] : vector<16x16xf32> to vector<16xf32>
    %cst_34 = arith.constant 0xFF800000 : f32
    %111 = vector.broadcast %cst_34 : f32 to vector<16xf32>
    %112 = arith.maximumf %111, %110 : vector<16xf32>
    %113 = vector.shape_cast %112 : vector<16xf32> to vector<16x1xf32>
    %114 = vector.broadcast %113 : vector<16x1xf32> to vector<16x16xf32>
    %115 = arith.subf %109, %114 : vector<16x16xf32>
    %116 = math.exp %115 : vector<16x16xf32>
    %cst_35 = arith.constant dense<0.000000e+00> : vector<16xf32>
    %117 = vector.multi_reduction <add>, %116, %cst_35 [1] : vector<16x16xf32> to vector<16xf32>
    %118 = vector.shape_cast %117 : vector<16xf32> to vector<16x1xf32>
    %119 = vector.broadcast %118 : vector<16x1xf32> to vector<16x16xf32>
    %120 = arith.divf %116, %119 : vector<16x16xf32>
    %121 = vector.extract_strided_slice %6 {offsets = [0, 40], sizes = [16, 8], strides = [1, 1]} : vector<16x64xf32> to vector<16x8xf32>
    %cst_36 = arith.constant dense<0.000000e+00> : vector<16x8xf32>
    %122 = tpu.matmul %120, %121, %cst_36 {dimension_numbers = #tpu.dot_dimension_numbers<[1], [0], [0], [1], [0, 0, 1, 1], [], []>} : vector<16x16xf32>, vector<16x8xf32>, vector<16x8xf32> -> vector<16x8xf32>
    %123 = vector.extract_strided_slice %4 {offsets = [0, 48], sizes = [16, 8], strides = [1, 1]} : vector<16x64xf32> to vector<16x8xf32>
    %124 = vector.extract_strided_slice %5 {offsets = [0, 48], sizes = [16, 8], strides = [1, 1]} : vector<16x64xf32> to vector<16x8xf32>
    %cst_37 = arith.constant dense<0.000000e+00> : vector<16x16xf32>
    %125 = tpu.matmul %123, %124, %cst_37 {dimension_numbers = #tpu.dot_dimension_numbers<[1], [1], [0], [0], [0, 0, 1, 0], [], []>} : vector<16x8xf32>, vector<16x8xf32>, vector<16x16xf32> -> vector<16x16xf32>
    %126 = vector.broadcast %8 : f32 to vector<16x16xf32>
    %127 = arith.mulf %125, %126 : vector<16x16xf32>
    %128 = arith.addf %127, %1 : vector<16x16xf32>
    %cst_38 = arith.constant dense<0xFF800000> : vector<16xf32>
    %129 = vector.multi_reduction <maximumf>, %128, %cst_38 [1] : vector<16x16xf32> to vector<16xf32>
    %cst_39 = arith.constant 0xFF800000 : f32
    %130 = vector.broadcast %cst_39 : f32 to vector<16xf32>
    %131 = arith.maximumf %130, %129 : vector<16xf32>
    %132 = vector.shape_cast %131 : vector<16xf32> to vector<16x1xf32>
    %133 = vector.broadcast %132 : vector<16x1xf32> to vector<16x16xf32>
    %134 = arith.subf %128, %133 : vector<16x16xf32>
    %135 = math.exp %134 : vector<16x16xf32>
    %cst_40 = arith.constant dense<0.000000e+00> : vector<16xf32>
    %136 = vector.multi_reduction <add>, %135, %cst_40 [1] : vector<16x16xf32> to vector<16xf32>
    %137 = vector.shape_cast %136 : vector<16xf32> to vector<16x1xf32>
    %138 = vector.broadcast %137 : vector<16x1xf32> to vector<16x16xf32>
    %139 = arith.divf %135, %138 : vector<16x16xf32>
    %140 = vector.extract_strided_slice %6 {offsets = [0, 48], sizes = [16, 8], strides = [1, 1]} : vector<16x64xf32> to vector<16x8xf32>
    %cst_41 = arith.constant dense<0.000000e+00> : vector<16x8xf32>
    %141 = tpu.matmul %139, %140, %cst_41 {dimension_numbers = #tpu.dot_dimension_numbers<[1], [0], [0], [1], [0, 0, 1, 1], [], []>} : vector<16x16xf32>, vector<16x8xf32>, vector<16x8xf32> -> vector<16x8xf32>
    %142 = vector.extract_strided_slice %4 {offsets = [0, 56], sizes = [16, 8], strides = [1, 1]} : vector<16x64xf32> to vector<16x8xf32>
    %143 = vector.extract_strided_slice %5 {offsets = [0, 56], sizes = [16, 8], strides = [1, 1]} : vector<16x64xf32> to vector<16x8xf32>
    %cst_42 = arith.constant dense<0.000000e+00> : vector<16x16xf32>
    %144 = tpu.matmul %142, %143, %cst_42 {dimension_numbers = #tpu.dot_dimension_numbers<[1], [1], [0], [0], [0, 0, 1, 0], [], []>} : vector<16x8xf32>, vector<16x8xf32>, vector<16x16xf32> -> vector<16x16xf32>
    %145 = vector.broadcast %8 : f32 to vector<16x16xf32>
    %146 = arith.mulf %144, %145 : vector<16x16xf32>
    %147 = arith.addf %146, %1 : vector<16x16xf32>
    %cst_43 = arith.constant dense<0xFF800000> : vector<16xf32>
    %148 = vector.multi_reduction <maximumf>, %147, %cst_43 [1] : vector<16x16xf32> to vector<16xf32>
    %cst_44 = arith.constant 0xFF800000 : f32
    %149 = vector.broadcast %cst_44 : f32 to vector<16xf32>
    %150 = arith.maximumf %149, %148 : vector<16xf32>
    %151 = vector.shape_cast %150 : vector<16xf32> to vector<16x1xf32>
    %152 = vector.broadcast %151 : vector<16x1xf32> to vector<16x16xf32>
    %153 = arith.subf %147, %152 : vector<16x16xf32>
    %154 = math.exp %153 : vector<16x16xf32>
    %cst_45 = arith.constant dense<0.000000e+00> : vector<16xf32>
    %155 = vector.multi_reduction <add>, %154, %cst_45 [1] : vector<16x16xf32> to vector<16xf32>
    %156 = vector.shape_cast %155 : vector<16xf32> to vector<16x1xf32>
    %157 = vector.broadcast %156 : vector<16x1xf32> to vector<16x16xf32>
    %158 = arith.divf %154, %157 : vector<16x16xf32>
    %159 = vector.extract_strided_slice %6 {offsets = [0, 56], sizes = [16, 8], strides = [1, 1]} : vector<16x64xf32> to vector<16x8xf32>
    %cst_46 = arith.constant dense<0.000000e+00> : vector<16x8xf32>
    %160 = tpu.matmul %158, %159, %cst_46 {dimension_numbers = #tpu.dot_dimension_numbers<[1], [0], [0], [1], [0, 0, 1, 1], [], []>} : vector<16x16xf32>, vector<16x8xf32>, vector<16x8xf32> -> vector<16x8xf32>
    %161 = tpu.concatenate %27, %46, %65, %84, %103, %122, %141, %160 in 1 : vector<16x8xf32>, vector<16x8xf32>, vector<16x8xf32>, vector<16x8xf32>, vector<16x8xf32>, vector<16x8xf32>, vector<16x8xf32>, vector<16x8xf32> -> vector<16x64xf32>
    %c0_47 = arith.constant 0 : index
    %c0_48 = arith.constant 0 : index
    %162 = vector.load %arg3[%c0_47, %c0_48] : memref<64x64xf32, #tpu.memory_space<vmem>>, vector<64x64xf32>
    %cst_49 = arith.constant dense<0.000000e+00> : vector<16x64xf32>
    %163 = tpu.matmul %161, %162, %cst_49 {dimension_numbers = #tpu.dot_dimension_numbers<[1], [0], [0], [1], [0, 0, 1, 1], [], []>} : vector<16x64xf32>, vector<64x64xf32>, vector<16x64xf32> -> vector<16x64xf32>
    %c0_50 = arith.constant 0 : index
    %c0_51 = arith.constant 0 : index
    %164 = vector.load %arg4[%c0_50, %c0_51] : memref<1x64xf32, #tpu.memory_space<vmem>>, vector<1x64xf32>
    %165 = vector.broadcast %164 : vector<1x64xf32> to vector<16x64xf32>
    %166 = arith.addf %163, %165 : vector<16x64xf32>
    %c0_52 = arith.constant 0 : index
    %c0_53 = arith.constant 0 : index
    %167 = vector.load %arg5[%c0_52, %c0_53] : memref<64x256xf32, #tpu.memory_space<vmem>>, vector<64x256xf32>
    %cst_54 = arith.constant dense<0.000000e+00> : vector<16x256xf32>
    %168 = tpu.matmul %166, %167, %cst_54 {dimension_numbers = #tpu.dot_dimension_numbers<[1], [0], [0], [1], [0, 0, 1, 1], [], []>} : vector<16x64xf32>, vector<64x256xf32>, vector<16x256xf32> -> vector<16x256xf32>
    %c0_55 = arith.constant 0 : index
    %c0_56 = arith.constant 0 : index
    %169 = vector.load %arg6[%c0_55, %c0_56] : memref<1x256xf32, #tpu.memory_space<vmem>>, vector<1x256xf32>
    %170 = vector.broadcast %169 : vector<1x256xf32> to vector<16x256xf32>
    %171 = arith.addf %168, %170 : vector<16x256xf32>
    %172 = vector.extract_strided_slice %171 {offsets = [0, 0], sizes = [16, 128], strides = [1, 1]} : vector<16x256xf32> to vector<16x128xf32>
    %173 = vector.extract_strided_slice %171 {offsets = [0, 128], sizes = [16, 128], strides = [1, 1]} : vector<16x256xf32> to vector<16x128xf32>
    %c0_57 = arith.constant 0 : index
    %c0_58 = arith.constant 0 : index
    %174 = vector.load %arg7[%c0_57, %c0_58] : memref<64x256xf32, #tpu.memory_space<vmem>>, vector<64x256xf32>
    %cst_59 = arith.constant 0.000000e+00 : f32
    %175 = vector.broadcast %cst_59 : f32 to vector<2x64xf32>
    %cst_60 = arith.constant 0.000000e+00 : f32
    %176 = vector.broadcast %cst_60 : f32 to vector<2x32xf32>
    %cst_61 = arith.constant 0.000000e+00 : f32
    %177 = vector.broadcast %cst_61 : f32 to vector<2x32xf32>
    %178 = vector.extract_strided_slice %172 {offsets = [0, 0], sizes = [1, 128], strides = [1, 1]} : vector<16x128xf32> to vector<1x128xf32>
    %179 = vector.extract_strided_slice %172 {offsets = [8, 0], sizes = [1, 128], strides = [1, 1]} : vector<16x128xf32> to vector<1x128xf32>
    %180 = tpu.concatenate %178, %179 in 0 : vector<1x128xf32>, vector<1x128xf32> -> vector<2x128xf32>
    %181 = vector.extract_strided_slice %173 {offsets = [7, 0], sizes = [1, 128], strides = [1, 1]} : vector<16x128xf32> to vector<1x128xf32>
    %182 = vector.extract_strided_slice %173 {offsets = [15, 0], sizes = [1, 128], strides = [1, 1]} : vector<16x128xf32> to vector<1x128xf32>
    %183 = tpu.concatenate %181, %182 in 0 : vector<1x128xf32>, vector<1x128xf32> -> vector<2x128xf32>
    %184 = tpu.concatenate %180, %183 in 1 : vector<2x128xf32>, vector<2x128xf32> -> vector<2x256xf32>
    %cst_62 = arith.constant dense<0.000000e+00> : vector<2x256xf32>
    %185 = tpu.matmul %175, %174, %cst_62 {dimension_numbers = #tpu.dot_dimension_numbers<[1], [0], [0], [1], [0, 0, 1, 1], [], []>} : vector<2x64xf32>, vector<64x256xf32>, vector<2x256xf32> -> vector<2x256xf32>
    %186 = arith.addf %184, %185 : vector<2x256xf32>
    %187 = vector.extract_strided_slice %186 {offsets = [0, 0], sizes = [2, 128], strides = [1, 1]} : vector<2x256xf32> to vector<2x128xf32>
    %188 = vector.extract_strided_slice %186 {offsets = [0, 128], sizes = [2, 128], strides = [1, 1]} : vector<2x256xf32> to vector<2x128xf32>
    %189 = vector.extract_strided_slice %187 {offsets = [0, 0], sizes = [2, 32], strides = [1, 1]} : vector<2x128xf32> to vector<2x32xf32>
    %190 = arith.negf %189 : vector<2x32xf32>
    %191 = math.exp %190 : vector<2x32xf32>
    %cst_63 = arith.constant 1.000000e+00 : f32
    %192 = vector.broadcast %cst_63 : f32 to vector<2x32xf32>
    %193 = arith.addf %192, %191 : vector<2x32xf32>
    %194 = arith.divf %192, %193 : vector<2x32xf32>
    %195 = vector.extract_strided_slice %187 {offsets = [0, 32], sizes = [2, 32], strides = [1, 1]} : vector<2x128xf32> to vector<2x32xf32>
    %196 = arith.negf %195 : vector<2x32xf32>
    %197 = math.exp %196 : vector<2x32xf32>
    %cst_64 = arith.constant 1.000000e+00 : f32
    %198 = vector.broadcast %cst_64 : f32 to vector<2x32xf32>
    %199 = arith.addf %198, %197 : vector<2x32xf32>
    %200 = arith.divf %198, %199 : vector<2x32xf32>
    %201 = vector.extract_strided_slice %187 {offsets = [0, 64], sizes = [2, 32], strides = [1, 1]} : vector<2x128xf32> to vector<2x32xf32>
    %202 = math.tanh %201 : vector<2x32xf32>
    %203 = vector.extract_strided_slice %187 {offsets = [0, 96], sizes = [2, 32], strides = [1, 1]} : vector<2x128xf32> to vector<2x32xf32>
    %204 = arith.negf %203 : vector<2x32xf32>
    %205 = math.exp %204 : vector<2x32xf32>
    %cst_65 = arith.constant 1.000000e+00 : f32
    %206 = vector.broadcast %cst_65 : f32 to vector<2x32xf32>
    %207 = arith.addf %206, %205 : vector<2x32xf32>
    %208 = arith.divf %206, %207 : vector<2x32xf32>
    %209 = vector.extract_strided_slice %188 {offsets = [0, 0], sizes = [2, 32], strides = [1, 1]} : vector<2x128xf32> to vector<2x32xf32>
    %210 = arith.negf %209 : vector<2x32xf32>
    %211 = math.exp %210 : vector<2x32xf32>
    %cst_66 = arith.constant 1.000000e+00 : f32
    %212 = vector.broadcast %cst_66 : f32 to vector<2x32xf32>
    %213 = arith.addf %212, %211 : vector<2x32xf32>
    %214 = arith.divf %212, %213 : vector<2x32xf32>
    %215 = vector.extract_strided_slice %188 {offsets = [0, 32], sizes = [2, 32], strides = [1, 1]} : vector<2x128xf32> to vector<2x32xf32>
    %216 = arith.negf %215 : vector<2x32xf32>
    %217 = math.exp %216 : vector<2x32xf32>
    %cst_67 = arith.constant 1.000000e+00 : f32
    %218 = vector.broadcast %cst_67 : f32 to vector<2x32xf32>
    %219 = arith.addf %218, %217 : vector<2x32xf32>
    %220 = arith.divf %218, %219 : vector<2x32xf32>
    %221 = vector.extract_strided_slice %188 {offsets = [0, 64], sizes = [2, 32], strides = [1, 1]} : vector<2x128xf32> to vector<2x32xf32>
    %222 = math.tanh %221 : vector<2x32xf32>
    %223 = vector.extract_strided_slice %188 {offsets = [0, 96], sizes = [2, 32], strides = [1, 1]} : vector<2x128xf32> to vector<2x32xf32>
    %224 = arith.negf %223 : vector<2x32xf32>
    %225 = math.exp %224 : vector<2x32xf32>
    %cst_68 = arith.constant 1.000000e+00 : f32
    %226 = vector.broadcast %cst_68 : f32 to vector<2x32xf32>
    %227 = arith.addf %226, %225 : vector<2x32xf32>
    %228 = arith.divf %226, %227 : vector<2x32xf32>
    %229 = arith.mulf %200, %176 : vector<2x32xf32>
    %230 = arith.mulf %194, %202 : vector<2x32xf32>
    %231 = arith.addf %229, %230 : vector<2x32xf32>
    %232 = arith.mulf %220, %177 : vector<2x32xf32>
    %233 = arith.mulf %214, %222 : vector<2x32xf32>
    %234 = arith.addf %232, %233 : vector<2x32xf32>
    %235 = math.tanh %231 : vector<2x32xf32>
    %236 = arith.mulf %208, %235 : vector<2x32xf32>
    %237 = math.tanh %234 : vector<2x32xf32>
    %238 = arith.mulf %228, %237 : vector<2x32xf32>
    %239 = tpu.concatenate %236, %238 in 1 : vector<2x32xf32>, vector<2x32xf32> -> vector<2x64xf32>
    %240 = vector.extract_strided_slice %172 {offsets = [1, 0], sizes = [1, 128], strides = [1, 1]} : vector<16x128xf32> to vector<1x128xf32>
    %241 = vector.extract_strided_slice %172 {offsets = [9, 0], sizes = [1, 128], strides = [1, 1]} : vector<16x128xf32> to vector<1x128xf32>
    %242 = tpu.concatenate %240, %241 in 0 : vector<1x128xf32>, vector<1x128xf32> -> vector<2x128xf32>
    %243 = vector.extract_strided_slice %173 {offsets = [6, 0], sizes = [1, 128], strides = [1, 1]} : vector<16x128xf32> to vector<1x128xf32>
    %244 = vector.extract_strided_slice %173 {offsets = [14, 0], sizes = [1, 128], strides = [1, 1]} : vector<16x128xf32> to vector<1x128xf32>
    %245 = tpu.concatenate %243, %244 in 0 : vector<1x128xf32>, vector<1x128xf32> -> vector<2x128xf32>
    %246 = tpu.concatenate %242, %245 in 1 : vector<2x128xf32>, vector<2x128xf32> -> vector<2x256xf32>
    %cst_69 = arith.constant dense<0.000000e+00> : vector<2x256xf32>
    %247 = tpu.matmul %239, %174, %cst_69 {dimension_numbers = #tpu.dot_dimension_numbers<[1], [0], [0], [1], [0, 0, 1, 1], [], []>} : vector<2x64xf32>, vector<64x256xf32>, vector<2x256xf32> -> vector<2x256xf32>
    %248 = arith.addf %246, %247 : vector<2x256xf32>
    %249 = vector.extract_strided_slice %248 {offsets = [0, 0], sizes = [2, 128], strides = [1, 1]} : vector<2x256xf32> to vector<2x128xf32>
    %250 = vector.extract_strided_slice %248 {offsets = [0, 128], sizes = [2, 128], strides = [1, 1]} : vector<2x256xf32> to vector<2x128xf32>
    %251 = vector.extract_strided_slice %249 {offsets = [0, 0], sizes = [2, 32], strides = [1, 1]} : vector<2x128xf32> to vector<2x32xf32>
    %252 = arith.negf %251 : vector<2x32xf32>
    %253 = math.exp %252 : vector<2x32xf32>
    %cst_70 = arith.constant 1.000000e+00 : f32
    %254 = vector.broadcast %cst_70 : f32 to vector<2x32xf32>
    %255 = arith.addf %254, %253 : vector<2x32xf32>
    %256 = arith.divf %254, %255 : vector<2x32xf32>
    %257 = vector.extract_strided_slice %249 {offsets = [0, 32], sizes = [2, 32], strides = [1, 1]} : vector<2x128xf32> to vector<2x32xf32>
    %258 = arith.negf %257 : vector<2x32xf32>
    %259 = math.exp %258 : vector<2x32xf32>
    %cst_71 = arith.constant 1.000000e+00 : f32
    %260 = vector.broadcast %cst_71 : f32 to vector<2x32xf32>
    %261 = arith.addf %260, %259 : vector<2x32xf32>
    %262 = arith.divf %260, %261 : vector<2x32xf32>
    %263 = vector.extract_strided_slice %249 {offsets = [0, 64], sizes = [2, 32], strides = [1, 1]} : vector<2x128xf32> to vector<2x32xf32>
    %264 = math.tanh %263 : vector<2x32xf32>
    %265 = vector.extract_strided_slice %249 {offsets = [0, 96], sizes = [2, 32], strides = [1, 1]} : vector<2x128xf32> to vector<2x32xf32>
    %266 = arith.negf %265 : vector<2x32xf32>
    %267 = math.exp %266 : vector<2x32xf32>
    %cst_72 = arith.constant 1.000000e+00 : f32
    %268 = vector.broadcast %cst_72 : f32 to vector<2x32xf32>
    %269 = arith.addf %268, %267 : vector<2x32xf32>
    %270 = arith.divf %268, %269 : vector<2x32xf32>
    %271 = vector.extract_strided_slice %250 {offsets = [0, 0], sizes = [2, 32], strides = [1, 1]} : vector<2x128xf32> to vector<2x32xf32>
    %272 = arith.negf %271 : vector<2x32xf32>
    %273 = math.exp %272 : vector<2x32xf32>
    %cst_73 = arith.constant 1.000000e+00 : f32
    %274 = vector.broadcast %cst_73 : f32 to vector<2x32xf32>
    %275 = arith.addf %274, %273 : vector<2x32xf32>
    %276 = arith.divf %274, %275 : vector<2x32xf32>
    %277 = vector.extract_strided_slice %250 {offsets = [0, 32], sizes = [2, 32], strides = [1, 1]} : vector<2x128xf32> to vector<2x32xf32>
    %278 = arith.negf %277 : vector<2x32xf32>
    %279 = math.exp %278 : vector<2x32xf32>
    %cst_74 = arith.constant 1.000000e+00 : f32
    %280 = vector.broadcast %cst_74 : f32 to vector<2x32xf32>
    %281 = arith.addf %280, %279 : vector<2x32xf32>
    %282 = arith.divf %280, %281 : vector<2x32xf32>
    %283 = vector.extract_strided_slice %250 {offsets = [0, 64], sizes = [2, 32], strides = [1, 1]} : vector<2x128xf32> to vector<2x32xf32>
    %284 = math.tanh %283 : vector<2x32xf32>
    %285 = vector.extract_strided_slice %250 {offsets = [0, 96], sizes = [2, 32], strides = [1, 1]} : vector<2x128xf32> to vector<2x32xf32>
    %286 = arith.negf %285 : vector<2x32xf32>
    %287 = math.exp %286 : vector<2x32xf32>
    %cst_75 = arith.constant 1.000000e+00 : f32
    %288 = vector.broadcast %cst_75 : f32 to vector<2x32xf32>
    %289 = arith.addf %288, %287 : vector<2x32xf32>
    %290 = arith.divf %288, %289 : vector<2x32xf32>
    %291 = arith.mulf %262, %231 : vector<2x32xf32>
    %292 = arith.mulf %256, %264 : vector<2x32xf32>
    %293 = arith.addf %291, %292 : vector<2x32xf32>
    %294 = arith.mulf %282, %234 : vector<2x32xf32>
    %295 = arith.mulf %276, %284 : vector<2x32xf32>
    %296 = arith.addf %294, %295 : vector<2x32xf32>
    %297 = math.tanh %293 : vector<2x32xf32>
    %298 = arith.mulf %270, %297 : vector<2x32xf32>
    %299 = math.tanh %296 : vector<2x32xf32>
    %300 = arith.mulf %290, %299 : vector<2x32xf32>
    %301 = tpu.concatenate %298, %300 in 1 : vector<2x32xf32>, vector<2x32xf32> -> vector<2x64xf32>
    %302 = vector.extract_strided_slice %172 {offsets = [2, 0], sizes = [1, 128], strides = [1, 1]} : vector<16x128xf32> to vector<1x128xf32>
    %303 = vector.extract_strided_slice %172 {offsets = [10, 0], sizes = [1, 128], strides = [1, 1]} : vector<16x128xf32> to vector<1x128xf32>
    %304 = tpu.concatenate %302, %303 in 0 : vector<1x128xf32>, vector<1x128xf32> -> vector<2x128xf32>
    %305 = vector.extract_strided_slice %173 {offsets = [5, 0], sizes = [1, 128], strides = [1, 1]} : vector<16x128xf32> to vector<1x128xf32>
    %306 = vector.extract_strided_slice %173 {offsets = [13, 0], sizes = [1, 128], strides = [1, 1]} : vector<16x128xf32> to vector<1x128xf32>
    %307 = tpu.concatenate %305, %306 in 0 : vector<1x128xf32>, vector<1x128xf32> -> vector<2x128xf32>
    %308 = tpu.concatenate %304, %307 in 1 : vector<2x128xf32>, vector<2x128xf32> -> vector<2x256xf32>
    %cst_76 = arith.constant dense<0.000000e+00> : vector<2x256xf32>
    %309 = tpu.matmul %301, %174, %cst_76 {dimension_numbers = #tpu.dot_dimension_numbers<[1], [0], [0], [1], [0, 0, 1, 1], [], []>} : vector<2x64xf32>, vector<64x256xf32>, vector<2x256xf32> -> vector<2x256xf32>
    %310 = arith.addf %308, %309 : vector<2x256xf32>
    %311 = vector.extract_strided_slice %310 {offsets = [0, 0], sizes = [2, 128], strides = [1, 1]} : vector<2x256xf32> to vector<2x128xf32>
    %312 = vector.extract_strided_slice %310 {offsets = [0, 128], sizes = [2, 128], strides = [1, 1]} : vector<2x256xf32> to vector<2x128xf32>
    %313 = vector.extract_strided_slice %311 {offsets = [0, 0], sizes = [2, 32], strides = [1, 1]} : vector<2x128xf32> to vector<2x32xf32>
    %314 = arith.negf %313 : vector<2x32xf32>
    %315 = math.exp %314 : vector<2x32xf32>
    %cst_77 = arith.constant 1.000000e+00 : f32
    %316 = vector.broadcast %cst_77 : f32 to vector<2x32xf32>
    %317 = arith.addf %316, %315 : vector<2x32xf32>
    %318 = arith.divf %316, %317 : vector<2x32xf32>
    %319 = vector.extract_strided_slice %311 {offsets = [0, 32], sizes = [2, 32], strides = [1, 1]} : vector<2x128xf32> to vector<2x32xf32>
    %320 = arith.negf %319 : vector<2x32xf32>
    %321 = math.exp %320 : vector<2x32xf32>
    %cst_78 = arith.constant 1.000000e+00 : f32
    %322 = vector.broadcast %cst_78 : f32 to vector<2x32xf32>
    %323 = arith.addf %322, %321 : vector<2x32xf32>
    %324 = arith.divf %322, %323 : vector<2x32xf32>
    %325 = vector.extract_strided_slice %311 {offsets = [0, 64], sizes = [2, 32], strides = [1, 1]} : vector<2x128xf32> to vector<2x32xf32>
    %326 = math.tanh %325 : vector<2x32xf32>
    %327 = vector.extract_strided_slice %311 {offsets = [0, 96], sizes = [2, 32], strides = [1, 1]} : vector<2x128xf32> to vector<2x32xf32>
    %328 = arith.negf %327 : vector<2x32xf32>
    %329 = math.exp %328 : vector<2x32xf32>
    %cst_79 = arith.constant 1.000000e+00 : f32
    %330 = vector.broadcast %cst_79 : f32 to vector<2x32xf32>
    %331 = arith.addf %330, %329 : vector<2x32xf32>
    %332 = arith.divf %330, %331 : vector<2x32xf32>
    %333 = vector.extract_strided_slice %312 {offsets = [0, 0], sizes = [2, 32], strides = [1, 1]} : vector<2x128xf32> to vector<2x32xf32>
    %334 = arith.negf %333 : vector<2x32xf32>
    %335 = math.exp %334 : vector<2x32xf32>
    %cst_80 = arith.constant 1.000000e+00 : f32
    %336 = vector.broadcast %cst_80 : f32 to vector<2x32xf32>
    %337 = arith.addf %336, %335 : vector<2x32xf32>
    %338 = arith.divf %336, %337 : vector<2x32xf32>
    %339 = vector.extract_strided_slice %312 {offsets = [0, 32], sizes = [2, 32], strides = [1, 1]} : vector<2x128xf32> to vector<2x32xf32>
    %340 = arith.negf %339 : vector<2x32xf32>
    %341 = math.exp %340 : vector<2x32xf32>
    %cst_81 = arith.constant 1.000000e+00 : f32
    %342 = vector.broadcast %cst_81 : f32 to vector<2x32xf32>
    %343 = arith.addf %342, %341 : vector<2x32xf32>
    %344 = arith.divf %342, %343 : vector<2x32xf32>
    %345 = vector.extract_strided_slice %312 {offsets = [0, 64], sizes = [2, 32], strides = [1, 1]} : vector<2x128xf32> to vector<2x32xf32>
    %346 = math.tanh %345 : vector<2x32xf32>
    %347 = vector.extract_strided_slice %312 {offsets = [0, 96], sizes = [2, 32], strides = [1, 1]} : vector<2x128xf32> to vector<2x32xf32>
    %348 = arith.negf %347 : vector<2x32xf32>
    %349 = math.exp %348 : vector<2x32xf32>
    %cst_82 = arith.constant 1.000000e+00 : f32
    %350 = vector.broadcast %cst_82 : f32 to vector<2x32xf32>
    %351 = arith.addf %350, %349 : vector<2x32xf32>
    %352 = arith.divf %350, %351 : vector<2x32xf32>
    %353 = arith.mulf %324, %293 : vector<2x32xf32>
    %354 = arith.mulf %318, %326 : vector<2x32xf32>
    %355 = arith.addf %353, %354 : vector<2x32xf32>
    %356 = arith.mulf %344, %296 : vector<2x32xf32>
    %357 = arith.mulf %338, %346 : vector<2x32xf32>
    %358 = arith.addf %356, %357 : vector<2x32xf32>
    %359 = math.tanh %355 : vector<2x32xf32>
    %360 = arith.mulf %332, %359 : vector<2x32xf32>
    %361 = math.tanh %358 : vector<2x32xf32>
    %362 = arith.mulf %352, %361 : vector<2x32xf32>
    %363 = tpu.concatenate %360, %362 in 1 : vector<2x32xf32>, vector<2x32xf32> -> vector<2x64xf32>
    %364 = vector.extract_strided_slice %172 {offsets = [3, 0], sizes = [1, 128], strides = [1, 1]} : vector<16x128xf32> to vector<1x128xf32>
    %365 = vector.extract_strided_slice %172 {offsets = [11, 0], sizes = [1, 128], strides = [1, 1]} : vector<16x128xf32> to vector<1x128xf32>
    %366 = tpu.concatenate %364, %365 in 0 : vector<1x128xf32>, vector<1x128xf32> -> vector<2x128xf32>
    %367 = vector.extract_strided_slice %173 {offsets = [4, 0], sizes = [1, 128], strides = [1, 1]} : vector<16x128xf32> to vector<1x128xf32>
    %368 = vector.extract_strided_slice %173 {offsets = [12, 0], sizes = [1, 128], strides = [1, 1]} : vector<16x128xf32> to vector<1x128xf32>
    %369 = tpu.concatenate %367, %368 in 0 : vector<1x128xf32>, vector<1x128xf32> -> vector<2x128xf32>
    %370 = tpu.concatenate %366, %369 in 1 : vector<2x128xf32>, vector<2x128xf32> -> vector<2x256xf32>
    %cst_83 = arith.constant dense<0.000000e+00> : vector<2x256xf32>
    %371 = tpu.matmul %363, %174, %cst_83 {dimension_numbers = #tpu.dot_dimension_numbers<[1], [0], [0], [1], [0, 0, 1, 1], [], []>} : vector<2x64xf32>, vector<64x256xf32>, vector<2x256xf32> -> vector<2x256xf32>
    %372 = arith.addf %370, %371 : vector<2x256xf32>
    %373 = vector.extract_strided_slice %372 {offsets = [0, 0], sizes = [2, 128], strides = [1, 1]} : vector<2x256xf32> to vector<2x128xf32>
    %374 = vector.extract_strided_slice %372 {offsets = [0, 128], sizes = [2, 128], strides = [1, 1]} : vector<2x256xf32> to vector<2x128xf32>
    %375 = vector.extract_strided_slice %373 {offsets = [0, 0], sizes = [2, 32], strides = [1, 1]} : vector<2x128xf32> to vector<2x32xf32>
    %376 = arith.negf %375 : vector<2x32xf32>
    %377 = math.exp %376 : vector<2x32xf32>
    %cst_84 = arith.constant 1.000000e+00 : f32
    %378 = vector.broadcast %cst_84 : f32 to vector<2x32xf32>
    %379 = arith.addf %378, %377 : vector<2x32xf32>
    %380 = arith.divf %378, %379 : vector<2x32xf32>
    %381 = vector.extract_strided_slice %373 {offsets = [0, 32], sizes = [2, 32], strides = [1, 1]} : vector<2x128xf32> to vector<2x32xf32>
    %382 = arith.negf %381 : vector<2x32xf32>
    %383 = math.exp %382 : vector<2x32xf32>
    %cst_85 = arith.constant 1.000000e+00 : f32
    %384 = vector.broadcast %cst_85 : f32 to vector<2x32xf32>
    %385 = arith.addf %384, %383 : vector<2x32xf32>
    %386 = arith.divf %384, %385 : vector<2x32xf32>
    %387 = vector.extract_strided_slice %373 {offsets = [0, 64], sizes = [2, 32], strides = [1, 1]} : vector<2x128xf32> to vector<2x32xf32>
    %388 = math.tanh %387 : vector<2x32xf32>
    %389 = vector.extract_strided_slice %373 {offsets = [0, 96], sizes = [2, 32], strides = [1, 1]} : vector<2x128xf32> to vector<2x32xf32>
    %390 = arith.negf %389 : vector<2x32xf32>
    %391 = math.exp %390 : vector<2x32xf32>
    %cst_86 = arith.constant 1.000000e+00 : f32
    %392 = vector.broadcast %cst_86 : f32 to vector<2x32xf32>
    %393 = arith.addf %392, %391 : vector<2x32xf32>
    %394 = arith.divf %392, %393 : vector<2x32xf32>
    %395 = vector.extract_strided_slice %374 {offsets = [0, 0], sizes = [2, 32], strides = [1, 1]} : vector<2x128xf32> to vector<2x32xf32>
    %396 = arith.negf %395 : vector<2x32xf32>
    %397 = math.exp %396 : vector<2x32xf32>
    %cst_87 = arith.constant 1.000000e+00 : f32
    %398 = vector.broadcast %cst_87 : f32 to vector<2x32xf32>
    %399 = arith.addf %398, %397 : vector<2x32xf32>
    %400 = arith.divf %398, %399 : vector<2x32xf32>
    %401 = vector.extract_strided_slice %374 {offsets = [0, 32], sizes = [2, 32], strides = [1, 1]} : vector<2x128xf32> to vector<2x32xf32>
    %402 = arith.negf %401 : vector<2x32xf32>
    %403 = math.exp %402 : vector<2x32xf32>
    %cst_88 = arith.constant 1.000000e+00 : f32
    %404 = vector.broadcast %cst_88 : f32 to vector<2x32xf32>
    %405 = arith.addf %404, %403 : vector<2x32xf32>
    %406 = arith.divf %404, %405 : vector<2x32xf32>
    %407 = vector.extract_strided_slice %374 {offsets = [0, 64], sizes = [2, 32], strides = [1, 1]} : vector<2x128xf32> to vector<2x32xf32>
    %408 = math.tanh %407 : vector<2x32xf32>
    %409 = vector.extract_strided_slice %374 {offsets = [0, 96], sizes = [2, 32], strides = [1, 1]} : vector<2x128xf32> to vector<2x32xf32>
    %410 = arith.negf %409 : vector<2x32xf32>
    %411 = math.exp %410 : vector<2x32xf32>
    %cst_89 = arith.constant 1.000000e+00 : f32
    %412 = vector.broadcast %cst_89 : f32 to vector<2x32xf32>
    %413 = arith.addf %412, %411 : vector<2x32xf32>
    %414 = arith.divf %412, %413 : vector<2x32xf32>
    %415 = arith.mulf %386, %355 : vector<2x32xf32>
    %416 = arith.mulf %380, %388 : vector<2x32xf32>
    %417 = arith.addf %415, %416 : vector<2x32xf32>
    %418 = arith.mulf %406, %358 : vector<2x32xf32>
    %419 = arith.mulf %400, %408 : vector<2x32xf32>
    %420 = arith.addf %418, %419 : vector<2x32xf32>
    %421 = math.tanh %417 : vector<2x32xf32>
    %422 = arith.mulf %394, %421 : vector<2x32xf32>
    %423 = math.tanh %420 : vector<2x32xf32>
    %424 = arith.mulf %414, %423 : vector<2x32xf32>
    %425 = tpu.concatenate %422, %424 in 1 : vector<2x32xf32>, vector<2x32xf32> -> vector<2x64xf32>
    %426 = vector.extract_strided_slice %172 {offsets = [4, 0], sizes = [1, 128], strides = [1, 1]} : vector<16x128xf32> to vector<1x128xf32>
    %427 = vector.extract_strided_slice %172 {offsets = [12, 0], sizes = [1, 128], strides = [1, 1]} : vector<16x128xf32> to vector<1x128xf32>
    %428 = tpu.concatenate %426, %427 in 0 : vector<1x128xf32>, vector<1x128xf32> -> vector<2x128xf32>
    %429 = vector.extract_strided_slice %173 {offsets = [3, 0], sizes = [1, 128], strides = [1, 1]} : vector<16x128xf32> to vector<1x128xf32>
    %430 = vector.extract_strided_slice %173 {offsets = [11, 0], sizes = [1, 128], strides = [1, 1]} : vector<16x128xf32> to vector<1x128xf32>
    %431 = tpu.concatenate %429, %430 in 0 : vector<1x128xf32>, vector<1x128xf32> -> vector<2x128xf32>
    %432 = tpu.concatenate %428, %431 in 1 : vector<2x128xf32>, vector<2x128xf32> -> vector<2x256xf32>
    %cst_90 = arith.constant dense<0.000000e+00> : vector<2x256xf32>
    %433 = tpu.matmul %425, %174, %cst_90 {dimension_numbers = #tpu.dot_dimension_numbers<[1], [0], [0], [1], [0, 0, 1, 1], [], []>} : vector<2x64xf32>, vector<64x256xf32>, vector<2x256xf32> -> vector<2x256xf32>
    %434 = arith.addf %432, %433 : vector<2x256xf32>
    %435 = vector.extract_strided_slice %434 {offsets = [0, 0], sizes = [2, 128], strides = [1, 1]} : vector<2x256xf32> to vector<2x128xf32>
    %436 = vector.extract_strided_slice %434 {offsets = [0, 128], sizes = [2, 128], strides = [1, 1]} : vector<2x256xf32> to vector<2x128xf32>
    %437 = vector.extract_strided_slice %435 {offsets = [0, 0], sizes = [2, 32], strides = [1, 1]} : vector<2x128xf32> to vector<2x32xf32>
    %438 = arith.negf %437 : vector<2x32xf32>
    %439 = math.exp %438 : vector<2x32xf32>
    %cst_91 = arith.constant 1.000000e+00 : f32
    %440 = vector.broadcast %cst_91 : f32 to vector<2x32xf32>
    %441 = arith.addf %440, %439 : vector<2x32xf32>
    %442 = arith.divf %440, %441 : vector<2x32xf32>
    %443 = vector.extract_strided_slice %435 {offsets = [0, 32], sizes = [2, 32], strides = [1, 1]} : vector<2x128xf32> to vector<2x32xf32>
    %444 = arith.negf %443 : vector<2x32xf32>
    %445 = math.exp %444 : vector<2x32xf32>
    %cst_92 = arith.constant 1.000000e+00 : f32
    %446 = vector.broadcast %cst_92 : f32 to vector<2x32xf32>
    %447 = arith.addf %446, %445 : vector<2x32xf32>
    %448 = arith.divf %446, %447 : vector<2x32xf32>
    %449 = vector.extract_strided_slice %435 {offsets = [0, 64], sizes = [2, 32], strides = [1, 1]} : vector<2x128xf32> to vector<2x32xf32>
    %450 = math.tanh %449 : vector<2x32xf32>
    %451 = vector.extract_strided_slice %435 {offsets = [0, 96], sizes = [2, 32], strides = [1, 1]} : vector<2x128xf32> to vector<2x32xf32>
    %452 = arith.negf %451 : vector<2x32xf32>
    %453 = math.exp %452 : vector<2x32xf32>
    %cst_93 = arith.constant 1.000000e+00 : f32
    %454 = vector.broadcast %cst_93 : f32 to vector<2x32xf32>
    %455 = arith.addf %454, %453 : vector<2x32xf32>
    %456 = arith.divf %454, %455 : vector<2x32xf32>
    %457 = vector.extract_strided_slice %436 {offsets = [0, 0], sizes = [2, 32], strides = [1, 1]} : vector<2x128xf32> to vector<2x32xf32>
    %458 = arith.negf %457 : vector<2x32xf32>
    %459 = math.exp %458 : vector<2x32xf32>
    %cst_94 = arith.constant 1.000000e+00 : f32
    %460 = vector.broadcast %cst_94 : f32 to vector<2x32xf32>
    %461 = arith.addf %460, %459 : vector<2x32xf32>
    %462 = arith.divf %460, %461 : vector<2x32xf32>
    %463 = vector.extract_strided_slice %436 {offsets = [0, 32], sizes = [2, 32], strides = [1, 1]} : vector<2x128xf32> to vector<2x32xf32>
    %464 = arith.negf %463 : vector<2x32xf32>
    %465 = math.exp %464 : vector<2x32xf32>
    %cst_95 = arith.constant 1.000000e+00 : f32
    %466 = vector.broadcast %cst_95 : f32 to vector<2x32xf32>
    %467 = arith.addf %466, %465 : vector<2x32xf32>
    %468 = arith.divf %466, %467 : vector<2x32xf32>
    %469 = vector.extract_strided_slice %436 {offsets = [0, 64], sizes = [2, 32], strides = [1, 1]} : vector<2x128xf32> to vector<2x32xf32>
    %470 = math.tanh %469 : vector<2x32xf32>
    %471 = vector.extract_strided_slice %436 {offsets = [0, 96], sizes = [2, 32], strides = [1, 1]} : vector<2x128xf32> to vector<2x32xf32>
    %472 = arith.negf %471 : vector<2x32xf32>
    %473 = math.exp %472 : vector<2x32xf32>
    %cst_96 = arith.constant 1.000000e+00 : f32
    %474 = vector.broadcast %cst_96 : f32 to vector<2x32xf32>
    %475 = arith.addf %474, %473 : vector<2x32xf32>
    %476 = arith.divf %474, %475 : vector<2x32xf32>
    %477 = arith.mulf %448, %417 : vector<2x32xf32>
    %478 = arith.mulf %442, %450 : vector<2x32xf32>
    %479 = arith.addf %477, %478 : vector<2x32xf32>
    %480 = arith.mulf %468, %420 : vector<2x32xf32>
    %481 = arith.mulf %462, %470 : vector<2x32xf32>
    %482 = arith.addf %480, %481 : vector<2x32xf32>
    %483 = math.tanh %479 : vector<2x32xf32>
    %484 = arith.mulf %456, %483 : vector<2x32xf32>
    %485 = math.tanh %482 : vector<2x32xf32>
    %486 = arith.mulf %476, %485 : vector<2x32xf32>
    %487 = tpu.concatenate %484, %486 in 1 : vector<2x32xf32>, vector<2x32xf32> -> vector<2x64xf32>
    %488 = vector.extract_strided_slice %172 {offsets = [5, 0], sizes = [1, 128], strides = [1, 1]} : vector<16x128xf32> to vector<1x128xf32>
    %489 = vector.extract_strided_slice %172 {offsets = [13, 0], sizes = [1, 128], strides = [1, 1]} : vector<16x128xf32> to vector<1x128xf32>
    %490 = tpu.concatenate %488, %489 in 0 : vector<1x128xf32>, vector<1x128xf32> -> vector<2x128xf32>
    %491 = vector.extract_strided_slice %173 {offsets = [2, 0], sizes = [1, 128], strides = [1, 1]} : vector<16x128xf32> to vector<1x128xf32>
    %492 = vector.extract_strided_slice %173 {offsets = [10, 0], sizes = [1, 128], strides = [1, 1]} : vector<16x128xf32> to vector<1x128xf32>
    %493 = tpu.concatenate %491, %492 in 0 : vector<1x128xf32>, vector<1x128xf32> -> vector<2x128xf32>
    %494 = tpu.concatenate %490, %493 in 1 : vector<2x128xf32>, vector<2x128xf32> -> vector<2x256xf32>
    %cst_97 = arith.constant dense<0.000000e+00> : vector<2x256xf32>
    %495 = tpu.matmul %487, %174, %cst_97 {dimension_numbers = #tpu.dot_dimension_numbers<[1], [0], [0], [1], [0, 0, 1, 1], [], []>} : vector<2x64xf32>, vector<64x256xf32>, vector<2x256xf32> -> vector<2x256xf32>
    %496 = arith.addf %494, %495 : vector<2x256xf32>
    %497 = vector.extract_strided_slice %496 {offsets = [0, 0], sizes = [2, 128], strides = [1, 1]} : vector<2x256xf32> to vector<2x128xf32>
    %498 = vector.extract_strided_slice %496 {offsets = [0, 128], sizes = [2, 128], strides = [1, 1]} : vector<2x256xf32> to vector<2x128xf32>
    %499 = vector.extract_strided_slice %497 {offsets = [0, 0], sizes = [2, 32], strides = [1, 1]} : vector<2x128xf32> to vector<2x32xf32>
    %500 = arith.negf %499 : vector<2x32xf32>
    %501 = math.exp %500 : vector<2x32xf32>
    %cst_98 = arith.constant 1.000000e+00 : f32
    %502 = vector.broadcast %cst_98 : f32 to vector<2x32xf32>
    %503 = arith.addf %502, %501 : vector<2x32xf32>
    %504 = arith.divf %502, %503 : vector<2x32xf32>
    %505 = vector.extract_strided_slice %497 {offsets = [0, 32], sizes = [2, 32], strides = [1, 1]} : vector<2x128xf32> to vector<2x32xf32>
    %506 = arith.negf %505 : vector<2x32xf32>
    %507 = math.exp %506 : vector<2x32xf32>
    %cst_99 = arith.constant 1.000000e+00 : f32
    %508 = vector.broadcast %cst_99 : f32 to vector<2x32xf32>
    %509 = arith.addf %508, %507 : vector<2x32xf32>
    %510 = arith.divf %508, %509 : vector<2x32xf32>
    %511 = vector.extract_strided_slice %497 {offsets = [0, 64], sizes = [2, 32], strides = [1, 1]} : vector<2x128xf32> to vector<2x32xf32>
    %512 = math.tanh %511 : vector<2x32xf32>
    %513 = vector.extract_strided_slice %497 {offsets = [0, 96], sizes = [2, 32], strides = [1, 1]} : vector<2x128xf32> to vector<2x32xf32>
    %514 = arith.negf %513 : vector<2x32xf32>
    %515 = math.exp %514 : vector<2x32xf32>
    %cst_100 = arith.constant 1.000000e+00 : f32
    %516 = vector.broadcast %cst_100 : f32 to vector<2x32xf32>
    %517 = arith.addf %516, %515 : vector<2x32xf32>
    %518 = arith.divf %516, %517 : vector<2x32xf32>
    %519 = vector.extract_strided_slice %498 {offsets = [0, 0], sizes = [2, 32], strides = [1, 1]} : vector<2x128xf32> to vector<2x32xf32>
    %520 = arith.negf %519 : vector<2x32xf32>
    %521 = math.exp %520 : vector<2x32xf32>
    %cst_101 = arith.constant 1.000000e+00 : f32
    %522 = vector.broadcast %cst_101 : f32 to vector<2x32xf32>
    %523 = arith.addf %522, %521 : vector<2x32xf32>
    %524 = arith.divf %522, %523 : vector<2x32xf32>
    %525 = vector.extract_strided_slice %498 {offsets = [0, 32], sizes = [2, 32], strides = [1, 1]} : vector<2x128xf32> to vector<2x32xf32>
    %526 = arith.negf %525 : vector<2x32xf32>
    %527 = math.exp %526 : vector<2x32xf32>
    %cst_102 = arith.constant 1.000000e+00 : f32
    %528 = vector.broadcast %cst_102 : f32 to vector<2x32xf32>
    %529 = arith.addf %528, %527 : vector<2x32xf32>
    %530 = arith.divf %528, %529 : vector<2x32xf32>
    %531 = vector.extract_strided_slice %498 {offsets = [0, 64], sizes = [2, 32], strides = [1, 1]} : vector<2x128xf32> to vector<2x32xf32>
    %532 = math.tanh %531 : vector<2x32xf32>
    %533 = vector.extract_strided_slice %498 {offsets = [0, 96], sizes = [2, 32], strides = [1, 1]} : vector<2x128xf32> to vector<2x32xf32>
    %534 = arith.negf %533 : vector<2x32xf32>
    %535 = math.exp %534 : vector<2x32xf32>
    %cst_103 = arith.constant 1.000000e+00 : f32
    %536 = vector.broadcast %cst_103 : f32 to vector<2x32xf32>
    %537 = arith.addf %536, %535 : vector<2x32xf32>
    %538 = arith.divf %536, %537 : vector<2x32xf32>
    %539 = arith.mulf %510, %479 : vector<2x32xf32>
    %540 = arith.mulf %504, %512 : vector<2x32xf32>
    %541 = arith.addf %539, %540 : vector<2x32xf32>
    %542 = arith.mulf %530, %482 : vector<2x32xf32>
    %543 = arith.mulf %524, %532 : vector<2x32xf32>
    %544 = arith.addf %542, %543 : vector<2x32xf32>
    %545 = math.tanh %541 : vector<2x32xf32>
    %546 = arith.mulf %518, %545 : vector<2x32xf32>
    %547 = math.tanh %544 : vector<2x32xf32>
    %548 = arith.mulf %538, %547 : vector<2x32xf32>
    %549 = tpu.concatenate %546, %548 in 1 : vector<2x32xf32>, vector<2x32xf32> -> vector<2x64xf32>
    %550 = vector.extract_strided_slice %172 {offsets = [6, 0], sizes = [1, 128], strides = [1, 1]} : vector<16x128xf32> to vector<1x128xf32>
    %551 = vector.extract_strided_slice %172 {offsets = [14, 0], sizes = [1, 128], strides = [1, 1]} : vector<16x128xf32> to vector<1x128xf32>
    %552 = tpu.concatenate %550, %551 in 0 : vector<1x128xf32>, vector<1x128xf32> -> vector<2x128xf32>
    %553 = vector.extract_strided_slice %173 {offsets = [1, 0], sizes = [1, 128], strides = [1, 1]} : vector<16x128xf32> to vector<1x128xf32>
    %554 = vector.extract_strided_slice %173 {offsets = [9, 0], sizes = [1, 128], strides = [1, 1]} : vector<16x128xf32> to vector<1x128xf32>
    %555 = tpu.concatenate %553, %554 in 0 : vector<1x128xf32>, vector<1x128xf32> -> vector<2x128xf32>
    %556 = tpu.concatenate %552, %555 in 1 : vector<2x128xf32>, vector<2x128xf32> -> vector<2x256xf32>
    %cst_104 = arith.constant dense<0.000000e+00> : vector<2x256xf32>
    %557 = tpu.matmul %549, %174, %cst_104 {dimension_numbers = #tpu.dot_dimension_numbers<[1], [0], [0], [1], [0, 0, 1, 1], [], []>} : vector<2x64xf32>, vector<64x256xf32>, vector<2x256xf32> -> vector<2x256xf32>
    %558 = arith.addf %556, %557 : vector<2x256xf32>
    %559 = vector.extract_strided_slice %558 {offsets = [0, 0], sizes = [2, 128], strides = [1, 1]} : vector<2x256xf32> to vector<2x128xf32>
    %560 = vector.extract_strided_slice %558 {offsets = [0, 128], sizes = [2, 128], strides = [1, 1]} : vector<2x256xf32> to vector<2x128xf32>
    %561 = vector.extract_strided_slice %559 {offsets = [0, 0], sizes = [2, 32], strides = [1, 1]} : vector<2x128xf32> to vector<2x32xf32>
    %562 = arith.negf %561 : vector<2x32xf32>
    %563 = math.exp %562 : vector<2x32xf32>
    %cst_105 = arith.constant 1.000000e+00 : f32
    %564 = vector.broadcast %cst_105 : f32 to vector<2x32xf32>
    %565 = arith.addf %564, %563 : vector<2x32xf32>
    %566 = arith.divf %564, %565 : vector<2x32xf32>
    %567 = vector.extract_strided_slice %559 {offsets = [0, 32], sizes = [2, 32], strides = [1, 1]} : vector<2x128xf32> to vector<2x32xf32>
    %568 = arith.negf %567 : vector<2x32xf32>
    %569 = math.exp %568 : vector<2x32xf32>
    %cst_106 = arith.constant 1.000000e+00 : f32
    %570 = vector.broadcast %cst_106 : f32 to vector<2x32xf32>
    %571 = arith.addf %570, %569 : vector<2x32xf32>
    %572 = arith.divf %570, %571 : vector<2x32xf32>
    %573 = vector.extract_strided_slice %559 {offsets = [0, 64], sizes = [2, 32], strides = [1, 1]} : vector<2x128xf32> to vector<2x32xf32>
    %574 = math.tanh %573 : vector<2x32xf32>
    %575 = vector.extract_strided_slice %559 {offsets = [0, 96], sizes = [2, 32], strides = [1, 1]} : vector<2x128xf32> to vector<2x32xf32>
    %576 = arith.negf %575 : vector<2x32xf32>
    %577 = math.exp %576 : vector<2x32xf32>
    %cst_107 = arith.constant 1.000000e+00 : f32
    %578 = vector.broadcast %cst_107 : f32 to vector<2x32xf32>
    %579 = arith.addf %578, %577 : vector<2x32xf32>
    %580 = arith.divf %578, %579 : vector<2x32xf32>
    %581 = vector.extract_strided_slice %560 {offsets = [0, 0], sizes = [2, 32], strides = [1, 1]} : vector<2x128xf32> to vector<2x32xf32>
    %582 = arith.negf %581 : vector<2x32xf32>
    %583 = math.exp %582 : vector<2x32xf32>
    %cst_108 = arith.constant 1.000000e+00 : f32
    %584 = vector.broadcast %cst_108 : f32 to vector<2x32xf32>
    %585 = arith.addf %584, %583 : vector<2x32xf32>
    %586 = arith.divf %584, %585 : vector<2x32xf32>
    %587 = vector.extract_strided_slice %560 {offsets = [0, 32], sizes = [2, 32], strides = [1, 1]} : vector<2x128xf32> to vector<2x32xf32>
    %588 = arith.negf %587 : vector<2x32xf32>
    %589 = math.exp %588 : vector<2x32xf32>
    %cst_109 = arith.constant 1.000000e+00 : f32
    %590 = vector.broadcast %cst_109 : f32 to vector<2x32xf32>
    %591 = arith.addf %590, %589 : vector<2x32xf32>
    %592 = arith.divf %590, %591 : vector<2x32xf32>
    %593 = vector.extract_strided_slice %560 {offsets = [0, 64], sizes = [2, 32], strides = [1, 1]} : vector<2x128xf32> to vector<2x32xf32>
    %594 = math.tanh %593 : vector<2x32xf32>
    %595 = vector.extract_strided_slice %560 {offsets = [0, 96], sizes = [2, 32], strides = [1, 1]} : vector<2x128xf32> to vector<2x32xf32>
    %596 = arith.negf %595 : vector<2x32xf32>
    %597 = math.exp %596 : vector<2x32xf32>
    %cst_110 = arith.constant 1.000000e+00 : f32
    %598 = vector.broadcast %cst_110 : f32 to vector<2x32xf32>
    %599 = arith.addf %598, %597 : vector<2x32xf32>
    %600 = arith.divf %598, %599 : vector<2x32xf32>
    %601 = arith.mulf %572, %541 : vector<2x32xf32>
    %602 = arith.mulf %566, %574 : vector<2x32xf32>
    %603 = arith.addf %601, %602 : vector<2x32xf32>
    %604 = arith.mulf %592, %544 : vector<2x32xf32>
    %605 = arith.mulf %586, %594 : vector<2x32xf32>
    %606 = arith.addf %604, %605 : vector<2x32xf32>
    %607 = math.tanh %603 : vector<2x32xf32>
    %608 = arith.mulf %580, %607 : vector<2x32xf32>
    %609 = math.tanh %606 : vector<2x32xf32>
    %610 = arith.mulf %600, %609 : vector<2x32xf32>
    %611 = tpu.concatenate %608, %610 in 1 : vector<2x32xf32>, vector<2x32xf32> -> vector<2x64xf32>
    %612 = vector.extract_strided_slice %172 {offsets = [7, 0], sizes = [1, 128], strides = [1, 1]} : vector<16x128xf32> to vector<1x128xf32>
    %613 = vector.extract_strided_slice %172 {offsets = [15, 0], sizes = [1, 128], strides = [1, 1]} : vector<16x128xf32> to vector<1x128xf32>
    %614 = tpu.concatenate %612, %613 in 0 : vector<1x128xf32>, vector<1x128xf32> -> vector<2x128xf32>
    %615 = vector.extract_strided_slice %173 {offsets = [0, 0], sizes = [1, 128], strides = [1, 1]} : vector<16x128xf32> to vector<1x128xf32>
    %616 = vector.extract_strided_slice %173 {offsets = [8, 0], sizes = [1, 128], strides = [1, 1]} : vector<16x128xf32> to vector<1x128xf32>
    %617 = tpu.concatenate %615, %616 in 0 : vector<1x128xf32>, vector<1x128xf32> -> vector<2x128xf32>
    %618 = tpu.concatenate %614, %617 in 1 : vector<2x128xf32>, vector<2x128xf32> -> vector<2x256xf32>
    %cst_111 = arith.constant dense<0.000000e+00> : vector<2x256xf32>
    %619 = tpu.matmul %611, %174, %cst_111 {dimension_numbers = #tpu.dot_dimension_numbers<[1], [0], [0], [1], [0, 0, 1, 1], [], []>} : vector<2x64xf32>, vector<64x256xf32>, vector<2x256xf32> -> vector<2x256xf32>
    %620 = arith.addf %618, %619 : vector<2x256xf32>
    %621 = vector.extract_strided_slice %620 {offsets = [0, 0], sizes = [2, 128], strides = [1, 1]} : vector<2x256xf32> to vector<2x128xf32>
    %622 = vector.extract_strided_slice %620 {offsets = [0, 128], sizes = [2, 128], strides = [1, 1]} : vector<2x256xf32> to vector<2x128xf32>
    %623 = vector.extract_strided_slice %621 {offsets = [0, 0], sizes = [2, 32], strides = [1, 1]} : vector<2x128xf32> to vector<2x32xf32>
    %624 = arith.negf %623 : vector<2x32xf32>
    %625 = math.exp %624 : vector<2x32xf32>
    %cst_112 = arith.constant 1.000000e+00 : f32
    %626 = vector.broadcast %cst_112 : f32 to vector<2x32xf32>
    %627 = arith.addf %626, %625 : vector<2x32xf32>
    %628 = arith.divf %626, %627 : vector<2x32xf32>
    %629 = vector.extract_strided_slice %621 {offsets = [0, 32], sizes = [2, 32], strides = [1, 1]} : vector<2x128xf32> to vector<2x32xf32>
    %630 = arith.negf %629 : vector<2x32xf32>
    %631 = math.exp %630 : vector<2x32xf32>
    %cst_113 = arith.constant 1.000000e+00 : f32
    %632 = vector.broadcast %cst_113 : f32 to vector<2x32xf32>
    %633 = arith.addf %632, %631 : vector<2x32xf32>
    %634 = arith.divf %632, %633 : vector<2x32xf32>
    %635 = vector.extract_strided_slice %621 {offsets = [0, 64], sizes = [2, 32], strides = [1, 1]} : vector<2x128xf32> to vector<2x32xf32>
    %636 = math.tanh %635 : vector<2x32xf32>
    %637 = vector.extract_strided_slice %621 {offsets = [0, 96], sizes = [2, 32], strides = [1, 1]} : vector<2x128xf32> to vector<2x32xf32>
    %638 = arith.negf %637 : vector<2x32xf32>
    %639 = math.exp %638 : vector<2x32xf32>
    %cst_114 = arith.constant 1.000000e+00 : f32
    %640 = vector.broadcast %cst_114 : f32 to vector<2x32xf32>
    %641 = arith.addf %640, %639 : vector<2x32xf32>
    %642 = arith.divf %640, %641 : vector<2x32xf32>
    %643 = vector.extract_strided_slice %622 {offsets = [0, 0], sizes = [2, 32], strides = [1, 1]} : vector<2x128xf32> to vector<2x32xf32>
    %644 = arith.negf %643 : vector<2x32xf32>
    %645 = math.exp %644 : vector<2x32xf32>
    %cst_115 = arith.constant 1.000000e+00 : f32
    %646 = vector.broadcast %cst_115 : f32 to vector<2x32xf32>
    %647 = arith.addf %646, %645 : vector<2x32xf32>
    %648 = arith.divf %646, %647 : vector<2x32xf32>
    %649 = vector.extract_strided_slice %622 {offsets = [0, 32], sizes = [2, 32], strides = [1, 1]} : vector<2x128xf32> to vector<2x32xf32>
    %650 = arith.negf %649 : vector<2x32xf32>
    %651 = math.exp %650 : vector<2x32xf32>
    %cst_116 = arith.constant 1.000000e+00 : f32
    %652 = vector.broadcast %cst_116 : f32 to vector<2x32xf32>
    %653 = arith.addf %652, %651 : vector<2x32xf32>
    %654 = arith.divf %652, %653 : vector<2x32xf32>
    %655 = vector.extract_strided_slice %622 {offsets = [0, 64], sizes = [2, 32], strides = [1, 1]} : vector<2x128xf32> to vector<2x32xf32>
    %656 = math.tanh %655 : vector<2x32xf32>
    %657 = vector.extract_strided_slice %622 {offsets = [0, 96], sizes = [2, 32], strides = [1, 1]} : vector<2x128xf32> to vector<2x32xf32>
    %658 = arith.negf %657 : vector<2x32xf32>
    %659 = math.exp %658 : vector<2x32xf32>
    %cst_117 = arith.constant 1.000000e+00 : f32
    %660 = vector.broadcast %cst_117 : f32 to vector<2x32xf32>
    %661 = arith.addf %660, %659 : vector<2x32xf32>
    %662 = arith.divf %660, %661 : vector<2x32xf32>
    %663 = arith.mulf %634, %603 : vector<2x32xf32>
    %664 = arith.mulf %628, %636 : vector<2x32xf32>
    %665 = arith.addf %663, %664 : vector<2x32xf32>
    %666 = arith.mulf %654, %606 : vector<2x32xf32>
    %667 = arith.mulf %648, %656 : vector<2x32xf32>
    %668 = arith.addf %666, %667 : vector<2x32xf32>
    %669 = math.tanh %665 : vector<2x32xf32>
    %670 = arith.mulf %642, %669 : vector<2x32xf32>
    %671 = math.tanh %668 : vector<2x32xf32>
    %672 = arith.mulf %662, %671 : vector<2x32xf32>
    %673 = vector.extract_strided_slice %236 {offsets = [0, 0], sizes = [1, 32], strides = [1, 1]} : vector<2x32xf32> to vector<1x32xf32>
    %674 = vector.extract_strided_slice %672 {offsets = [0, 0], sizes = [1, 32], strides = [1, 1]} : vector<2x32xf32> to vector<1x32xf32>
    %675 = tpu.concatenate %673, %674 in 1 : vector<1x32xf32>, vector<1x32xf32> -> vector<1x64xf32>
    %676 = vector.extract_strided_slice %298 {offsets = [0, 0], sizes = [1, 32], strides = [1, 1]} : vector<2x32xf32> to vector<1x32xf32>
    %677 = vector.extract_strided_slice %610 {offsets = [0, 0], sizes = [1, 32], strides = [1, 1]} : vector<2x32xf32> to vector<1x32xf32>
    %678 = tpu.concatenate %676, %677 in 1 : vector<1x32xf32>, vector<1x32xf32> -> vector<1x64xf32>
    %679 = vector.extract_strided_slice %360 {offsets = [0, 0], sizes = [1, 32], strides = [1, 1]} : vector<2x32xf32> to vector<1x32xf32>
    %680 = vector.extract_strided_slice %548 {offsets = [0, 0], sizes = [1, 32], strides = [1, 1]} : vector<2x32xf32> to vector<1x32xf32>
    %681 = tpu.concatenate %679, %680 in 1 : vector<1x32xf32>, vector<1x32xf32> -> vector<1x64xf32>
    %682 = vector.extract_strided_slice %422 {offsets = [0, 0], sizes = [1, 32], strides = [1, 1]} : vector<2x32xf32> to vector<1x32xf32>
    %683 = vector.extract_strided_slice %486 {offsets = [0, 0], sizes = [1, 32], strides = [1, 1]} : vector<2x32xf32> to vector<1x32xf32>
    %684 = tpu.concatenate %682, %683 in 1 : vector<1x32xf32>, vector<1x32xf32> -> vector<1x64xf32>
    %685 = vector.extract_strided_slice %484 {offsets = [0, 0], sizes = [1, 32], strides = [1, 1]} : vector<2x32xf32> to vector<1x32xf32>
    %686 = vector.extract_strided_slice %424 {offsets = [0, 0], sizes = [1, 32], strides = [1, 1]} : vector<2x32xf32> to vector<1x32xf32>
    %687 = tpu.concatenate %685, %686 in 1 : vector<1x32xf32>, vector<1x32xf32> -> vector<1x64xf32>
    %688 = vector.extract_strided_slice %546 {offsets = [0, 0], sizes = [1, 32], strides = [1, 1]} : vector<2x32xf32> to vector<1x32xf32>
    %689 = vector.extract_strided_slice %362 {offsets = [0, 0], sizes = [1, 32], strides = [1, 1]} : vector<2x32xf32> to vector<1x32xf32>
    %690 = tpu.concatenate %688, %689 in 1 : vector<1x32xf32>, vector<1x32xf32> -> vector<1x64xf32>
    %691 = vector.extract_strided_slice %608 {offsets = [0, 0], sizes = [1, 32], strides = [1, 1]} : vector<2x32xf32> to vector<1x32xf32>
    %692 = vector.extract_strided_slice %300 {offsets = [0, 0], sizes = [1, 32], strides = [1, 1]} : vector<2x32xf32> to vector<1x32xf32>
    %693 = tpu.concatenate %691, %692 in 1 : vector<1x32xf32>, vector<1x32xf32> -> vector<1x64xf32>
    %694 = vector.extract_strided_slice %670 {offsets = [0, 0], sizes = [1, 32], strides = [1, 1]} : vector<2x32xf32> to vector<1x32xf32>
    %695 = vector.extract_strided_slice %238 {offsets = [0, 0], sizes = [1, 32], strides = [1, 1]} : vector<2x32xf32> to vector<1x32xf32>
    %696 = tpu.concatenate %694, %695 in 1 : vector<1x32xf32>, vector<1x32xf32> -> vector<1x64xf32>
    %697 = vector.extract_strided_slice %236 {offsets = [1, 0], sizes = [1, 32], strides = [1, 1]} : vector<2x32xf32> to vector<1x32xf32>
    %698 = vector.extract_strided_slice %672 {offsets = [1, 0], sizes = [1, 32], strides = [1, 1]} : vector<2x32xf32> to vector<1x32xf32>
    %699 = tpu.concatenate %697, %698 in 1 : vector<1x32xf32>, vector<1x32xf32> -> vector<1x64xf32>
    %700 = vector.extract_strided_slice %298 {offsets = [1, 0], sizes = [1, 32], strides = [1, 1]} : vector<2x32xf32> to vector<1x32xf32>
    %701 = vector.extract_strided_slice %610 {offsets = [1, 0], sizes = [1, 32], strides = [1, 1]} : vector<2x32xf32> to vector<1x32xf32>
    %702 = tpu.concatenate %700, %701 in 1 : vector<1x32xf32>, vector<1x32xf32> -> vector<1x64xf32>
    %703 = vector.extract_strided_slice %360 {offsets = [1, 0], sizes = [1, 32], strides = [1, 1]} : vector<2x32xf32> to vector<1x32xf32>
    %704 = vector.extract_strided_slice %548 {offsets = [1, 0], sizes = [1, 32], strides = [1, 1]} : vector<2x32xf32> to vector<1x32xf32>
    %705 = tpu.concatenate %703, %704 in 1 : vector<1x32xf32>, vector<1x32xf32> -> vector<1x64xf32>
    %706 = vector.extract_strided_slice %422 {offsets = [1, 0], sizes = [1, 32], strides = [1, 1]} : vector<2x32xf32> to vector<1x32xf32>
    %707 = vector.extract_strided_slice %486 {offsets = [1, 0], sizes = [1, 32], strides = [1, 1]} : vector<2x32xf32> to vector<1x32xf32>
    %708 = tpu.concatenate %706, %707 in 1 : vector<1x32xf32>, vector<1x32xf32> -> vector<1x64xf32>
    %709 = vector.extract_strided_slice %484 {offsets = [1, 0], sizes = [1, 32], strides = [1, 1]} : vector<2x32xf32> to vector<1x32xf32>
    %710 = vector.extract_strided_slice %424 {offsets = [1, 0], sizes = [1, 32], strides = [1, 1]} : vector<2x32xf32> to vector<1x32xf32>
    %711 = tpu.concatenate %709, %710 in 1 : vector<1x32xf32>, vector<1x32xf32> -> vector<1x64xf32>
    %712 = vector.extract_strided_slice %546 {offsets = [1, 0], sizes = [1, 32], strides = [1, 1]} : vector<2x32xf32> to vector<1x32xf32>
    %713 = vector.extract_strided_slice %362 {offsets = [1, 0], sizes = [1, 32], strides = [1, 1]} : vector<2x32xf32> to vector<1x32xf32>
    %714 = tpu.concatenate %712, %713 in 1 : vector<1x32xf32>, vector<1x32xf32> -> vector<1x64xf32>
    %715 = vector.extract_strided_slice %608 {offsets = [1, 0], sizes = [1, 32], strides = [1, 1]} : vector<2x32xf32> to vector<1x32xf32>
    %716 = vector.extract_strided_slice %300 {offsets = [1, 0], sizes = [1, 32], strides = [1, 1]} : vector<2x32xf32> to vector<1x32xf32>
    %717 = tpu.concatenate %715, %716 in 1 : vector<1x32xf32>, vector<1x32xf32> -> vector<1x64xf32>
    %718 = vector.extract_strided_slice %670 {offsets = [1, 0], sizes = [1, 32], strides = [1, 1]} : vector<2x32xf32> to vector<1x32xf32>
    %719 = vector.extract_strided_slice %238 {offsets = [1, 0], sizes = [1, 32], strides = [1, 1]} : vector<2x32xf32> to vector<1x32xf32>
    %720 = tpu.concatenate %718, %719 in 1 : vector<1x32xf32>, vector<1x32xf32> -> vector<1x64xf32>
    %721 = tpu.concatenate %675, %678, %681, %684, %687, %690, %693, %696, %699, %702, %705, %708, %711, %714, %717, %720 in 0 : vector<1x64xf32>, vector<1x64xf32>, vector<1x64xf32>, vector<1x64xf32>, vector<1x64xf32>, vector<1x64xf32>, vector<1x64xf32>, vector<1x64xf32>, vector<1x64xf32>, vector<1x64xf32>, vector<1x64xf32>, vector<1x64xf32>, vector<1x64xf32>, vector<1x64xf32>, vector<1x64xf32>, vector<1x64xf32> -> vector<16x64xf32>
    %c0_118 = arith.constant 0 : index
    %c0_119 = arith.constant 0 : index
    %722 = vector.load %arg8[%c0_118, %c0_119] : memref<64x384xf32, #tpu.memory_space<vmem>>, vector<64x384xf32>
    %cst_120 = arith.constant dense<0.000000e+00> : vector<16x384xf32>
    %723 = tpu.matmul %721, %722, %cst_120 {dimension_numbers = #tpu.dot_dimension_numbers<[1], [0], [0], [1], [0, 0, 1, 1], [], []>} : vector<16x64xf32>, vector<64x384xf32>, vector<16x384xf32> -> vector<16x384xf32>
    %c0_121 = arith.constant 0 : index
    %c0_122 = arith.constant 0 : index
    %724 = vector.load %arg9[%c0_121, %c0_122] : memref<1x384xf32, #tpu.memory_space<vmem>>, vector<1x384xf32>
    %725 = vector.broadcast %724 : vector<1x384xf32> to vector<16x384xf32>
    %726 = arith.addf %723, %725 : vector<16x384xf32>
    %c0_123 = arith.constant 0 : index
    %c0_124 = arith.constant 0 : index
    %727 = vector.load %arg10[%c0_123, %c0_124] : memref<16x384xf32, #tpu.memory_space<vmem>>, vector<16x384xf32>
    %728 = arith.mulf %726, %727 : vector<16x384xf32>
    %c0_125 = arith.constant 0 : index
    %c0_126 = arith.constant 0 : index
    %729 = vector.load %arg12[%c0_125, %c0_126] : memref<384x384xf32, #tpu.memory_space<vmem>>, vector<384x384xf32>
    %cst_127 = arith.constant dense<0.000000e+00> : vector<16x384xf32>
    %730 = tpu.matmul %726, %729, %cst_127 {dimension_numbers = #tpu.dot_dimension_numbers<[1], [0], [0], [1], [0, 0, 1, 1], [], []>} : vector<16x384xf32>, vector<384x384xf32>, vector<16x384xf32> -> vector<16x384xf32>
    %c0_128 = arith.constant 0 : index
    %c0_129 = arith.constant 0 : index
    %731 = vector.load %arg11[%c0_128, %c0_129] : memref<16x384xf32, #tpu.memory_space<vmem>>, vector<16x384xf32>
    %732 = arith.mulf %730, %731 : vector<16x384xf32>
    %733 = arith.addf %728, %732 : vector<16x384xf32>
    %cst_130 = arith.constant 6.400000e+01 : f32
    %734 = math.sqrt %cst_130 : f32
    %cst_131 = arith.constant 1.000000e+00 : f32
    %735 = arith.divf %cst_131, %734 : f32
    %736 = vector.extract_strided_slice %733 {offsets = [0, 0], sizes = [16, 64], strides = [1, 1]} : vector<16x384xf32> to vector<16x64xf32>
    %737 = vector.extract_strided_slice %733 {offsets = [0, 64], sizes = [16, 64], strides = [1, 1]} : vector<16x384xf32> to vector<16x64xf32>
    %cst_132 = arith.constant dense<0.000000e+00> : vector<16x16xf32>
    %738 = tpu.matmul %736, %737, %cst_132 {dimension_numbers = #tpu.dot_dimension_numbers<[1], [1], [0], [0], [0, 0, 1, 0], [], []>} : vector<16x64xf32>, vector<16x64xf32>, vector<16x16xf32> -> vector<16x16xf32>
    %739 = vector.broadcast %735 : f32 to vector<16x16xf32>
    %740 = arith.mulf %738, %739 : vector<16x16xf32>
    %741 = vector.extract_strided_slice %740 {offsets = [0, 0], sizes = [8, 8], strides = [1, 1]} : vector<16x16xf32> to vector<8x8xf32>
    %c0_133 = arith.constant 0 : index
    %c0_134 = arith.constant 0 : index
    %742 = vector.load %arg13[%c0_133, %c0_134] : memref<16x24xf32, #tpu.memory_space<vmem>>, vector<8x8xf32>
    tpu.vector_store %arg13[%c0_133, %c0_134], %741 {strides = array<i32>} : memref<16x24xf32, #tpu.memory_space<vmem>>, vector<8x8xf32>,
    %743 = vector.extract_strided_slice %740 {offsets = [8, 8], sizes = [8, 8], strides = [1, 1]} : vector<16x16xf32> to vector<8x8xf32>
    %c8 = arith.constant 8 : index
    %c0_135 = arith.constant 0 : index
    %744 = vector.load %arg13[%c8, %c0_135] : memref<16x24xf32, #tpu.memory_space<vmem>>, vector<8x8xf32>
    tpu.vector_store %arg13[%c8, %c0_135], %743 {strides = array<i32>} : memref<16x24xf32, #tpu.memory_space<vmem>>, vector<8x8xf32>,
    %745 = vector.extract_strided_slice %733 {offsets = [0, 128], sizes = [16, 64], strides = [1, 1]} : vector<16x384xf32> to vector<16x64xf32>
    %746 = vector.extract_strided_slice %733 {offsets = [0, 192], sizes = [16, 64], strides = [1, 1]} : vector<16x384xf32> to vector<16x64xf32>
    %cst_136 = arith.constant dense<0.000000e+00> : vector<16x16xf32>
    %747 = tpu.matmul %745, %746, %cst_136 {dimension_numbers = #tpu.dot_dimension_numbers<[1], [1], [0], [0], [0, 0, 1, 0], [], []>} : vector<16x64xf32>, vector<16x64xf32>, vector<16x16xf32> -> vector<16x16xf32>
    %748 = vector.broadcast %735 : f32 to vector<16x16xf32>
    %749 = arith.mulf %747, %748 : vector<16x16xf32>
    %750 = vector.extract_strided_slice %749 {offsets = [0, 0], sizes = [8, 8], strides = [1, 1]} : vector<16x16xf32> to vector<8x8xf32>
    %c0_137 = arith.constant 0 : index
    %c8_138 = arith.constant 8 : index
    %751 = vector.load %arg13[%c0_137, %c8_138] : memref<16x24xf32, #tpu.memory_space<vmem>>, vector<8x8xf32>
    tpu.vector_store %arg13[%c0_137, %c8_138], %750 {strides = array<i32>} : memref<16x24xf32, #tpu.memory_space<vmem>>, vector<8x8xf32>,
    %752 = vector.extract_strided_slice %749 {offsets = [8, 8], sizes = [8, 8], strides = [1, 1]} : vector<16x16xf32> to vector<8x8xf32>
    %c8_139 = arith.constant 8 : index
    %c8_140 = arith.constant 8 : index
    %753 = vector.load %arg13[%c8_139, %c8_140] : memref<16x24xf32, #tpu.memory_space<vmem>>, vector<8x8xf32>
    tpu.vector_store %arg13[%c8_139, %c8_140], %752 {strides = array<i32>} : memref<16x24xf32, #tpu.memory_space<vmem>>, vector<8x8xf32>,
    %754 = vector.extract_strided_slice %733 {offsets = [0, 256], sizes = [16, 64], strides = [1, 1]} : vector<16x384xf32> to vector<16x64xf32>
    %755 = vector.extract_strided_slice %733 {offsets = [0, 320], sizes = [16, 64], strides = [1, 1]} : vector<16x384xf32> to vector<16x64xf32>
    %cst_141 = arith.constant dense<0.000000e+00> : vector<16x16xf32>
    %756 = tpu.matmul %754, %755, %cst_141 {dimension_numbers = #tpu.dot_dimension_numbers<[1], [1], [0], [0], [0, 0, 1, 0], [], []>} : vector<16x64xf32>, vector<16x64xf32>, vector<16x16xf32> -> vector<16x16xf32>
    %757 = vector.broadcast %735 : f32 to vector<16x16xf32>
    %758 = arith.mulf %756, %757 : vector<16x16xf32>
    %759 = vector.extract_strided_slice %758 {offsets = [0, 0], sizes = [8, 8], strides = [1, 1]} : vector<16x16xf32> to vector<8x8xf32>
    %c0_142 = arith.constant 0 : index
    %c16 = arith.constant 16 : index
    %760 = vector.load %arg13[%c0_142, %c16] : memref<16x24xf32, #tpu.memory_space<vmem>>, vector<8x8xf32>
    tpu.vector_store %arg13[%c0_142, %c16], %759 {strides = array<i32>} : memref<16x24xf32, #tpu.memory_space<vmem>>, vector<8x8xf32>,
    %761 = vector.extract_strided_slice %758 {offsets = [8, 8], sizes = [8, 8], strides = [1, 1]} : vector<16x16xf32> to vector<8x8xf32>
    %c8_143 = arith.constant 8 : index
    %c16_144 = arith.constant 16 : index
    %762 = vector.load %arg13[%c8_143, %c16_144] : memref<16x24xf32, #tpu.memory_space<vmem>>, vector<8x8xf32>
    tpu.vector_store %arg13[%c8_143, %c16_144], %761 {strides = array<i32>} : memref<16x24xf32, #tpu.memory_space<vmem>>, vector<8x8xf32>,
    return
  }
}

</mosaic_0001>

<llo_original>
// kernel: tile.23
$region0: #{tile.23}
  %s0 = inlined_call_operand.vmem [shape: f32[16,6,64], index: 0, kind: input, shape index: {}]
  %s1 = inlined_call_operand.vmem [shape: f32[16,384], index: 1, kind: output, shape index: {}]
  %v2 = vld [vmem:[%s0] ss:$2 sm:$0x7]
  %vm3 = vcmask 523264
  %4 = vst.msk [vmem:[%s1] ss:$8 sm:$0x7] %vm3, %v2
  %s5 = scalar_lea.vmem %s0, 8
  %v6 = vld [vmem:[%s5] ss:$2 sm:$0x7]
  %vm7 = vcmask 523264
  %s8 = scalar_lea.vmem %s1, 1
  %9 = vst.msk [vmem:[%s8] ss:$8 sm:$0x7] %vm7, %v6
  %s10 = scalar_lea.vmem %s0, 16
  %v11 = vld [vmem:[%s10] ss:$2 sm:$0x7]
  %vm12 = vcmask 523264
  %s13 = scalar_lea.vmem %s1, 2
  %14 = vst.msk [vmem:[%s13] ss:$8 sm:$0x7] %vm12, %v11
  %s15 = scalar_lea.vmem %s0, 24
  %v16 = vld [vmem:[%s15] ss:$2 sm:$0x7]
  %vm17 = vcmask 523264
  %s18 = scalar_lea.vmem %s1, 3
  %19 = vst.msk [vmem:[%s18] ss:$8 sm:$0x7] %vm17, %v16
  %s20 = scalar_lea.vmem %s0, 32
  %v21 = vld [vmem:[%s20] ss:$2 sm:$0x7]
  %vm22 = vcmask 523264
  %s23 = scalar_lea.vmem %s1, 4
  %24 = vst.msk [vmem:[%s23] ss:$8 sm:$0x7] %vm22, %v21
  %s25 = scalar_lea.vmem %s0, 40
  %v26 = vld [vmem:[%s25] ss:$2 sm:$0x7]
  %vm27 = vcmask 523264
  %s28 = scalar_lea.vmem %s1, 5
  %29 = vst.msk [vmem:[%s28] ss:$8 sm:$0x7] %vm27, %v26
  %s30 = scalar_lea.vmem %s0, 48
  %v31 = vld [vmem:[%s30] ss:$2 sm:$0x7]
  %vm32 = vcmask 523264
  %s33 = scalar_lea.vmem %s1, 6
  %34 = vst.msk [vmem:[%s33] ss:$8 sm:$0x7] %vm32, %v31
  %s35 = scalar_lea.vmem %s0, 56
  %v36 = vld [vmem:[%s35] ss:$2 sm:$0x7]
  %vm37 = vcmask 523264
  %s38 = scalar_lea.vmem %s1, 7
  %39 = vst.msk [vmem:[%s38] ss:$8 sm:$0x7] %vm37, %v36
  %s40 = scalar_lea.vmem %s0, 64
  %v41 = vld [vmem:[%s40] ss:$2 sm:$0x7]
  %vm42 = vcmask 523264
  %s43 = scalar_lea.vmem %s1, 24
  %44 = vst.msk [vmem:[%s43] ss:$8 sm:$0x7] %vm42, %v41
  %s45 = scalar_lea.vmem %s0, 72
  %v46 = vld [vmem:[%s45] ss:$2 sm:$0x7]
  %vm47 = vcmask 523264
  %s48 = scalar_lea.vmem %s1, 25
  %49 = vst.msk [vmem:[%s48] ss:$8 sm:$0x7] %vm47, %v46
  %s50 = scalar_lea.vmem %s0, 80
  %v51 = vld [vmem:[%s50] ss:$2 sm:$0x7]
  %vm52 = vcmask 523264
  %s53 = scalar_lea.vmem %s1, 26
  %54 = vst.msk [vmem:[%s53] ss:$8 sm:$0x7] %vm52, %v51
  %s55 = scalar_lea.vmem %s0, 88
  %v56 = vld [vmem:[%s55] ss:$2 sm:$0x7]
  %vm57 = vcmask 523264
  %s58 = scalar_lea.vmem %s1, 27
  %59 = vst.msk [vmem:[%s58] ss:$8 sm:$0x7] %vm57, %v56
  %s60 = scalar_lea.vmem %s0, 96
  %v61 = vld [vmem:[%s60] ss:$2 sm:$0x7]
  %vm62 = vcmask 523264
  %s63 = scalar_lea.vmem %s1, 28
  %64 = vst.msk [vmem:[%s63] ss:$8 sm:$0x7] %vm62, %v61
  %s65 = scalar_lea.vmem %s0, 104
  %v66 = vld [vmem:[%s65] ss:$2 sm:$0x7]
  %vm67 = vcmask 523264
  %s68 = scalar_lea.vmem %s1, 29
  %69 = vst.msk [vmem:[%s68] ss:$8 sm:$0x7] %vm67, %v66
  %s70 = scalar_lea.vmem %s0, 112
  %v71 = vld [vmem:[%s70] ss:$2 sm:$0x7]
  %vm72 = vcmask 523264
  %s73 = scalar_lea.vmem %s1, 30
  %74 = vst.msk [vmem:[%s73] ss:$8 sm:$0x7] %vm72, %v71
  %s75 = scalar_lea.vmem %s0, 120
  %v76 = vld [vmem:[%s75] ss:$2 sm:$0x7]
  %vm77 = vcmask 523264
  %s78 = scalar_lea.vmem %s1, 31
  %79 = vst.msk [vmem:[%s78] ss:$8 sm:$0x7] %vm77, %v76
  %s80 = scalar_lea.vmem %s0, 1
  %v81 = vld [vmem:[%s80] ss:$8 sm:$0xf]
  %s82 = scalar_lea.vmem %s0, 1
  %v83 = vld [vmem:[%s82] ss:$8 sm:$0xf0]
  %vm84 = vcmask 1047556
  %v85 = vsel %vm84, %v83, %v81
  %86 = vrot.lane.b32.xlu0 %v85, 64
  %v87 = vpop.permute.xlu0 %86
  %vm88 = vcmask 1048064
  %89 = vst.msk [vmem:[%s1] sm:$0xff] %vm88, %v87
  %s90 = scalar_lea.vmem %s0, 67
  %v91 = vld [vmem:[%s90] ss:$8 sm:$0xf]
  %s92 = scalar_lea.vmem %s0, 67
  %v93 = vld [vmem:[%s92] ss:$8 sm:$0xf0]
  %vm94 = vcmask 1047556
  %v95 = vsel %vm94, %v93, %v91
  %96 = vrot.lane.b32.xlu0 %v95, 64
  %v97 = vpop.permute.xlu0 %96
  %vm98 = vcmask 1048064
  %s99 = scalar_lea.vmem %s1, 32
  %100 = vst.msk [vmem:[%s99] sm:$0xff] %vm98, %v97
  %s101 = scalar_lea.vmem %s0, 3
  %v102 = vld [vmem:[%s101] ss:$8 sm:$0xf]
  %s103 = scalar_lea.vmem %s0, 3
  %v104 = vld [vmem:[%s103] ss:$8 sm:$0xf0]
  %vm105 = vcmask 1047556
  %v106 = vsel %vm105, %v104, %v102
  %107 = vrot.lane.b32.xlu0 %v106, 64
  %v108 = vpop.permute.xlu0 %107
  %vm109 = vcmask 1048064
  %s110 = scalar_lea.vmem %s1, 8
  %111 = vst.msk [vmem:[%s110] sm:$0xff] %vm109, %v108
  %s112 = scalar_lea.vmem %s0, 69
  %v113 = vld [vmem:[%s112] ss:$8 sm:$0xf]
  %s114 = scalar_lea.vmem %s0, 69
  %v115 = vld [vmem:[%s114] ss:$8 sm:$0xf0]
  %vm116 = vcmask 1047556
  %v117 = vsel %vm116, %v115, %v113
  %118 = vrot.lane.b32.xlu0 %v117, 64
  %v119 = vpop.permute.xlu0 %118
  %vm120 = vcmask 1048064
  %s121 = scalar_lea.vmem %s1, 40
  %122 = vst.msk [vmem:[%s121] sm:$0xff] %vm120, %v119
  %s123 = scalar_lea.vmem %s0, 5
  %v124 = vld [vmem:[%s123] ss:$8 sm:$0xf]
  %s125 = scalar_lea.vmem %s0, 5
  %v126 = vld [vmem:[%s125] ss:$8 sm:$0xf0]
  %vm127 = vcmask 1047556
  %v128 = vsel %vm127, %v126, %v124
  %129 = vrot.lane.b32.xlu0 %v128, 64
  %v130 = vpop.permute.xlu0 %129
  %vm131 = vcmask 1048064
  %s132 = scalar_lea.vmem %s1, 16
  %133 = vst.msk [vmem:[%s132] sm:$0xff] %vm131, %v130
  %s134 = scalar_lea.vmem %s0, 65
  %v135 = vld [vmem:[%s134] ss:$8 sm:$0xf]
  %s136 = scalar_lea.vmem %s0, 65
  %v137 = vld [vmem:[%s136] ss:$8 sm:$0xf0]
  %vm138 = vcmask 1047556
  %v139 = vsel %vm138, %v137, %v135
  %140 = vrot.lane.b32.xlu0 %v139, 64
  %v141 = vpop.permute.xlu0 %140
  %vm142 = vcmask 1048064
  %s143 = scalar_lea.vmem %s1, 24
  %144 = vst.msk [vmem:[%s143] sm:$0xff] %vm142, %v141

// kernel: model_forward.1
$region0: #{model_forward.1}
  #allocation0 [shape = 'u32[]', space=smem, size = 0x4, offset = 0x4, fixed_abs, tag = 'smem constant byte address 0x4 - core index']
  #allocation1 [shape = 'u32[72,128]{1,0:T(1,128)}', space=vmem, size = 0x9000, scoped, tag = 'internal scratch']
  %s0 = inlined_call_operand.vmem [shape: f32[16,64], index: 0, kind: input, shape index: {}]
  %s1 = inlined_call_operand.vmem [shape: f32[16,16], index: 1, kind: input, shape index: {}]
  %s2 = inlined_call_operand.vmem [shape: f32[64,192], index: 2, kind: input, shape index: {}]
  %s3 = inlined_call_operand.vmem [shape: f32[64,64], index: 3, kind: input, shape index: {}]
  %s4 = inlined_call_operand.vmem [shape: f32[1,64], index: 4, kind: input, shape index: {}]
  %s5 = inlined_call_operand.vmem [shape: f32[64,256], index: 5, kind: input, shape index: {}]
  %s6 = inlined_call_operand.vmem [shape: f32[1,256], index: 6, kind: input, shape index: {}]
  %s7 = inlined_call_operand.vmem [shape: f32[64,256], index: 7, kind: input, shape index: {}]
  %s8 = inlined_call_operand.vmem [shape: f32[64,384], index: 8, kind: input, shape index: {}]
  %s9 = inlined_call_operand.vmem [shape: f32[1,384], index: 9, kind: input, shape index: {}]
  %s10 = inlined_call_operand.vmem [shape: f32[16,384], index: 10, kind: input, shape index: {}]
  %s11 = inlined_call_operand.vmem [shape: f32[16,384], index: 11, kind: input, shape index: {}]
  %s12 = inlined_call_operand.vmem [shape: f32[384,384], index: 12, kind: input, shape index: {}]
  %s13 = inlined_call_operand.vmem [shape: f32[16,24], index: 13, kind: output, shape index: {}]
  %s14 = sld [smem:[#allocation0]]
  $region62: #{model_forward.1} parent=0
    _
  %s16 = ssub.s32 1, %s14
  %s17 = scalar_select 0, %s16, %s14
  // Predicated region
  $region2: #{model_forward.1} parent=0 // pred_check
    _
  $region3: #{model_forward.1} parent=0 // pred_check_branch
    %19 = sbr.rel (0) target = $region5
  $region4: #{model_forward.1} parent=0 // pred_region
    _
  $region5: #{model_forward.1} parent=0 // pred_fallthru
    _
  // Predicated region
  $region6: #{model_forward.1} parent=0 // pred_check
    _
  $region7: #{model_forward.1} parent=0 // pred_check_branch
    %21 = sbr.rel (0) target = $region9
  $region8: #{model_forward.1} parent=0 // pred_region
    _
  $region9: #{model_forward.1} parent=0 // pred_fallthru
    _
  // Predicated region
  $region10: #{model_forward.1} parent=0 // pred_check
    _
  $region11: #{model_forward.1} parent=0 // pred_check_branch
    %23 = sbr.rel (0) target = $region13
  $region12: #{model_forward.1} parent=0 // pred_region
    _
  $region13: #{model_forward.1} parent=0 // pred_fallthru
    _
  // Predicated region
  $region14: #{model_forward.1} parent=0 // pred_check
    _
  $region15: #{model_forward.1} parent=0 // pred_check_branch
    %25 = sbr.rel (0) target = $region17
  $region16: #{model_forward.1} parent=0 // pred_region
    _
  $region17: #{model_forward.1} parent=0 // pred_fallthru
    _
  // Predicated region
  $region18: #{model_forward.1} parent=0 // pred_check
    _
  $region19: #{model_forward.1} parent=0 // pred_check_branch
    %27 = sbr.rel (0) target = $region21
  $region20: #{model_forward.1} parent=0 // pred_region
    _
  $region21: #{model_forward.1} parent=0 // pred_fallthru
    _
  // Predicated region
  $region22: #{model_forward.1} parent=0 // pred_check
    _
  $region23: #{model_forward.1} parent=0 // pred_check_branch
    %29 = sbr.rel (0) target = $region25
  $region24: #{model_forward.1} parent=0 // pred_region
    _
  $region25: #{model_forward.1} parent=0 // pred_fallthru
    _
  // Predicated region
  $region26: #{model_forward.1} parent=0 // pred_check
    _
  $region27: #{model_forward.1} parent=0 // pred_check_branch
    %31 = sbr.rel (0) target = $region29
  $region28: #{model_forward.1} parent=0 // pred_region
    _
  $region29: #{model_forward.1} parent=0 // pred_fallthru
    _
  // Predicated region
  $region30: #{model_forward.1} parent=0 // pred_check
    _
  $region31: #{model_forward.1} parent=0 // pred_check_branch
    %33 = sbr.rel (0) target = $region33
  $region32: #{model_forward.1} parent=0 // pred_region
    _
  $region33: #{model_forward.1} parent=0 // pred_fallthru
    _
  // Predicated region
  $region34: #{model_forward.1} parent=0 // pred_check
    _
  $region35: #{model_forward.1} parent=0 // pred_check_branch
    %35 = sbr.rel (0) target = $region37
  $region36: #{model_forward.1} parent=0 // pred_region
    _
  $region37: #{model_forward.1} parent=0 // pred_fallthru
    _
  // Predicated region
  $region38: #{model_forward.1} parent=0 // pred_check
    _
  $region39: #{model_forward.1} parent=0 // pred_check_branch
    %37 = sbr.rel (0) target = $region41
  $region40: #{model_forward.1} parent=0 // pred_region
    _
  $region41: #{model_forward.1} parent=0 // pred_fallthru
    _
  // Predicated region
  $region42: #{model_forward.1} parent=0 // pred_check
    _
  $region43: #{model_forward.1} parent=0 // pred_check_branch
    %39 = sbr.rel (0) target = $region45
  $region44: #{model_forward.1} parent=0 // pred_region
    _
  $region45: #{model_forward.1} parent=0 // pred_fallthru
    _
  // Predicated region
  $region46: #{model_forward.1} parent=0 // pred_check
    _
  $region47: #{model_forward.1} parent=0 // pred_check_branch
    %41 = sbr.rel (0) target = $region49
  $region48: #{model_forward.1} parent=0 // pred_region
    _
  $region49: #{model_forward.1} parent=0 // pred_fallthru
    _
  // Predicated region
  $region50: #{model_forward.1} parent=0 // pred_check
    _
  $region51: #{model_forward.1} parent=0 // pred_check_branch
    %43 = sbr.rel (0) target = $region53
  $region52: #{model_forward.1} parent=0 // pred_region
    _
  $region53: #{model_forward.1} parent=0 // pred_fallthru
    _
  %v44 = vld [vmem:[%s0] sm:$0xff]
  %v45 = vld [vmem:[%s0 + $0x8] sm:$0xff]
  %v46 = vld [vmem:[%s1] sm:$0xff]
  %v47 = vld [vmem:[%s1 + $0x8] sm:$0xff]
  %v48 = vld [vmem:[%s2] sm:$0xff]
  %v49 = vld [vmem:[%s2 + $0x8] sm:$0xff]
  %v50 = vld [vmem:[%s2 + $0x10] sm:$0xff]
  %v51 = vld [vmem:[%s2 + $0x18] sm:$0xff]
  %v52 = vld [vmem:[%s2 + $0x20] sm:$0xff]
  %v53 = vld [vmem:[%s2 + $0x28] sm:$0xff]
  %v54 = vld [vmem:[%s2 + $0x30] sm:$0xff]
  %v55 = vld [vmem:[%s2 + $0x38] sm:$0xff]
  %v56 = vld [vmem:[%s2 + $0x40] sm:$0xff]
  %v57 = vld [vmem:[%s2 + $0x48] sm:$0xff]
  %v58 = vld [vmem:[%s2 + $0x50] sm:$0xff]
  %v59 = vld [vmem:[%s2 + $0x58] sm:$0xff]
  %v60 = vld [vmem:[%s2 + $0x60] sm:$0xff]
  %v61 = vld [vmem:[%s2 + $0x68] sm:$0xff]
  %v62 = vld [vmem:[%s2 + $0x70] sm:$0xff]
  %v63 = vld [vmem:[%s2 + $0x78] sm:$0xff]
  %vm64 = vcmask 523264
  %v66 = vsel %vm64, %v44, 0
  %v69 = vsel %vm64, %v45, 0
  %71 = vmatpush.msra.mxu0 0.0
  %72 = vmatpush.msra.mxu0 0.0
  %73 = vmatpush.msra.mxu0 0.0
  %74 = vmatpush.msra.mxu0 0.0
  %75 = vmatpush.msra.mxu0 0.0
  %76 = vmatpush.msra.mxu0 0.0
  %77 = vmatpush.msra.mxu0 0.0
  %78 = vmatpush.msra.mxu0 0.0
  %79 = vmatpush.msra.mxu0 %v62
  %80 = vmatpush.msra.mxu0 %v60
  %81 = vmatpush.msra.mxu0 %v58
  %82 = vmatpush.msra.mxu0 %v56
  %83 = vmatpush.msra.mxu0 %v54
  %84 = vmatpush.msra.mxu0 %v52
  %85 = vmatpush.msra.mxu0 %v50
  %86 = vmatpush.msra.mxu0 %v48
  %87 = vmatmul.f32.gmra.mxu0 %v66
  %v88 = vpop.f32.mrf.mxu0
  %v89 = vadd.f32 0.0, %v88
  %90 = vmatmul.f32.gmra.mxu0 %v69
  %v91 = vpop.f32.mrf.mxu0
  %v92 = vadd.f32 0.0, %v91
  %93 = vdwg.mxu0
  %94 = vmatpush.msra.mxu0 0.0
  %95 = vmatpush.msra.mxu0 0.0
  %96 = vmatpush.msra.mxu0 0.0
  %97 = vmatpush.msra.mxu0 0.0
  %98 = vmatpush.msra.mxu0 0.0
  %99 = vmatpush.msra.mxu0 0.0
  %100 = vmatpush.msra.mxu0 0.0
  %101 = vmatpush.msra.mxu0 0.0
  %102 = vmatpush.msra.mxu0 %v63
  %103 = vmatpush.msra.mxu0 %v61
  %104 = vmatpush.msra.mxu0 %v59
  %105 = vmatpush.msra.mxu0 %v57
  %106 = vmatpush.msra.mxu0 %v55
  %107 = vmatpush.msra.mxu0 %v53
  %108 = vmatpush.msra.mxu0 %v51
  %109 = vmatpush.msra.mxu0 %v49
  %110 = vmatmul.f32.gmra.mxu0 %v66
  %v111 = vpop.f32.mrf.mxu0
  %v112 = vadd.f32 0.0, %v111
  %113 = vmatmul.f32.gmra.mxu0 %v69
  %v114 = vpop.f32.mrf.mxu0
  %v115 = vadd.f32 0.0, %v114
  %116 = vdwg.mxu0
  %119 = vrot.lane.b32.xlu0 %v89, 64
  %v120 = vpop.permute.xlu0 %119
  %121 = vrot.lane.b32.xlu0 %v92, 64
  %v122 = vpop.permute.xlu0 %121
  %vm123 = vcmask 64512
  %v124 = vsel %vm123, %v89, 0
  %v126 = vsel %vm123, %v92, 0
  %v128 = vsel %vm123, %v120, 0
  %v130 = vsel %vm123, %v122, 0
  %132 = vmatpush.xpose.msra.mxu0 0.0
  %133 = vmatpush.xpose.msra.mxu0 0.0
  %134 = vmatpush.xpose.msra.mxu0 0.0
  %135 = vmatpush.xpose.msra.mxu0 0.0
  %136 = vmatpush.xpose.msra.mxu0 0.0
  %137 = vmatpush.xpose.msra.mxu0 0.0
  %138 = vmatpush.xpose.msra.mxu0 0.0
  %139 = vmatpush.xpose.msra.mxu0 0.0
  %140 = vmatpush.xpose.msra.mxu0 0.0
  %141 = vmatpush.xpose.msra.mxu0 0.0
  %142 = vmatpush.xpose.msra.mxu0 0.0
  %143 = vmatpush.xpose.msra.mxu0 0.0
  %144 = vmatpush.xpose.msra.mxu0 0.0
  %145 = vmatpush.xpose.msra.mxu0 0.0
  %146 = vmatpush.xpose.msra.mxu0 %v130
  %147 = vmatpush.xpose.msra.mxu0 %v128
  %148 = vmatmul.f32.gmra.mxu0 %v124
  %v149 = vpop.f32.mrf.mxu0
  %v150 = vadd.f32 0.0, %v149
  %151 = vmatmul.f32.gmra.mxu0 %v126
  %v152 = vpop.f32.mrf.mxu0
  %v153 = vadd.f32 0.0, %v152
  %154 = vdwg.mxu0
  %v155 = vmul.f32 %v150, 0.125
  %v156 = vmul.f32 %v153, 0.125
  %v157 = vadd.f32 %v155, %v46
  %v158 = vadd.f32 %v156, %v47
  %vm159 = vcmask 130048
  %v160 = vsel %vm159, %v157, -inf
  %161 = vmax.xlane.f32.xlu0 %v160
  %v162 = vpop.xlane.xlu0 %161
  %v163 = vsel %vm159, %v158, -inf
  %164 = vmax.xlane.f32.xlu0 %v163
  %v165 = vpop.xlane.xlu0 %164
  %v166 = vsub.f32 %v157, %v162
  %v167 = vsub.f32 %v158, %v165
  %v168 = vmul.f32 %v166, 1.442695
  %v169 = vpow.pop %v168
  %v170 = vmul.f32 %v167, 1.442695
  %v171 = vpow.pop %v170
  %v172 = vsel %vm159, %v169, 0.0
  %173 = vadd.xlane.f32.xlu0 %v172
  %v174 = vpop.xlane.xlu0 %173
  %v175 = vsel %vm159, %v171, 0.0
  %176 = vadd.xlane.f32.xlu0 %v175
  %v177 = vpop.xlane.xlu0 %176
  %v178 = vrcp.pop %v174
  %v179 = vmul.f32 %v174, %v178
  %v180 = vsub.f32 1.0, %v179
  %v181 = vmul.f32 %v178, %v180
  %v182 = vadd.f32 %v178, %v181
  %vm183 = vweird.f32 %v174
  %vm184 = vweird.f32 %v178
  %vm185 = vmor %vm183, %vm184
  %v186 = vsel %vm185, %v178, %v182
  %v187 = vand.u32 2147483647, %v174
  %vm188 = vcmp.eq.f32.partialorder %v187, 8.507059e+37
  %v189 = vand.u32 %v174, 2147483648
  %v190 = vor.u32 1.1754944e-38, %v189
  %v191 = vsel %vm188, %v190, %v186
  %v192 = vmul.f32 %v169, %v191
  %v193 = vrcp.pop %v177
  %v194 = vmul.f32 %v177, %v193
  %v195 = vsub.f32 1.0, %v194
  %v196 = vmul.f32 %v193, %v195
  %v197 = vadd.f32 %v193, %v196
  %vm198 = vweird.f32 %v177
  %vm199 = vweird.f32 %v193
  %vm200 = vmor %vm198, %vm199
  %v201 = vsel %vm200, %v193, %v197
  %v202 = vand.u32 2147483647, %v177
  %vm203 = vcmp.eq.f32.partialorder %v202, 8.507059e+37
  %v204 = vand.u32 %v177, 2147483648
  %v205 = vor.u32 1.1754944e-38, %v204
  %v206 = vsel %vm203, %v205, %v201
  %v207 = vmul.f32 %v171, %v206
  %v209 = vsel %vm159, %v192, 0
  %v212 = vsel %vm159, %v207, 0
  %214 = vmatpush.msra.mxu0 0.0
  %215 = vmatpush.msra.mxu0 0.0
  %216 = vmatpush.msra.mxu0 0.0
  %217 = vmatpush.msra.mxu0 0.0
  %218 = vmatpush.msra.mxu0 0.0
  %219 = vmatpush.msra.mxu0 0.0
  %220 = vmatpush.msra.mxu0 0.0
  %221 = vmatpush.msra.mxu0 0.0
  %222 = vmatpush.msra.mxu0 0.0
  %223 = vmatpush.msra.mxu0 0.0
  %224 = vmatpush.msra.mxu0 0.0
  %225 = vmatpush.msra.mxu0 0.0
  %226 = vmatpush.msra.mxu0 0.0
  %227 = vmatpush.msra.mxu0 0.0
  %228 = vmatpush.msra.mxu0 %v115
  %229 = vmatpush.msra.mxu0 %v112
  %230 = vmatmul.f32.gmra.mxu0 %v209
  %v231 = vpop.f32.mrf.mxu0
  %v232 = vadd.f32 0.0, %v231
  %233 = vmatmul.f32.gmra.mxu0 %v212
  %v234 = vpop.f32.mrf.mxu0
  %v235 = vadd.f32 0.0, %v234
  %236 = vdwg.mxu0
  %237 = vrot.lane.b32.xlu0 %v89, 120
  %v238 = vpop.permute.xlu0 %237
  %239 = vrot.lane.b32.xlu0 %v92, 120
  %v240 = vpop.permute.xlu0 %239
  %241 = vrot.lane.b32.xlu0 %v89, 56
  %v242 = vpop.permute.xlu0 %241
  %243 = vrot.lane.b32.xlu0 %v92, 56
  %v244 = vpop.permute.xlu0 %243
  %v245 = vsel %vm123, %v238, 0
  %v247 = vsel %vm123, %v240, 0
  %v249 = vsel %vm123, %v242, 0
  %v251 = vsel %vm123, %v244, 0
  %253 = vmatpush.xpose.msra.mxu0 0.0
  %254 = vmatpush.xpose.msra.mxu0 0.0
  %255 = vmatpush.xpose.msra.mxu0 0.0
  %256 = vmatpush.xpose.msra.mxu0 0.0
  %257 = vmatpush.xpose.msra.mxu0 0.0
  %258 = vmatpush.xpose.msra.mxu0 0.0
  %259 = vmatpush.xpose.msra.mxu0 0.0
  %260 = vmatpush.xpose.msra.mxu0 0.0
  %261 = vmatpush.xpose.msra.mxu0 0.0
  %262 = vmatpush.xpose.msra.mxu0 0.0
  %263 = vmatpush.xpose.msra.mxu0 0.0
  %264 = vmatpush.xpose.msra.mxu0 0.0
  %265 = vmatpush.xpose.msra.mxu0 0.0
  %266 = vmatpush.xpose.msra.mxu0 0.0
  %267 = vmatpush.xpose.msra.mxu0 %v251
  %268 = vmatpush.xpose.msra.mxu0 %v249
  %269 = vmatmul.f32.gmra.mxu0 %v245
  %v270 = vpop.f32.mrf.mxu0
  %v271 = vadd.f32 0.0, %v270
  %272 = vmatmul.f32.gmra.mxu0 %v247
  %v273 = vpop.f32.mrf.mxu0
  %v274 = vadd.f32 0.0, %v273
  %275 = vdwg.mxu0
  %v276 = vmul.f32 %v271, 0.125
  %v277 = vmul.f32 %v274, 0.125
  %v278 = vadd.f32 %v276, %v46
  %v279 = vadd.f32 %v277, %v47
  %v280 = vsel %vm159, %v278, -inf
  %281 = vmax.xlane.f32.xlu0 %v280
  %v282 = vpop.xlane.xlu0 %281
  %v283 = vsel %vm159, %v279, -inf
  %284 = vmax.xlane.f32.xlu0 %v283
  %v285 = vpop.xlane.xlu0 %284
  %v286 = vsub.f32 %v278, %v282
  %v287 = vsub.f32 %v279, %v285
  %v288 = vmul.f32 %v286, 1.442695
  %v289 = vpow.pop %v288
  %v290 = vmul.f32 %v287, 1.442695
  %v291 = vpow.pop %v290
  %v292 = vsel %vm159, %v289, 0.0
  %293 = vadd.xlane.f32.xlu0 %v292
  %v294 = vpop.xlane.xlu0 %293
  %v295 = vsel %vm159, %v291, 0.0
  %296 = vadd.xlane.f32.xlu0 %v295
  %v297 = vpop.xlane.xlu0 %296
  %v298 = vrcp.pop %v294
  %v299 = vmul.f32 %v294, %v298
  %v300 = vsub.f32 1.0, %v299
  %v301 = vmul.f32 %v298, %v300
  %v302 = vadd.f32 %v298, %v301
  %vm303 = vweird.f32 %v294
  %vm304 = vweird.f32 %v298
  %vm305 = vmor %vm303, %vm304
  %v306 = vsel %vm305, %v298, %v302
  %v307 = vand.u32 2147483647, %v294
  %vm308 = vcmp.eq.f32.partialorder %v307, 8.507059e+37
  %v309 = vand.u32 %v294, 2147483648
  %v310 = vor.u32 1.1754944e-38, %v309
  %v311 = vsel %vm308, %v310, %v306
  %v312 = vmul.f32 %v289, %v311
  %v313 = vrcp.pop %v297
  %v314 = vmul.f32 %v297, %v313
  %v315 = vsub.f32 1.0, %v314
  %v316 = vmul.f32 %v313, %v315
  %v317 = vadd.f32 %v313, %v316
  %vm318 = vweird.f32 %v297
  %vm319 = vweird.f32 %v313
  %vm320 = vmor %vm318, %vm319
  %v321 = vsel %vm320, %v313, %v317
  %v322 = vand.u32 2147483647, %v297
  %vm323 = vcmp.eq.f32.partialorder %v322, 8.507059e+37
  %v324 = vand.u32 %v297, 2147483648
  %v325 = vor.u32 1.1754944e-38, %v324
  %v326 = vsel %vm323, %v325, %v321
  %v327 = vmul.f32 %v291, %v326
  %330 = vrot.lane.b32.xlu0 %v112, 120
  %v331 = vpop.permute.xlu0 %330
  %332 = vrot.lane.b32.xlu0 %v115, 120
  %v333 = vpop.permute.xlu0 %332
  %v337 = vsel %vm159, %v312, 0
  %v340 = vsel %vm159, %v327, 0
  %342 = vmatpush.msra.mxu0 0.0
  %343 = vmatpush.msra.mxu0 0.0
  %344 = vmatpush.msra.mxu0 0.0
  %345 = vmatpush.msra.mxu0 0.0
  %346 = vmatpush.msra.mxu0 0.0
  %347 = vmatpush.msra.mxu0 0.0
  %348 = vmatpush.msra.mxu0 0.0
  %349 = vmatpush.msra.mxu0 0.0
  %350 = vmatpush.msra.mxu0 0.0
  %351 = vmatpush.msra.mxu0 0.0
  %352 = vmatpush.msra.mxu0 0.0
  %353 = vmatpush.msra.mxu0 0.0
  %354 = vmatpush.msra.mxu0 0.0
  %355 = vmatpush.msra.mxu0 0.0
  %356 = vmatpush.msra.mxu0 %v333
  %357 = vmatpush.msra.mxu0 %v331
  %358 = vmatmul.f32.gmra.mxu0 %v337
  %v359 = vpop.f32.mrf.mxu0
  %v360 = vadd.f32 0.0, %v359
  %361 = vmatmul.f32.gmra.mxu0 %v340
  %v362 = vpop.f32.mrf.mxu0
  %v363 = vadd.f32 0.0, %v362
  %364 = vdwg.mxu0
  %365 = vrot.lane.b32.xlu0 %v89, 112
  %v366 = vpop.permute.xlu0 %365
  %367 = vrot.lane.b32.xlu0 %v92, 112
  %v368 = vpop.permute.xlu0 %367
  %369 = vrot.lane.b32.xlu0 %v89, 48
  %v370 = vpop.permute.xlu0 %369
  %371 = vrot.lane.b32.xlu0 %v92, 48
  %v372 = vpop.permute.xlu0 %371
  %v373 = vsel %vm123, %v366, 0
  %v375 = vsel %vm123, %v368, 0
  %v377 = vsel %vm123, %v370, 0
  %v379 = vsel %vm123, %v372, 0
  %381 = vmatpush.xpose.msra.mxu0 0.0
  %382 = vmatpush.xpose.msra.mxu0 0.0
  %383 = vmatpush.xpose.msra.mxu0 0.0
  %384 = vmatpush.xpose.msra.mxu0 0.0
  %385 = vmatpush.xpose.msra.mxu0 0.0
  %386 = vmatpush.xpose.msra.mxu0 0.0
  %387 = vmatpush.xpose.msra.mxu0 0.0
  %388 = vmatpush.xpose.msra.mxu0 0.0
  %389 = vmatpush.xpose.msra.mxu0 0.0
  %390 = vmatpush.xpose.msra.mxu0 0.0
  %391 = vmatpush.xpose.msra.mxu0 0.0
  %392 = vmatpush.xpose.msra.mxu0 0.0
  %393 = vmatpush.xpose.msra.mxu0 0.0
  %394 = vmatpush.xpose.msra.mxu0 0.0
  %395 = vmatpush.xpose.msra.mxu0 %v379
  %396 = vmatpush.xpose.msra.mxu0 %v377
  %397 = vmatmul.f32.gmra.mxu0 %v373
  %v398 = vpop.f32.mrf.mxu0
  %v399 = vadd.f32 0.0, %v398
  %400 = vmatmul.f32.gmra.mxu0 %v375
  %v401 = vpop.f32.mrf.mxu0
  %v402 = vadd.f32 0.0, %v401
  %403 = vdwg.mxu0
  %v404 = vmul.f32 %v399, 0.125
  %v405 = vmul.f32 %v402, 0.125
  %v406 = vadd.f32 %v404, %v46
  %v407 = vadd.f32 %v405, %v47
  %v408 = vsel %vm159, %v406, -inf
  %409 = vmax.xlane.f32.xlu0 %v408
  %v410 = vpop.xlane.xlu0 %409
  %v411 = vsel %vm159, %v407, -inf
  %412 = vmax.xlane.f32.xlu0 %v411
  %v413 = vpop.xlane.xlu0 %412
  %v414 = vsub.f32 %v406, %v410
  %v415 = vsub.f32 %v407, %v413
  %v416 = vmul.f32 %v414, 1.442695
  %v417 = vpow.pop %v416
  %v418 = vmul.f32 %v415, 1.442695
  %v419 = vpow.pop %v418
  %v420 = vsel %vm159, %v417, 0.0
  %421 = vadd.xlane.f32.xlu0 %v420
  %v422 = vpop.xlane.xlu0 %421
  %v423 = vsel %vm159, %v419, 0.0
  %424 = vadd.xlane.f32.xlu0 %v423
  %v425 = vpop.xlane.xlu0 %424
  %v426 = vrcp.pop %v422
  %v427 = vmul.f32 %v422, %v426
  %v428 = vsub.f32 1.0, %v427
  %v429 = vmul.f32 %v426, %v428
  %v430 = vadd.f32 %v426, %v429
  %vm431 = vweird.f32 %v422
  %vm432 = vweird.f32 %v426
  %vm433 = vmor %vm431, %vm432
  %v434 = vsel %vm433, %v426, %v430
  %v435 = vand.u32 2147483647, %v422
  %vm436 = vcmp.eq.f32.partialorder %v435, 8.507059e+37
  %v437 = vand.u32 %v422, 2147483648
  %v438 = vor.u32 1.1754944e-38, %v437
  %v439 = vsel %vm436, %v438, %v434
  %v440 = vmul.f32 %v417, %v439
  %v441 = vrcp.pop %v425
  %v442 = vmul.f32 %v425, %v441
  %v443 = vsub.f32 1.0, %v442
  %v444 = vmul.f32 %v441, %v443
  %v445 = vadd.f32 %v441, %v444
  %vm446 = vweird.f32 %v425
  %vm447 = vweird.f32 %v441
  %vm448 = vmor %vm446, %vm447
  %v449 = vsel %vm448, %v441, %v445
  %v450 = vand.u32 2147483647, %v425
  %vm451 = vcmp.eq.f32.partialorder %v450, 8.507059e+37
  %v452 = vand.u32 %v425, 2147483648
  %v453 = vor.u32 1.1754944e-38, %v452
  %v454 = vsel %vm451, %v453, %v449
  %v455 = vmul.f32 %v419, %v454
  %456 = vrot.lane.b32.xlu0 %v112, 112
  %v457 = vpop.permute.xlu0 %456
  %458 = vrot.lane.b32.xlu0 %v115, 112
  %v459 = vpop.permute.xlu0 %458
  %v463 = vsel %vm159, %v440, 0
  %v466 = vsel %vm159, %v455, 0
  %468 = vmatpush.msra.mxu0 0.0
  %469 = vmatpush.msra.mxu0 0.0
  %470 = vmatpush.msra.mxu0 0.0
  %471 = vmatpush.msra.mxu0 0.0
  %472 = vmatpush.msra.mxu0 0.0
  %473 = vmatpush.msra.mxu0 0.0
  %474 = vmatpush.msra.mxu0 0.0
  %475 = vmatpush.msra.mxu0 0.0
  %476 = vmatpush.msra.mxu0 0.0
  %477 = vmatpush.msra.mxu0 0.0
  %478 = vmatpush.msra.mxu0 0.0
  %479 = vmatpush.msra.mxu0 0.0
  %480 = vmatpush.msra.mxu0 0.0
  %481 = vmatpush.msra.mxu0 0.0
  %482 = vmatpush.msra.mxu0 %v459
  %483 = vmatpush.msra.mxu0 %v457
  %484 = vmatmul.f32.gmra.mxu0 %v463
  %v485 = vpop.f32.mrf.mxu0
  %v486 = vadd.f32 0.0, %v485
  %487 = vmatmul.f32.gmra.mxu0 %v466
  %v488 = vpop.f32.mrf.mxu0
  %v489 = vadd.f32 0.0, %v488
  %490 = vdwg.mxu0
  %491 = vrot.lane.b32.xlu0 %v89, 104
  %v492 = vpop.permute.xlu0 %491
  %493 = vrot.lane.b32.xlu0 %v92, 104
  %v494 = vpop.permute.xlu0 %493
  %495 = vrot.lane.b32.xlu0 %v89, 40
  %v496 = vpop.permute.xlu0 %495
  %497 = vrot.lane.b32.xlu0 %v92, 40
  %v498 = vpop.permute.xlu0 %497
  %v499 = vsel %vm123, %v492, 0
  %v501 = vsel %vm123, %v494, 0
  %v503 = vsel %vm123, %v496, 0
  %v505 = vsel %vm123, %v498, 0
  %507 = vmatpush.xpose.msra.mxu0 0.0
  %508 = vmatpush.xpose.msra.mxu0 0.0
  %509 = vmatpush.xpose.msra.mxu0 0.0
  %510 = vmatpush.xpose.msra.mxu0 0.0
  %511 = vmatpush.xpose.msra.mxu0 0.0
  %512 = vmatpush.xpose.msra.mxu0 0.0
  %513 = vmatpush.xpose.msra.mxu0 0.0
  %514 = vmatpush.xpose.msra.mxu0 0.0
  %515 = vmatpush.xpose.msra.mxu0 0.0
  %516 = vmatpush.xpose.msra.mxu0 0.0
  %517 = vmatpush.xpose.msra.mxu0 0.0
  %518 = vmatpush.xpose.msra.mxu0 0.0
  %519 = vmatpush.xpose.msra.mxu0 0.0
  %520 = vmatpush.xpose.msra.mxu0 0.0
  %521 = vmatpush.xpose.msra.mxu0 %v505
  %522 = vmatpush.xpose.msra.mxu0 %v503
  %523 = vmatmul.f32.gmra.mxu0 %v499
  %v524 = vpop.f32.mrf.mxu0
  %v525 = vadd.f32 0.0, %v524
  %526 = vmatmul.f32.gmra.mxu0 %v501
  %v527 = vpop.f32.mrf.mxu0
  %v528 = vadd.f32 0.0, %v527
  %529 = vdwg.mxu0
  %v530 = vmul.f32 %v525, 0.125
  %v531 = vmul.f32 %v528, 0.125
  %v532 = vadd.f32 %v530, %v46
  %v533 = vadd.f32 %v531, %v47
  %v534 = vsel %vm159, %v532, -inf
  %535 = vmax.xlane.f32.xlu0 %v534
  %v536 = vpop.xlane.xlu0 %535
  %v537 = vsel %vm159, %v533, -inf
  %538 = vmax.xlane.f32.xlu0 %v537
  %v539 = vpop.xlane.xlu0 %538
  %v540 = vsub.f32 %v532, %v536
  %v541 = vsub.f32 %v533, %v539
  %v542 = vmul.f32 %v540, 1.442695
  %v543 = vpow.pop %v542
  %v544 = vmul.f32 %v541, 1.442695
  %v545 = vpow.pop %v544
  %v546 = vsel %vm159, %v543, 0.0
  %547 = vadd.xlane.f32.xlu0 %v546
  %v548 = vpop.xlane.xlu0 %547
  %v549 = vsel %vm159, %v545, 0.0
  %550 = vadd.xlane.f32.xlu0 %v549
  %v551 = vpop.xlane.xlu0 %550
  %v552 = vrcp.pop %v548
  %v553 = vmul.f32 %v548, %v552
  %v554 = vsub.f32 1.0, %v553
  %v555 = vmul.f32 %v552, %v554
  %v556 = vadd.f32 %v552, %v555
  %vm557 = vweird.f32 %v548
  %vm558 = vweird.f32 %v552
  %vm559 = vmor %vm557, %vm558
  %v560 = vsel %vm559, %v552, %v556
  %v561 = vand.u32 2147483647, %v548
  %vm562 = vcmp.eq.f32.partialorder %v561, 8.507059e+37
  %v563 = vand.u32 %v548, 2147483648
  %v564 = vor.u32 1.1754944e-38, %v563
  %v565 = vsel %vm562, %v564, %v560
  %v566 = vmul.f32 %v543, %v565
  %v567 = vrcp.pop %v551
  %v568 = vmul.f32 %v551, %v567
  %v569 = vsub.f32 1.0, %v568
  %v570 = vmul.f32 %v567, %v569
  %v571 = vadd.f32 %v567, %v570
  %vm572 = vweird.f32 %v551
  %vm573 = vweird.f32 %v567
  %vm574 = vmor %vm572, %vm573
  %v575 = vsel %vm574, %v567, %v571
  %v576 = vand.u32 2147483647, %v551
  %vm577 = vcmp.eq.f32.partialorder %v576, 8.507059e+37
  %v578 = vand.u32 %v551, 2147483648
  %v579 = vor.u32 1.1754944e-38, %v578
  %v580 = vsel %vm577, %v579, %v575
  %v581 = vmul.f32 %v545, %v580
  %582 = vrot.lane.b32.xlu0 %v112, 104
  %v583 = vpop.permute.xlu0 %582
  %584 = vrot.lane.b32.xlu0 %v115, 104
  %v585 = vpop.permute.xlu0 %584
  %v589 = vsel %vm159, %v566, 0
  %v592 = vsel %vm159, %v581, 0
  %594 = vmatpush.msra.mxu0 0.0
  %595 = vmatpush.msra.mxu0 0.0
  %596 = vmatpush.msra.mxu0 0.0
  %597 = vmatpush.msra.mxu0 0.0
  %598 = vmatpush.msra.mxu0 0.0
  %599 = vmatpush.msra.mxu0 0.0
  %600 = vmatpush.msra.mxu0 0.0
  %601 = vmatpush.msra.mxu0 0.0
  %602 = vmatpush.msra.mxu0 0.0
  %603 = vmatpush.msra.mxu0 0.0
  %604 = vmatpush.msra.mxu0 0.0
  %605 = vmatpush.msra.mxu0 0.0
  %606 = vmatpush.msra.mxu0 0.0
  %607 = vmatpush.msra.mxu0 0.0
  %608 = vmatpush.msra.mxu0 %v585
  %609 = vmatpush.msra.mxu0 %v583
  %610 = vmatmul.f32.gmra.mxu0 %v589
  %v611 = vpop.f32.mrf.mxu0
  %v612 = vadd.f32 0.0, %v611
  %613 = vmatmul.f32.gmra.mxu0 %v592
  %v614 = vpop.f32.mrf.mxu0
  %v615 = vadd.f32 0.0, %v614
  %616 = vdwg.mxu0
  %617 = vrot.lane.b32.xlu0 %v89, 96
  %v618 = vpop.permute.xlu0 %617
  %619 = vrot.lane.b32.xlu0 %v92, 96
  %v620 = vpop.permute.xlu0 %619
  %621 = vrot.lane.b32.xlu0 %v89, 32
  %v622 = vpop.permute.xlu0 %621
  %623 = vrot.lane.b32.xlu0 %v92, 32
  %v624 = vpop.permute.xlu0 %623
  %v625 = vsel %vm123, %v618, 0
  %v627 = vsel %vm123, %v620, 0
  %v629 = vsel %vm123, %v622, 0
  %v631 = vsel %vm123, %v624, 0
  %633 = vmatpush.xpose.msra.mxu0 0.0
  %634 = vmatpush.xpose.msra.mxu0 0.0
  %635 = vmatpush.xpose.msra.mxu0 0.0
  %636 = vmatpush.xpose.msra.mxu0 0.0
  %637 = vmatpush.xpose.msra.mxu0 0.0
  %638 = vmatpush.xpose.msra.mxu0 0.0
  %639 = vmatpush.xpose.msra.mxu0 0.0
  %640 = vmatpush.xpose.msra.mxu0 0.0
  %641 = vmatpush.xpose.msra.mxu0 0.0
  %642 = vmatpush.xpose.msra.mxu0 0.0
  %643 = vmatpush.xpose.msra.mxu0 0.0
  %644 = vmatpush.xpose.msra.mxu0 0.0
  %645 = vmatpush.xpose.msra.mxu0 0.0
  %646 = vmatpush.xpose.msra.mxu0 0.0
  %647 = vmatpush.xpose.msra.mxu0 %v631
  %648 = vmatpush.xpose.msra.mxu0 %v629
  %649 = vmatmul.f32.gmra.mxu0 %v625
  %v650 = vpop.f32.mrf.mxu0
  %v651 = vadd.f32 0.0, %v650
  %652 = vmatmul.f32.gmra.mxu0 %v627
  %v653 = vpop.f32.mrf.mxu0
  %v654 = vadd.f32 0.0, %v653
  %655 = vdwg.mxu0
  %v656 = vmul.f32 %v651, 0.125
  %v657 = vmul.f32 %v654, 0.125
  %v658 = vadd.f32 %v656, %v46
  %v659 = vadd.f32 %v657, %v47
  %v660 = vsel %vm159, %v658, -inf
  %661 = vmax.xlane.f32.xlu0 %v660
  %v662 = vpop.xlane.xlu0 %661
  %v663 = vsel %vm159, %v659, -inf
  %664 = vmax.xlane.f32.xlu0 %v663
  %v665 = vpop.xlane.xlu0 %664
  %v666 = vsub.f32 %v658, %v662
  %v667 = vsub.f32 %v659, %v665
  %v668 = vmul.f32 %v666, 1.442695
  %v669 = vpow.pop %v668
  %v670 = vmul.f32 %v667, 1.442695
  %v671 = vpow.pop %v670
  %v672 = vsel %vm159, %v669, 0.0
  %673 = vadd.xlane.f32.xlu0 %v672
  %v674 = vpop.xlane.xlu0 %673
  %v675 = vsel %vm159, %v671, 0.0
  %676 = vadd.xlane.f32.xlu0 %v675
  %v677 = vpop.xlane.xlu0 %676
  %v678 = vrcp.pop %v674
  %v679 = vmul.f32 %v674, %v678
  %v680 = vsub.f32 1.0, %v679
  %v681 = vmul.f32 %v678, %v680
  %v682 = vadd.f32 %v678, %v681
  %vm683 = vweird.f32 %v674
  %vm684 = vweird.f32 %v678
  %vm685 = vmor %vm683, %vm684
  %v686 = vsel %vm685, %v678, %v682
  %v687 = vand.u32 2147483647, %v674
  %vm688 = vcmp.eq.f32.partialorder %v687, 8.507059e+37
  %v689 = vand.u32 %v674, 2147483648
  %v690 = vor.u32 1.1754944e-38, %v689
  %v691 = vsel %vm688, %v690, %v686
  %v692 = vmul.f32 %v669, %v691
  %v693 = vrcp.pop %v677
  %v694 = vmul.f32 %v677, %v693
  %v695 = vsub.f32 1.0, %v694
  %v696 = vmul.f32 %v693, %v695
  %v697 = vadd.f32 %v693, %v696
  %vm698 = vweird.f32 %v677
  %vm699 = vweird.f32 %v693
  %vm700 = vmor %vm698, %vm699
  %v701 = vsel %vm700, %v693, %v697
  %v702 = vand.u32 2147483647, %v677
  %vm703 = vcmp.eq.f32.partialorder %v702, 8.507059e+37
  %v704 = vand.u32 %v677, 2147483648
  %v705 = vor.u32 1.1754944e-38, %v704
  %v706 = vsel %vm703, %v705, %v701
  %v707 = vmul.f32 %v671, %v706
  %708 = vrot.lane.b32.xlu0 %v112, 96
  %v709 = vpop.permute.xlu0 %708
  %710 = vrot.lane.b32.xlu0 %v115, 96
  %v711 = vpop.permute.xlu0 %710
  %v715 = vsel %vm159, %v692, 0
  %v718 = vsel %vm159, %v707, 0
  %720 = vmatpush.msra.mxu0 0.0
  %721 = vmatpush.msra.mxu0 0.0
  %722 = vmatpush.msra.mxu0 0.0
  %723 = vmatpush.msra.mxu0 0.0
  %724 = vmatpush.msra.mxu0 0.0
  %725 = vmatpush.msra.mxu0 0.0
  %726 = vmatpush.msra.mxu0 0.0
  %727 = vmatpush.msra.mxu0 0.0
  %728 = vmatpush.msra.mxu0 0.0
  %729 = vmatpush.msra.mxu0 0.0
  %730 = vmatpush.msra.mxu0 0.0
  %731 = vmatpush.msra.mxu0 0.0
  %732 = vmatpush.msra.mxu0 0.0
  %733 = vmatpush.msra.mxu0 0.0
  %734 = vmatpush.msra.mxu0 %v711
  %735 = vmatpush.msra.mxu0 %v709
  %736 = vmatmul.f32.gmra.mxu0 %v715
  %v737 = vpop.f32.mrf.mxu0
  %v738 = vadd.f32 0.0, %v737
  %739 = vmatmul.f32.gmra.mxu0 %v718
  %v740 = vpop.f32.mrf.mxu0
  %v741 = vadd.f32 0.0, %v740
  %742 = vdwg.mxu0
  %743 = vrot.lane.b32.xlu0 %v89, 88
  %v744 = vpop.permute.xlu0 %743
  %745 = vrot.lane.b32.xlu0 %v92, 88
  %v746 = vpop.permute.xlu0 %745
  %747 = vrot.lane.b32.xlu0 %v89, 24
  %v748 = vpop.permute.xlu0 %747
  %749 = vrot.lane.b32.xlu0 %v92, 24
  %v750 = vpop.permute.xlu0 %749
  %v751 = vsel %vm123, %v744, 0
  %v753 = vsel %vm123, %v746, 0
  %v755 = vsel %vm123, %v748, 0
  %v757 = vsel %vm123, %v750, 0
  %759 = vmatpush.xpose.msra.mxu0 0.0
  %760 = vmatpush.xpose.msra.mxu0 0.0
  %761 = vmatpush.xpose.msra.mxu0 0.0
  %762 = vmatpush.xpose.msra.mxu0 0.0
  %763 = vmatpush.xpose.msra.mxu0 0.0
  %764 = vmatpush.xpose.msra.mxu0 0.0
  %765 = vmatpush.xpose.msra.mxu0 0.0
  %766 = vmatpush.xpose.msra.mxu0 0.0
  %767 = vmatpush.xpose.msra.mxu0 0.0
  %768 = vmatpush.xpose.msra.mxu0 0.0
  %769 = vmatpush.xpose.msra.mxu0 0.0
  %770 = vmatpush.xpose.msra.mxu0 0.0
  %771 = vmatpush.xpose.msra.mxu0 0.0
  %772 = vmatpush.xpose.msra.mxu0 0.0
  %773 = vmatpush.xpose.msra.mxu0 %v757
  %774 = vmatpush.xpose.msra.mxu0 %v755
  %775 = vmatmul.f32.gmra.mxu0 %v751
  %v776 = vpop.f32.mrf.mxu0
  %v777 = vadd.f32 0.0, %v776
  %778 = vmatmul.f32.gmra.mxu0 %v753
  %v779 = vpop.f32.mrf.mxu0
  %v780 = vadd.f32 0.0, %v779
  %781 = vdwg.mxu0
  %v782 = vmul.f32 %v777, 0.125
  %v783 = vmul.f32 %v780, 0.125
  %v784 = vadd.f32 %v782, %v46
  %v785 = vadd.f32 %v783, %v47
  %v786 = vsel %vm159, %v784, -inf
  %787 = vmax.xlane.f32.xlu0 %v786
  %v788 = vpop.xlane.xlu0 %787
  %v789 = vsel %vm159, %v785, -inf
  %790 = vmax.xlane.f32.xlu0 %v789
  %v791 = vpop.xlane.xlu0 %790
  %v792 = vsub.f32 %v784, %v788
  %v793 = vsub.f32 %v785, %v791
  %v794 = vmul.f32 %v792, 1.442695
  %v795 = vpow.pop %v794
  %v796 = vmul.f32 %v793, 1.442695
  %v797 = vpow.pop %v796
  %v798 = vsel %vm159, %v795, 0.0
  %799 = vadd.xlane.f32.xlu0 %v798
  %v800 = vpop.xlane.xlu0 %799
  %v801 = vsel %vm159, %v797, 0.0
  %802 = vadd.xlane.f32.xlu0 %v801
  %v803 = vpop.xlane.xlu0 %802
  %v804 = vrcp.pop %v800
  %v805 = vmul.f32 %v800, %v804
  %v806 = vsub.f32 1.0, %v805
  %v807 = vmul.f32 %v804, %v806
  %v808 = vadd.f32 %v804, %v807
  %vm809 = vweird.f32 %v800
  %vm810 = vweird.f32 %v804
  %vm811 = vmor %vm809, %vm810
  %v812 = vsel %vm811, %v804, %v808
  %v813 = vand.u32 2147483647, %v800
  %vm814 = vcmp.eq.f32.partialorder %v813, 8.507059e+37
  %v815 = vand.u32 %v800, 2147483648
  %v816 = vor.u32 1.1754944e-38, %v815
  %v817 = vsel %vm814, %v816, %v812
  %v818 = vmul.f32 %v795, %v817
  %v819 = vrcp.pop %v803
  %v820 = vmul.f32 %v803, %v819
  %v821 = vsub.f32 1.0, %v820
  %v822 = vmul.f32 %v819, %v821
  %v823 = vadd.f32 %v819, %v822
  %vm824 = vweird.f32 %v803
  %vm825 = vweird.f32 %v819
  %vm826 = vmor %vm824, %vm825
  %v827 = vsel %vm826, %v819, %v823
  %v828 = vand.u32 2147483647, %v803
  %vm829 = vcmp.eq.f32.partialorder %v828, 8.507059e+37
  %v830 = vand.u32 %v803, 2147483648
  %v831 = vor.u32 1.1754944e-38, %v830
  %v832 = vsel %vm829, %v831, %v827
  %v833 = vmul.f32 %v797, %v832
  %834 = vrot.lane.b32.xlu0 %v112, 88
  %v835 = vpop.permute.xlu0 %834
  %836 = vrot.lane.b32.xlu0 %v115, 88
  %v837 = vpop.permute.xlu0 %836
  %v841 = vsel %vm159, %v818, 0
  %v844 = vsel %vm159, %v833, 0
  %846 = vmatpush.msra.mxu0 0.0
  %847 = vmatpush.msra.mxu0 0.0
  %848 = vmatpush.msra.mxu0 0.0
  %849 = vmatpush.msra.mxu0 0.0
  %850 = vmatpush.msra.mxu0 0.0
  %851 = vmatpush.msra.mxu0 0.0
  %852 = vmatpush.msra.mxu0 0.0
  %853 = vmatpush.msra.mxu0 0.0
  %854 = vmatpush.msra.mxu0 0.0
  %855 = vmatpush.msra.mxu0 0.0
  %856 = vmatpush.msra.mxu0 0.0
  %857 = vmatpush.msra.mxu0 0.0
  %858 = vmatpush.msra.mxu0 0.0
  %859 = vmatpush.msra.mxu0 0.0
  %860 = vmatpush.msra.mxu0 %v837
  %861 = vmatpush.msra.mxu0 %v835
  %862 = vmatmul.f32.gmra.mxu0 %v841
  %v863 = vpop.f32.mrf.mxu0
  %v864 = vadd.f32 0.0, %v863
  %865 = vmatmul.f32.gmra.mxu0 %v844
  %v866 = vpop.f32.mrf.mxu0
  %v867 = vadd.f32 0.0, %v866
  %868 = vdwg.mxu0
  %869 = vrot.lane.b32.xlu0 %v89, 80
  %v870 = vpop.permute.xlu0 %869
  %871 = vrot.lane.b32.xlu0 %v92, 80
  %v872 = vpop.permute.xlu0 %871
  %873 = vrot.lane.b32.xlu0 %v89, 16
  %v874 = vpop.permute.xlu0 %873
  %875 = vrot.lane.b32.xlu0 %v92, 16
  %v876 = vpop.permute.xlu0 %875
  %v877 = vsel %vm123, %v870, 0
  %v879 = vsel %vm123, %v872, 0
  %v881 = vsel %vm123, %v874, 0
  %v883 = vsel %vm123, %v876, 0
  %885 = vmatpush.xpose.msra.mxu0 0.0
  %886 = vmatpush.xpose.msra.mxu0 0.0
  %887 = vmatpush.xpose.msra.mxu0 0.0
  %888 = vmatpush.xpose.msra.mxu0 0.0
  %889 = vmatpush.xpose.msra.mxu0 0.0
  %890 = vmatpush.xpose.msra.mxu0 0.0
  %891 = vmatpush.xpose.msra.mxu0 0.0
  %892 = vmatpush.xpose.msra.mxu0 0.0
  %893 = vmatpush.xpose.msra.mxu0 0.0
  %894 = vmatpush.xpose.msra.mxu0 0.0
  %895 = vmatpush.xpose.msra.mxu0 0.0
  %896 = vmatpush.xpose.msra.mxu0 0.0
  %897 = vmatpush.xpose.msra.mxu0 0.0
  %898 = vmatpush.xpose.msra.mxu0 0.0
  %899 = vmatpush.xpose.msra.mxu0 %v883
  %900 = vmatpush.xpose.msra.mxu0 %v881
  %901 = vmatmul.f32.gmra.mxu0 %v877
  %v902 = vpop.f32.mrf.mxu0
  %v903 = vadd.f32 0.0, %v902
  %904 = vmatmul.f32.gmra.mxu0 %v879
  %v905 = vpop.f32.mrf.mxu0
  %v906 = vadd.f32 0.0, %v905
  %907 = vdwg.mxu0
  %v908 = vmul.f32 %v903, 0.125
  %v909 = vmul.f32 %v906, 0.125
  %v910 = vadd.f32 %v908, %v46
  %v911 = vadd.f32 %v909, %v47
  %v912 = vsel %vm159, %v910, -inf
  %913 = vmax.xlane.f32.xlu0 %v912
  %v914 = vpop.xlane.xlu0 %913
  %v915 = vsel %vm159, %v911, -inf
  %916 = vmax.xlane.f32.xlu0 %v915
  %v917 = vpop.xlane.xlu0 %916
  %v918 = vsub.f32 %v910, %v914
  %v919 = vsub.f32 %v911, %v917
  %v920 = vmul.f32 %v918, 1.442695
  %v921 = vpow.pop %v920
  %v922 = vmul.f32 %v919, 1.442695
  %v923 = vpow.pop %v922
  %v924 = vsel %vm159, %v921, 0.0
  %925 = vadd.xlane.f32.xlu0 %v924
  %v926 = vpop.xlane.xlu0 %925
  %v927 = vsel %vm159, %v923, 0.0
  %928 = vadd.xlane.f32.xlu0 %v927
  %v929 = vpop.xlane.xlu0 %928
  %v930 = vrcp.pop %v926
  %v931 = vmul.f32 %v926, %v930
  %v932 = vsub.f32 1.0, %v931
  %v933 = vmul.f32 %v930, %v932
  %v934 = vadd.f32 %v930, %v933
  %vm935 = vweird.f32 %v926
  %vm936 = vweird.f32 %v930
  %vm937 = vmor %vm935, %vm936
  %v938 = vsel %vm937, %v930, %v934
  %v939 = vand.u32 2147483647, %v926
  %vm940 = vcmp.eq.f32.partialorder %v939, 8.507059e+37
  %v941 = vand.u32 %v926, 2147483648
  %v942 = vor.u32 1.1754944e-38, %v941
  %v943 = vsel %vm940, %v942, %v938
  %v944 = vmul.f32 %v921, %v943
  %v945 = vrcp.pop %v929
  %v946 = vmul.f32 %v929, %v945
  %v947 = vsub.f32 1.0, %v946
  %v948 = vmul.f32 %v945, %v947
  %v949 = vadd.f32 %v945, %v948
  %vm950 = vweird.f32 %v929
  %vm951 = vweird.f32 %v945
  %vm952 = vmor %vm950, %vm951
  %v953 = vsel %vm952, %v945, %v949
  %v954 = vand.u32 2147483647, %v929
  %vm955 = vcmp.eq.f32.partialorder %v954, 8.507059e+37
  %v956 = vand.u32 %v929, 2147483648
  %v957 = vor.u32 1.1754944e-38, %v956
  %v958 = vsel %vm955, %v957, %v953
  %v959 = vmul.f32 %v923, %v958
  %960 = vrot.lane.b32.xlu0 %v112, 80
  %v961 = vpop.permute.xlu0 %960
  %962 = vrot.lane.b32.xlu0 %v115, 80
  %v963 = vpop.permute.xlu0 %962
  %v967 = vsel %vm159, %v944, 0
  %v970 = vsel %vm159, %v959, 0
  %972 = vmatpush.msra.mxu0 0.0
  %973 = vmatpush.msra.mxu0 0.0
  %974 = vmatpush.msra.mxu0 0.0
  %975 = vmatpush.msra.mxu0 0.0
  %976 = vmatpush.msra.mxu0 0.0
  %977 = vmatpush.msra.mxu0 0.0
  %978 = vmatpush.msra.mxu0 0.0
  %979 = vmatpush.msra.mxu0 0.0
  %980 = vmatpush.msra.mxu0 0.0
  %981 = vmatpush.msra.mxu0 0.0
  %982 = vmatpush.msra.mxu0 0.0
  %983 = vmatpush.msra.mxu0 0.0
  %984 = vmatpush.msra.mxu0 0.0
  %985 = vmatpush.msra.mxu0 0.0
  %986 = vmatpush.msra.mxu0 %v963
  %987 = vmatpush.msra.mxu0 %v961
  %988 = vmatmul.f32.gmra.mxu0 %v967
  %v989 = vpop.f32.mrf.mxu0
  %v990 = vadd.f32 0.0, %v989
  %991 = vmatmul.f32.gmra.mxu0 %v970
  %v992 = vpop.f32.mrf.mxu0
  %v993 = vadd.f32 0.0, %v992
  %994 = vdwg.mxu0
  %995 = vrot.lane.b32.xlu0 %v89, 72
  %v996 = vpop.permute.xlu0 %995
  %997 = vrot.lane.b32.xlu0 %v92, 72
  %v998 = vpop.permute.xlu0 %997
  %999 = vrot.lane.b32.xlu0 %v89, 8
  %v1000 = vpop.permute.xlu0 %999
  %1001 = vrot.lane.b32.xlu0 %v92, 8
  %v1002 = vpop.permute.xlu0 %1001
  %v1003 = vsel %vm123, %v996, 0
  %v1005 = vsel %vm123, %v998, 0
  %v1007 = vsel %vm123, %v1000, 0
  %v1009 = vsel %vm123, %v1002, 0
  %1011 = vmatpush.xpose.msra.mxu0 0.0
  %1012 = vmatpush.xpose.msra.mxu0 0.0
  %1013 = vmatpush.xpose.msra.mxu0 0.0
  %1014 = vmatpush.xpose.msra.mxu0 0.0
  %1015 = vmatpush.xpose.msra.mxu0 0.0
  %1016 = vmatpush.xpose.msra.mxu0 0.0
  %1017 = vmatpush.xpose.msra.mxu0 0.0
  %1018 = vmatpush.xpose.msra.mxu0 0.0
  %1019 = vmatpush.xpose.msra.mxu0 0.0
  %1020 = vmatpush.xpose.msra.mxu0 0.0
  %1021 = vmatpush.xpose.msra.mxu0 0.0
  %1022 = vmatpush.xpose.msra.mxu0 0.0
  %1023 = vmatpush.xpose.msra.mxu0 0.0
  %1024 = vmatpush.xpose.msra.mxu0 0.0
  %1025 = vmatpush.xpose.msra.mxu0 %v1009
  %1026 = vmatpush.xpose.msra.mxu0 %v1007
  %1027 = vmatmul.f32.gmra.mxu0 %v1003
  %v1028 = vpop.f32.mrf.mxu0
  %v1029 = vadd.f32 0.0, %v1028
  %1030 = vmatmul.f32.gmra.mxu0 %v1005
  %v1031 = vpop.f32.mrf.mxu0
  %v1032 = vadd.f32 0.0, %v1031
  %1033 = vdwg.mxu0
  %v1034 = vmul.f32 %v1029, 0.125
  %v1035 = vmul.f32 %v1032, 0.125
  %v1036 = vadd.f32 %v1034, %v46
  %v1037 = vadd.f32 %v1035, %v47
  %v1038 = vsel %vm159, %v1036, -inf
  %1039 = vmax.xlane.f32.xlu0 %v1038
  %v1040 = vpop.xlane.xlu0 %1039
  %v1041 = vsel %vm159, %v1037, -inf
  %1042 = vmax.xlane.f32.xlu0 %v1041
  %v1043 = vpop.xlane.xlu0 %1042
  %v1044 = vsub.f32 %v1036, %v1040
  %v1045 = vsub.f32 %v1037, %v1043
  %v1046 = vmul.f32 %v1044, 1.442695
  %v1047 = vpow.pop %v1046
  %v1048 = vmul.f32 %v1045, 1.442695
  %v1049 = vpow.pop %v1048
  %v1050 = vsel %vm159, %v1047, 0.0
  %1051 = vadd.xlane.f32.xlu0 %v1050
  %v1052 = vpop.xlane.xlu0 %1051
  %v1053 = vsel %vm159, %v1049, 0.0
  %1054 = vadd.xlane.f32.xlu0 %v1053
  %v1055 = vpop.xlane.xlu0 %1054
  %v1056 = vrcp.pop %v1052
  %v1057 = vmul.f32 %v1052, %v1056
  %v1058 = vsub.f32 1.0, %v1057
  %v1059 = vmul.f32 %v1056, %v1058
  %v1060 = vadd.f32 %v1056, %v1059
  %vm1061 = vweird.f32 %v1052
  %vm1062 = vweird.f32 %v1056
  %vm1063 = vmor %vm1061, %vm1062
  %v1064 = vsel %vm1063, %v1056, %v1060
  %v1065 = vand.u32 2147483647, %v1052
  %vm1066 = vcmp.eq.f32.partialorder %v1065, 8.507059e+37
  %v1067 = vand.u32 %v1052, 2147483648
  %v1068 = vor.u32 1.1754944e-38, %v1067
  %v1069 = vsel %vm1066, %v1068, %v1064
  %v1070 = vmul.f32 %v1047, %v1069
  %v1071 = vrcp.pop %v1055
  %v1072 = vmul.f32 %v1055, %v1071
  %v1073 = vsub.f32 1.0, %v1072
  %v1074 = vmul.f32 %v1071, %v1073
  %v1075 = vadd.f32 %v1071, %v1074
  %vm1076 = vweird.f32 %v1055
  %vm1077 = vweird.f32 %v1071
  %vm1078 = vmor %vm1076, %vm1077
  %v1079 = vsel %vm1078, %v1071, %v1075
  %v1080 = vand.u32 2147483647, %v1055
  %vm1081 = vcmp.eq.f32.partialorder %v1080, 8.507059e+37
  %v1082 = vand.u32 %v1055, 2147483648
  %v1083 = vor.u32 1.1754944e-38, %v1082
  %v1084 = vsel %vm1081, %v1083, %v1079
  %v1085 = vmul.f32 %v1049, %v1084
  %1086 = vrot.lane.b32.xlu0 %v112, 72
  %v1087 = vpop.permute.xlu0 %1086
  %1088 = vrot.lane.b32.xlu0 %v115, 72
  %v1089 = vpop.permute.xlu0 %1088
  %v1093 = vsel %vm159, %v1070, 0
  %v1096 = vsel %vm159, %v1085, 0
  %1098 = vmatpush.msra.mxu0 0.0
  %1099 = vmatpush.msra.mxu0 0.0
  %1100 = vmatpush.msra.mxu0 0.0
  %1101 = vmatpush.msra.mxu0 0.0
  %1102 = vmatpush.msra.mxu0 0.0
  %1103 = vmatpush.msra.mxu0 0.0
  %1104 = vmatpush.msra.mxu0 0.0
  %1105 = vmatpush.msra.mxu0 0.0
  %1106 = vmatpush.msra.mxu0 0.0
  %1107 = vmatpush.msra.mxu0 0.0
  %1108 = vmatpush.msra.mxu0 0.0
  %1109 = vmatpush.msra.mxu0 0.0
  %1110 = vmatpush.msra.mxu0 0.0
  %1111 = vmatpush.msra.mxu0 0.0
  %1112 = vmatpush.msra.mxu0 %v1089
  %1113 = vmatpush.msra.mxu0 %v1087
  %1114 = vmatmul.f32.gmra.mxu0 %v1093
  %v1115 = vpop.f32.mrf.mxu0
  %v1116 = vadd.f32 0.0, %v1115
  %1117 = vmatmul.f32.gmra.mxu0 %v1096
  %v1118 = vpop.f32.mrf.mxu0
  %v1119 = vadd.f32 0.0, %v1118
  %1120 = vdwg.mxu0
  %1123 = vrot.lane.b32.xlu0 %v360, 8
  %v1124 = vpop.permute.xlu0 %1123
  %1125 = vrot.lane.b32.xlu0 %v363, 8
  %v1126 = vpop.permute.xlu0 %1125
  %1131 = vrot.lane.b32.xlu0 %v486, 16
  %v1132 = vpop.permute.xlu0 %1131
  %1133 = vrot.lane.b32.xlu0 %v489, 16
  %v1134 = vpop.permute.xlu0 %1133
  %1139 = vrot.lane.b32.xlu0 %v612, 24
  %v1140 = vpop.permute.xlu0 %1139
  %1141 = vrot.lane.b32.xlu0 %v615, 24
  %v1142 = vpop.permute.xlu0 %1141
  %1147 = vrot.lane.b32.xlu0 %v738, 32
  %v1148 = vpop.permute.xlu0 %1147
  %1149 = vrot.lane.b32.xlu0 %v741, 32
  %v1150 = vpop.permute.xlu0 %1149
  %1155 = vrot.lane.b32.xlu0 %v864, 40
  %v1156 = vpop.permute.xlu0 %1155
  %1157 = vrot.lane.b32.xlu0 %v867, 40
  %v1158 = vpop.permute.xlu0 %1157
  %1163 = vrot.lane.b32.xlu0 %v990, 48
  %v1164 = vpop.permute.xlu0 %1163
  %1165 = vrot.lane.b32.xlu0 %v993, 48
  %v1166 = vpop.permute.xlu0 %1165
  %1171 = vrot.lane.b32.xlu0 %v1116, 56
  %v1172 = vpop.permute.xlu0 %1171
  %1173 = vrot.lane.b32.xlu0 %v1119, 56
  %v1174 = vpop.permute.xlu0 %1173
  %v1177 = vsel %vm123, %v232, %v1124
  %v1178 = vsel %vm123, %v235, %v1126
  %v1179 = vsel %vm159, %v1177, %v1132
  %v1180 = vsel %vm159, %v1178, %v1134
  %vm1181 = vcmask 195584
  %v1182 = vsel %vm1181, %v1179, %v1140
  %v1183 = vsel %vm1181, %v1180, %v1142
  %vm1184 = vcmask 261120
  %v1185 = vsel %vm1184, %v1182, %v1148
  %v1186 = vsel %vm1184, %v1183, %v1150
  %vm1187 = vcmask 326656
  %v1188 = vsel %vm1187, %v1185, %v1156
  %v1189 = vsel %vm1187, %v1186, %v1158
  %vm1190 = vcmask 392192
  %v1191 = vsel %vm1190, %v1188, %v1164
  %v1192 = vsel %vm1190, %v1189, %v1166
  %vm1193 = vcmask 457728
  %v1194 = vsel %vm1193, %v1191, %v1172
  %v1195 = vsel %vm1193, %v1192, %v1174
  %v1196 = vld [vmem:[%s3] sm:$0xff]
  %v1197 = vld [vmem:[%s3 + $0x8] sm:$0xff]
  %v1198 = vld [vmem:[%s3 + $0x10] sm:$0xff]
  %v1199 = vld [vmem:[%s3 + $0x18] sm:$0xff]
  %v1200 = vld [vmem:[%s3 + $0x20] sm:$0xff]
  %v1201 = vld [vmem:[%s3 + $0x28] sm:$0xff]
  %v1202 = vld [vmem:[%s3 + $0x30] sm:$0xff]
  %v1203 = vld [vmem:[%s3 + $0x38] sm:$0xff]
  %v1204 = vld [vmem:[%s4] sm:$0x1]
  %v1206 = vperm.slane %v1204, 0
  %v1209 = vsel %vm64, %v1194, 0
  %v1212 = vsel %vm64, %v1195, 0
  %1214 = vmatpush.msra.mxu0 0.0
  %1215 = vmatpush.msra.mxu0 0.0
  %1216 = vmatpush.msra.mxu0 0.0
  %1217 = vmatpush.msra.mxu0 0.0
  %1218 = vmatpush.msra.mxu0 0.0
  %1219 = vmatpush.msra.mxu0 0.0
  %1220 = vmatpush.msra.mxu0 0.0
  %1221 = vmatpush.msra.mxu0 0.0
  %1222 = vmatpush.msra.mxu0 %v1203
  %1223 = vmatpush.msra.mxu0 %v1202
  %1224 = vmatpush.msra.mxu0 %v1201
  %1225 = vmatpush.msra.mxu0 %v1200
  %1226 = vmatpush.msra.mxu0 %v1199
  %1227 = vmatpush.msra.mxu0 %v1198
  %1228 = vmatpush.msra.mxu0 %v1197
  %1229 = vmatpush.msra.mxu0 %v1196
  %1230 = vmatmul.f32.gmra.mxu0 %v1209
  %v1231 = vpop.f32.mrf.mxu0
  %v1232 = vadd.f32 %v1206, %v1231
  %1233 = vmatmul.f32.gmra.mxu0 %v1212
  %v1234 = vpop.f32.mrf.mxu0
  %v1235 = vadd.f32 %v1206, %v1234
  %1236 = vdwg.mxu0
  %v1237 = vld [vmem:[%s5] sm:$0xff]
  %v1238 = vld [vmem:[%s5 + $0x8] sm:$0xff]
  %v1239 = vld [vmem:[%s5 + $0x10] sm:$0xff]
  %v1240 = vld [vmem:[%s5 + $0x18] sm:$0xff]
  %v1241 = vld [vmem:[%s5 + $0x20] sm:$0xff]
  %v1242 = vld [vmem:[%s5 + $0x28] sm:$0xff]
  %v1243 = vld [vmem:[%s5 + $0x30] sm:$0xff]
  %v1244 = vld [vmem:[%s5 + $0x38] sm:$0xff]
  %v1245 = vld [vmem:[%s5 + $0x40] sm:$0xff]
  %v1246 = vld [vmem:[%s5 + $0x48] sm:$0xff]
  %v1247 = vld [vmem:[%s5 + $0x50] sm:$0xff]
  %v1248 = vld [vmem:[%s5 + $0x58] sm:$0xff]
  %v1249 = vld [vmem:[%s5 + $0x60] sm:$0xff]
  %v1250 = vld [vmem:[%s5 + $0x68] sm:$0xff]
  %v1251 = vld [vmem:[%s5 + $0x70] sm:$0xff]
  %v1252 = vld [vmem:[%s5 + $0x78] sm:$0xff]
  %v1253 = vld [vmem:[%s6] sm:$0x3]
  %v1255 = vperm.slane %v1253, 0
  %v1256 = vperm.slane %v1253, 1
  %v1260 = vsel %vm64, %v1232, 0
  %v1263 = vsel %vm64, %v1235, 0
  %1265 = vmatpush.msra.mxu0 0.0
  %1266 = vmatpush.msra.mxu0 0.0
  %1267 = vmatpush.msra.mxu0 0.0
  %1268 = vmatpush.msra.mxu0 0.0
  %1269 = vmatpush.msra.mxu0 0.0
  %1270 = vmatpush.msra.mxu0 0.0
  %1271 = vmatpush.msra.mxu0 0.0
  %1272 = vmatpush.msra.mxu0 0.0
  %1273 = vmatpush.msra.mxu0 %v1251
  %1274 = vmatpush.msra.mxu0 %v1249
  %1275 = vmatpush.msra.mxu0 %v1247
  %1276 = vmatpush.msra.mxu0 %v1245
  %1277 = vmatpush.msra.mxu0 %v1243
  %1278 = vmatpush.msra.mxu0 %v1241
  %1279 = vmatpush.msra.mxu0 %v1239
  %1280 = vmatpush.msra.mxu0 %v1237
  %1281 = vmatmul.f32.gmra.mxu0 %v1260
  %v1282 = vpop.f32.mrf.mxu0
  %v1283 = vadd.f32 %v1255, %v1282
  %1284 = vmatmul.f32.gmra.mxu0 %v1263
  %v1285 = vpop.f32.mrf.mxu0
  %v1286 = vadd.f32 %v1255, %v1285
  %1287 = vdwg.mxu0
  %1288 = vmatpush.msra.mxu0 0.0
  %1289 = vmatpush.msra.mxu0 0.0
  %1290 = vmatpush.msra.mxu0 0.0
  %1291 = vmatpush.msra.mxu0 0.0
  %1292 = vmatpush.msra.mxu0 0.0
  %1293 = vmatpush.msra.mxu0 0.0
  %1294 = vmatpush.msra.mxu0 0.0
  %1295 = vmatpush.msra.mxu0 0.0
  %1296 = vmatpush.msra.mxu0 %v1252
  %1297 = vmatpush.msra.mxu0 %v1250
  %1298 = vmatpush.msra.mxu0 %v1248
  %1299 = vmatpush.msra.mxu0 %v1246
  %1300 = vmatpush.msra.mxu0 %v1244
  %1301 = vmatpush.msra.mxu0 %v1242
  %1302 = vmatpush.msra.mxu0 %v1240
  %1303 = vmatpush.msra.mxu0 %v1238
  %1304 = vmatmul.f32.gmra.mxu0 %v1260
  %v1305 = vpop.f32.mrf.mxu0
  %v1306 = vadd.f32 %v1256, %v1305
  %1307 = vmatmul.f32.gmra.mxu0 %v1263
  %v1308 = vpop.f32.mrf.mxu0
  %v1309 = vadd.f32 %v1256, %v1308
  %1310 = vdwg.mxu0
  %v1311 = vld [vmem:[%s7] sm:$0xff]
  %v1312 = vld [vmem:[%s7 + $0x8] sm:$0xff]
  %v1313 = vld [vmem:[%s7 + $0x10] sm:$0xff]
  %v1314 = vld [vmem:[%s7 + $0x18] sm:$0xff]
  %v1315 = vld [vmem:[%s7 + $0x20] sm:$0xff]
  %v1316 = vld [vmem:[%s7 + $0x28] sm:$0xff]
  %v1317 = vld [vmem:[%s7 + $0x30] sm:$0xff]
  %v1318 = vld [vmem:[%s7 + $0x38] sm:$0xff]
  %v1319 = vld [vmem:[%s7 + $0x40] sm:$0xff]
  %v1320 = vld [vmem:[%s7 + $0x48] sm:$0xff]
  %v1321 = vld [vmem:[%s7 + $0x50] sm:$0xff]
  %v1322 = vld [vmem:[%s7 + $0x58] sm:$0xff]
  %v1323 = vld [vmem:[%s7 + $0x60] sm:$0xff]
  %v1324 = vld [vmem:[%s7 + $0x68] sm:$0xff]
  %v1325 = vld [vmem:[%s7 + $0x70] sm:$0xff]
  %v1326 = vld [vmem:[%s7 + $0x78] sm:$0xff]
  %v1328 = vrot.slane %v1286, 7
  %vm1330 = vcmask 1040384
  %v1331 = vsel %vm1330, %v1283, %v1328
  %v1333 = vrot.slane %v1306, 7
  %v1336 = vrot.slane %v1309, 6
  %v1338 = vsel %vm1330, %v1333, %v1336
  %v1340 = vsel %vm64, 0.0, 0
  %1342 = vmatpush.msra.mxu0 0.0
  %1343 = vmatpush.msra.mxu0 0.0
  %1344 = vmatpush.msra.mxu0 0.0
  %1345 = vmatpush.msra.mxu0 0.0
  %1346 = vmatpush.msra.mxu0 0.0
  %1347 = vmatpush.msra.mxu0 0.0
  %1348 = vmatpush.msra.mxu0 0.0
  %1349 = vmatpush.msra.mxu0 0.0
  %1350 = vmatpush.msra.mxu0 %v1325
  %1351 = vmatpush.msra.mxu0 %v1323
  %1352 = vmatpush.msra.mxu0 %v1321
  %1353 = vmatpush.msra.mxu0 %v1319
  %1354 = vmatpush.msra.mxu0 %v1317
  %1355 = vmatpush.msra.mxu0 %v1315
  %1356 = vmatpush.msra.mxu0 %v1313
  %1357 = vmatpush.msra.mxu0 %v1311
  %1358 = vmatmul.f32.gmra.mxu0 %v1340
  %v1359 = vpop.f32.mrf.mxu0
  %v1360 = vadd.f32 0.0, %v1359
  %1361 = vdwg.mxu0
  %1362 = vmatpush.msra.mxu0 0.0
  %1363 = vmatpush.msra.mxu0 0.0
  %1364 = vmatpush.msra.mxu0 0.0
  %1365 = vmatpush.msra.mxu0 0.0
  %1366 = vmatpush.msra.mxu0 0.0
  %1367 = vmatpush.msra.mxu0 0.0
  %1368 = vmatpush.msra.mxu0 0.0
  %1369 = vmatpush.msra.mxu0 0.0
  %1370 = vmatpush.msra.mxu0 %v1326
  %1371 = vmatpush.msra.mxu0 %v1324
  %1372 = vmatpush.msra.mxu0 %v1322
  %1373 = vmatpush.msra.mxu0 %v1320
  %1374 = vmatpush.msra.mxu0 %v1318
  %1375 = vmatpush.msra.mxu0 %v1316
  %1376 = vmatpush.msra.mxu0 %v1314
  %1377 = vmatpush.msra.mxu0 %v1312
  %1378 = vmatmul.f32.gmra.mxu0 %v1340
  %v1379 = vpop.f32.mrf.mxu0
  %v1380 = vadd.f32 0.0, %v1379
  %1381 = vdwg.mxu0
  %v1382 = vadd.f32 %v1331, %v1360
  %v1383 = vadd.f32 %v1338, %v1380
  %v1384 = vxor.u32 %v1382, 2147483648
  %v1385 = vmul.f32 %v1384, 1.442695
  %v1386 = vpow.pop %v1385
  %v1387 = vadd.f32 %v1386, 1.0
  %v1388 = vrcp.pop %v1387
  %v1389 = vmul.f32 %v1387, %v1388
  %v1390 = vsub.f32 1.0, %v1389
  %v1391 = vmul.f32 %v1388, %v1390
  %v1392 = vadd.f32 %v1388, %v1391
  %vm1393 = vweird.f32 %v1387
  %vm1394 = vweird.f32 %v1388
  %vm1395 = vmor %vm1393, %vm1394
  %v1396 = vsel %vm1395, %v1388, %v1392
  %v1397 = vand.u32 2147483647, %v1387
  %vm1398 = vcmp.eq.f32.partialorder %v1397, 8.507059e+37
  %v1399 = vand.u32 %v1387, 2147483648
  %v1400 = vor.u32 1.1754944e-38, %v1399
  %v1401 = vsel %vm1398, %v1400, %v1396
  %v1402 = vmul.f32 1.0, %v1401
  %v1403 = vtanh.pop %v1382
  %v1404 = vxor.u32 %v1383, 2147483648
  %v1405 = vmul.f32 %v1404, 1.442695
  %v1406 = vpow.pop %v1405
  %v1407 = vadd.f32 %v1406, 1.0
  %v1408 = vrcp.pop %v1407
  %v1409 = vmul.f32 %v1407, %v1408
  %v1410 = vsub.f32 1.0, %v1409
  %v1411 = vmul.f32 %v1408, %v1410
  %v1412 = vadd.f32 %v1408, %v1411
  %vm1413 = vweird.f32 %v1407
  %vm1414 = vweird.f32 %v1408
  %vm1415 = vmor %vm1413, %vm1414
  %v1416 = vsel %vm1415, %v1408, %v1412
  %v1417 = vand.u32 2147483647, %v1407
  %vm1418 = vcmp.eq.f32.partialorder %v1417, 8.507059e+37
  %v1419 = vand.u32 %v1407, 2147483648
  %v1420 = vor.u32 1.1754944e-38, %v1419
  %v1421 = vsel %vm1418, %v1420, %v1416
  %v1422 = vmul.f32 1.0, %v1421
  %v1423 = vtanh.pop %v1383
  %v1424 = vmul.f32 %v1402, 0.0
  %1426 = vrot.lane.b32.xlu0 %v1403, 64
  %v1427 = vpop.permute.xlu0 %1426
  %v1429 = vmul.f32 %v1402, %v1427
  %1431 = vrot.lane.b32.xlu0 %v1429, 32
  %v1432 = vpop.permute.xlu0 %1431
  %v1434 = vadd.f32 %v1424, %v1432
  %v1435 = vmul.f32 %v1422, 0.0
  %1437 = vrot.lane.b32.xlu0 %v1423, 64
  %v1438 = vpop.permute.xlu0 %1437
  %v1440 = vmul.f32 %v1422, %v1438
  %1442 = vrot.lane.b32.xlu0 %v1440, 32
  %v1443 = vpop.permute.xlu0 %1442
  %v1445 = vadd.f32 %v1435, %v1443
  %v1446 = vtanh.pop %v1434
  %1448 = vrot.lane.b32.xlu0 %v1446, 64
  %v1449 = vpop.permute.xlu0 %1448
  %v1451 = vmul.f32 %v1402, %v1449
  %v1452 = vtanh.pop %v1445
  %1454 = vrot.lane.b32.xlu0 %v1452, 64
  %v1455 = vpop.permute.xlu0 %1454
  %v1457 = vmul.f32 %v1422, %v1455
  %1459 = vrot.lane.b32.xlu0 %v1451, 32
  %v1460 = vpop.permute.xlu0 %1459
  %1463 = vrot.lane.b32.xlu0 %v1457, 64
  %v1464 = vpop.permute.xlu0 %1463
  %v1466 = vsel %vm1184, %v1460, %v1464
  %v1468 = vrot.slane %v1283, 1
  %v1470 = vsel %vm1330, %v1468, %v1286
  %v1471 = vrot.slane %v1306, 6
  %v1473 = vrot.slane %v1309, 5
  %v1475 = vsel %vm1330, %v1471, %v1473
  %v1477 = vsel %vm64, %v1466, 0
  %1479 = vmatpush.msra.mxu0 0.0
  %1480 = vmatpush.msra.mxu0 0.0
  %1481 = vmatpush.msra.mxu0 0.0
  %1482 = vmatpush.msra.mxu0 0.0
  %1483 = vmatpush.msra.mxu0 0.0
  %1484 = vmatpush.msra.mxu0 0.0
  %1485 = vmatpush.msra.mxu0 0.0
  %1486 = vmatpush.msra.mxu0 0.0
  %1487 = vmatpush.msra.mxu0 %v1325
  %1488 = vmatpush.msra.mxu0 %v1323
  %1489 = vmatpush.msra.mxu0 %v1321
  %1490 = vmatpush.msra.mxu0 %v1319
  %1491 = vmatpush.msra.mxu0 %v1317
  %1492 = vmatpush.msra.mxu0 %v1315
  %1493 = vmatpush.msra.mxu0 %v1313
  %1494 = vmatpush.msra.mxu0 %v1311
  %1495 = vmatmul.f32.gmra.mxu0 %v1477
  %v1496 = vpop.f32.mrf.mxu0
  %v1497 = vadd.f32 0.0, %v1496
  %1498 = vdwg.mxu0
  %1499 = vmatpush.msra.mxu0 0.0
  %1500 = vmatpush.msra.mxu0 0.0
  %1501 = vmatpush.msra.mxu0 0.0
  %1502 = vmatpush.msra.mxu0 0.0
  %1503 = vmatpush.msra.mxu0 0.0
  %1504 = vmatpush.msra.mxu0 0.0
  %1505 = vmatpush.msra.mxu0 0.0
  %1506 = vmatpush.msra.mxu0 0.0
  %1507 = vmatpush.msra.mxu0 %v1326
  %1508 = vmatpush.msra.mxu0 %v1324
  %1509 = vmatpush.msra.mxu0 %v1322
  %1510 = vmatpush.msra.mxu0 %v1320
  %1511 = vmatpush.msra.mxu0 %v1318
  %1512 = vmatpush.msra.mxu0 %v1316
  %1513 = vmatpush.msra.mxu0 %v1314
  %1514 = vmatpush.msra.mxu0 %v1312
  %1515 = vmatmul.f32.gmra.mxu0 %v1477
  %v1516 = vpop.f32.mrf.mxu0
  %v1517 = vadd.f32 0.0, %v1516
  %1518 = vdwg.mxu0
  %v1519 = vadd.f32 %v1470, %v1497
  %v1520 = vadd.f32 %v1475, %v1517
  %v1521 = vxor.u32 %v1519, 2147483648
  %v1522 = vmul.f32 %v1521, 1.442695
  %v1523 = vpow.pop %v1522
  %v1524 = vadd.f32 %v1523, 1.0
  %v1525 = vrcp.pop %v1524
  %v1526 = vmul.f32 %v1524, %v1525
  %v1527 = vsub.f32 1.0, %v1526
  %v1528 = vmul.f32 %v1525, %v1527
  %v1529 = vadd.f32 %v1525, %v1528
  %vm1530 = vweird.f32 %v1524
  %vm1531 = vweird.f32 %v1525
  %vm1532 = vmor %vm1530, %vm1531
  %v1533 = vsel %vm1532, %v1525, %v1529
  %v1534 = vand.u32 2147483647, %v1524
  %vm1535 = vcmp.eq.f32.partialorder %v1534, 8.507059e+37
  %v1536 = vand.u32 %v1524, 2147483648
  %v1537 = vor.u32 1.1754944e-38, %v1536
  %v1538 = vsel %vm1535, %v1537, %v1533
  %v1539 = vmul.f32 1.0, %v1538
  %v1540 = vtanh.pop %v1519
  %v1541 = vxor.u32 %v1520, 2147483648
  %v1542 = vmul.f32 %v1541, 1.442695
  %v1543 = vpow.pop %v1542
  %v1544 = vadd.f32 %v1543, 1.0
  %v1545 = vrcp.pop %v1544
  %v1546 = vmul.f32 %v1544, %v1545
  %v1547 = vsub.f32 1.0, %v1546
  %v1548 = vmul.f32 %v1545, %v1547
  %v1549 = vadd.f32 %v1545, %v1548
  %vm1550 = vweird.f32 %v1544
  %vm1551 = vweird.f32 %v1545
  %vm1552 = vmor %vm1550, %vm1551
  %v1553 = vsel %vm1552, %v1545, %v1549
  %v1554 = vand.u32 2147483647, %v1544
  %vm1555 = vcmp.eq.f32.partialorder %v1554, 8.507059e+37
  %v1556 = vand.u32 %v1544, 2147483648
  %v1557 = vor.u32 1.1754944e-38, %v1556
  %v1558 = vsel %vm1555, %v1557, %v1553
  %v1559 = vmul.f32 1.0, %v1558
  %v1560 = vtanh.pop %v1520
  %v1561 = vmul.f32 %v1539, %v1434
  %1563 = vrot.lane.b32.xlu0 %v1540, 64
  %v1564 = vpop.permute.xlu0 %1563
  %v1566 = vmul.f32 %v1539, %v1564
  %1568 = vrot.lane.b32.xlu0 %v1566, 32
  %v1569 = vpop.permute.xlu0 %1568
  %v1571 = vadd.f32 %v1561, %v1569
  %v1572 = vmul.f32 %v1559, %v1445
  %1574 = vrot.lane.b32.xlu0 %v1560, 64
  %v1575 = vpop.permute.xlu0 %1574
  %v1577 = vmul.f32 %v1559, %v1575
  %1579 = vrot.lane.b32.xlu0 %v1577, 32
  %v1580 = vpop.permute.xlu0 %1579
  %v1582 = vadd.f32 %v1572, %v1580
  %v1583 = vtanh.pop %v1571
  %1585 = vrot.lane.b32.xlu0 %v1583, 64
  %v1586 = vpop.permute.xlu0 %1585
  %v1588 = vmul.f32 %v1539, %v1586
  %v1589 = vtanh.pop %v1582
  %1591 = vrot.lane.b32.xlu0 %v1589, 64
  %v1592 = vpop.permute.xlu0 %1591
  %v1594 = vmul.f32 %v1559, %v1592
  %1596 = vrot.lane.b32.xlu0 %v1588, 32
  %v1597 = vpop.permute.xlu0 %1596
  %1600 = vrot.lane.b32.xlu0 %v1594, 64
  %v1601 = vpop.permute.xlu0 %1600
  %v1603 = vsel %vm1184, %v1597, %v1601
  %v1604 = vrot.slane %v1283, 2
  %v1606 = vrot.slane %v1286, 1
  %v1608 = vsel %vm1330, %v1604, %v1606
  %v1609 = vrot.slane %v1306, 5
  %v1611 = vrot.slane %v1309, 4
  %v1613 = vsel %vm1330, %v1609, %v1611
  %v1615 = vsel %vm64, %v1603, 0
  %1617 = vmatpush.msra.mxu0 0.0
  %1618 = vmatpush.msra.mxu0 0.0
  %1619 = vmatpush.msra.mxu0 0.0
  %1620 = vmatpush.msra.mxu0 0.0
  %1621 = vmatpush.msra.mxu0 0.0
  %1622 = vmatpush.msra.mxu0 0.0
  %1623 = vmatpush.msra.mxu0 0.0
  %1624 = vmatpush.msra.mxu0 0.0
  %1625 = vmatpush.msra.mxu0 %v1325
  %1626 = vmatpush.msra.mxu0 %v1323
  %1627 = vmatpush.msra.mxu0 %v1321
  %1628 = vmatpush.msra.mxu0 %v1319
  %1629 = vmatpush.msra.mxu0 %v1317
  %1630 = vmatpush.msra.mxu0 %v1315
  %1631 = vmatpush.msra.mxu0 %v1313
  %1632 = vmatpush.msra.mxu0 %v1311
  %1633 = vmatmul.f32.gmra.mxu0 %v1615
  %v1634 = vpop.f32.mrf.mxu0
  %v1635 = vadd.f32 0.0, %v1634
  %1636 = vdwg.mxu0
  %1637 = vmatpush.msra.mxu0 0.0
  %1638 = vmatpush.msra.mxu0 0.0
  %1639 = vmatpush.msra.mxu0 0.0
  %1640 = vmatpush.msra.mxu0 0.0
  %1641 = vmatpush.msra.mxu0 0.0
  %1642 = vmatpush.msra.mxu0 0.0
  %1643 = vmatpush.msra.mxu0 0.0
  %1644 = vmatpush.msra.mxu0 0.0
  %1645 = vmatpush.msra.mxu0 %v1326
  %1646 = vmatpush.msra.mxu0 %v1324
  %1647 = vmatpush.msra.mxu0 %v1322
  %1648 = vmatpush.msra.mxu0 %v1320
  %1649 = vmatpush.msra.mxu0 %v1318
  %1650 = vmatpush.msra.mxu0 %v1316
  %1651 = vmatpush.msra.mxu0 %v1314
  %1652 = vmatpush.msra.mxu0 %v1312
  %1653 = vmatmul.f32.gmra.mxu0 %v1615
  %v1654 = vpop.f32.mrf.mxu0
  %v1655 = vadd.f32 0.0, %v1654
  %1656 = vdwg.mxu0
  %v1657 = vadd.f32 %v1608, %v1635
  %v1658 = vadd.f32 %v1613, %v1655
  %v1659 = vxor.u32 %v1657, 2147483648
  %v1660 = vmul.f32 %v1659, 1.442695
  %v1661 = vpow.pop %v1660
  %v1662 = vadd.f32 %v1661, 1.0
  %v1663 = vrcp.pop %v1662
  %v1664 = vmul.f32 %v1662, %v1663
  %v1665 = vsub.f32 1.0, %v1664
  %v1666 = vmul.f32 %v1663, %v1665
  %v1667 = vadd.f32 %v1663, %v1666
  %vm1668 = vweird.f32 %v1662
  %vm1669 = vweird.f32 %v1663
  %vm1670 = vmor %vm1668, %vm1669
  %v1671 = vsel %vm1670, %v1663, %v1667
  %v1672 = vand.u32 2147483647, %v1662
  %vm1673 = vcmp.eq.f32.partialorder %v1672, 8.507059e+37
  %v1674 = vand.u32 %v1662, 2147483648
  %v1675 = vor.u32 1.1754944e-38, %v1674
  %v1676 = vsel %vm1673, %v1675, %v1671
  %v1677 = vmul.f32 1.0, %v1676
  %v1678 = vtanh.pop %v1657
  %v1679 = vxor.u32 %v1658, 2147483648
  %v1680 = vmul.f32 %v1679, 1.442695
  %v1681 = vpow.pop %v1680
  %v1682 = vadd.f32 %v1681, 1.0
  %v1683 = vrcp.pop %v1682
  %v1684 = vmul.f32 %v1682, %v1683
  %v1685 = vsub.f32 1.0, %v1684
  %v1686 = vmul.f32 %v1683, %v1685
  %v1687 = vadd.f32 %v1683, %v1686
  %vm1688 = vweird.f32 %v1682
  %vm1689 = vweird.f32 %v1683
  %vm1690 = vmor %vm1688, %vm1689
  %v1691 = vsel %vm1690, %v1683, %v1687
  %v1692 = vand.u32 2147483647, %v1682
  %vm1693 = vcmp.eq.f32.partialorder %v1692, 8.507059e+37
  %v1694 = vand.u32 %v1682, 2147483648
  %v1695 = vor.u32 1.1754944e-38, %v1694
  %v1696 = vsel %vm1693, %v1695, %v1691
  %v1697 = vmul.f32 1.0, %v1696
  %v1698 = vtanh.pop %v1658
  %v1699 = vmul.f32 %v1677, %v1571
  %1701 = vrot.lane.b32.xlu0 %v1678, 64
  %v1702 = vpop.permute.xlu0 %1701
  %v1704 = vmul.f32 %v1677, %v1702
  %1706 = vrot.lane.b32.xlu0 %v1704, 32
  %v1707 = vpop.permute.xlu0 %1706
  %v1709 = vadd.f32 %v1699, %v1707
  %v1710 = vmul.f32 %v1697, %v1582
  %1712 = vrot.lane.b32.xlu0 %v1698, 64
  %v1713 = vpop.permute.xlu0 %1712
  %v1715 = vmul.f32 %v1697, %v1713
  %1717 = vrot.lane.b32.xlu0 %v1715, 32
  %v1718 = vpop.permute.xlu0 %1717
  %v1720 = vadd.f32 %v1710, %v1718
  %v1721 = vtanh.pop %v1709
  %1723 = vrot.lane.b32.xlu0 %v1721, 64
  %v1724 = vpop.permute.xlu0 %1723
  %v1726 = vmul.f32 %v1677, %v1724
  %v1727 = vtanh.pop %v1720
  %1729 = vrot.lane.b32.xlu0 %v1727, 64
  %v1730 = vpop.permute.xlu0 %1729
  %v1732 = vmul.f32 %v1697, %v1730
  %1734 = vrot.lane.b32.xlu0 %v1726, 32
  %v1735 = vpop.permute.xlu0 %1734
  %1738 = vrot.lane.b32.xlu0 %v1732, 64
  %v1739 = vpop.permute.xlu0 %1738
  %v1741 = vsel %vm1184, %v1735, %v1739
  %v1742 = vrot.slane %v1283, 3
  %v1744 = vrot.slane %v1286, 2
  %v1746 = vsel %vm1330, %v1742, %v1744
  %v1747 = vrot.slane %v1306, 4
  %v1749 = vrot.slane %v1309, 3
  %v1751 = vsel %vm1330, %v1747, %v1749
  %v1753 = vsel %vm64, %v1741, 0
  %1755 = vmatpush.msra.mxu0 0.0
  %1756 = vmatpush.msra.mxu0 0.0
  %1757 = vmatpush.msra.mxu0 0.0
  %1758 = vmatpush.msra.mxu0 0.0
  %1759 = vmatpush.msra.mxu0 0.0
  %1760 = vmatpush.msra.mxu0 0.0
  %1761 = vmatpush.msra.mxu0 0.0
  %1762 = vmatpush.msra.mxu0 0.0
  %1763 = vmatpush.msra.mxu0 %v1325
  %1764 = vmatpush.msra.mxu0 %v1323
  %1765 = vmatpush.msra.mxu0 %v1321
  %1766 = vmatpush.msra.mxu0 %v1319
  %1767 = vmatpush.msra.mxu0 %v1317
  %1768 = vmatpush.msra.mxu0 %v1315
  %1769 = vmatpush.msra.mxu0 %v1313
  %1770 = vmatpush.msra.mxu0 %v1311
  %1771 = vmatmul.f32.gmra.mxu0 %v1753
  %v1772 = vpop.f32.mrf.mxu0
  %v1773 = vadd.f32 0.0, %v1772
  %1774 = vdwg.mxu0
  %1775 = vmatpush.msra.mxu0 0.0
  %1776 = vmatpush.msra.mxu0 0.0
  %1777 = vmatpush.msra.mxu0 0.0
  %1778 = vmatpush.msra.mxu0 0.0
  %1779 = vmatpush.msra.mxu0 0.0
  %1780 = vmatpush.msra.mxu0 0.0
  %1781 = vmatpush.msra.mxu0 0.0
  %1782 = vmatpush.msra.mxu0 0.0
  %1783 = vmatpush.msra.mxu0 %v1326
  %1784 = vmatpush.msra.mxu0 %v1324
  %1785 = vmatpush.msra.mxu0 %v1322
  %1786 = vmatpush.msra.mxu0 %v1320
  %1787 = vmatpush.msra.mxu0 %v1318
  %1788 = vmatpush.msra.mxu0 %v1316
  %1789 = vmatpush.msra.mxu0 %v1314
  %1790 = vmatpush.msra.mxu0 %v1312
  %1791 = vmatmul.f32.gmra.mxu0 %v1753
  %v1792 = vpop.f32.mrf.mxu0
  %v1793 = vadd.f32 0.0, %v1792
  %1794 = vdwg.mxu0
  %v1795 = vadd.f32 %v1746, %v1773
  %v1796 = vadd.f32 %v1751, %v1793
  %v1797 = vxor.u32 %v1795, 2147483648
  %v1798 = vmul.f32 %v1797, 1.442695
  %v1799 = vpow.pop %v1798
  %v1800 = vadd.f32 %v1799, 1.0
  %v1801 = vrcp.pop %v1800
  %v1802 = vmul.f32 %v1800, %v1801
  %v1803 = vsub.f32 1.0, %v1802
  %v1804 = vmul.f32 %v1801, %v1803
  %v1805 = vadd.f32 %v1801, %v1804
  %vm1806 = vweird.f32 %v1800
  %vm1807 = vweird.f32 %v1801
  %vm1808 = vmor %vm1806, %vm1807
  %v1809 = vsel %vm1808, %v1801, %v1805
  %v1810 = vand.u32 2147483647, %v1800
  %vm1811 = vcmp.eq.f32.partialorder %v1810, 8.507059e+37
  %v1812 = vand.u32 %v1800, 2147483648
  %v1813 = vor.u32 1.1754944e-38, %v1812
  %v1814 = vsel %vm1811, %v1813, %v1809
  %v1815 = vmul.f32 1.0, %v1814
  %v1816 = vtanh.pop %v1795
  %v1817 = vxor.u32 %v1796, 2147483648
  %v1818 = vmul.f32 %v1817, 1.442695
  %v1819 = vpow.pop %v1818
  %v1820 = vadd.f32 %v1819, 1.0
  %v1821 = vrcp.pop %v1820
  %v1822 = vmul.f32 %v1820, %v1821
  %v1823 = vsub.f32 1.0, %v1822
  %v1824 = vmul.f32 %v1821, %v1823
  %v1825 = vadd.f32 %v1821, %v1824
  %vm1826 = vweird.f32 %v1820
  %vm1827 = vweird.f32 %v1821
  %vm1828 = vmor %vm1826, %vm1827
  %v1829 = vsel %vm1828, %v1821, %v1825
  %v1830 = vand.u32 2147483647, %v1820
  %vm1831 = vcmp.eq.f32.partialorder %v1830, 8.507059e+37
  %v1832 = vand.u32 %v1820, 2147483648
  %v1833 = vor.u32 1.1754944e-38, %v1832
  %v1834 = vsel %vm1831, %v1833, %v1829
  %v1835 = vmul.f32 1.0, %v1834
  %v1836 = vtanh.pop %v1796
  %v1837 = vmul.f32 %v1815, %v1709
  %1839 = vrot.lane.b32.xlu0 %v1816, 64
  %v1840 = vpop.permute.xlu0 %1839
  %v1842 = vmul.f32 %v1815, %v1840
  %1844 = vrot.lane.b32.xlu0 %v1842, 32
  %v1845 = vpop.permute.xlu0 %1844
  %v1847 = vadd.f32 %v1837, %v1845
  %v1848 = vmul.f32 %v1835, %v1720
  %1850 = vrot.lane.b32.xlu0 %v1836, 64
  %v1851 = vpop.permute.xlu0 %1850
  %v1853 = vmul.f32 %v1835, %v1851
  %1855 = vrot.lane.b32.xlu0 %v1853, 32
  %v1856 = vpop.permute.xlu0 %1855
  %v1858 = vadd.f32 %v1848, %v1856
  %v1859 = vtanh.pop %v1847
  %1861 = vrot.lane.b32.xlu0 %v1859, 64
  %v1862 = vpop.permute.xlu0 %1861
  %v1864 = vmul.f32 %v1815, %v1862
  %v1865 = vtanh.pop %v1858
  %1867 = vrot.lane.b32.xlu0 %v1865, 64
  %v1868 = vpop.permute.xlu0 %1867
  %v1870 = vmul.f32 %v1835, %v1868
  %1872 = vrot.lane.b32.xlu0 %v1864, 32
  %v1873 = vpop.permute.xlu0 %1872
  %1876 = vrot.lane.b32.xlu0 %v1870, 64
  %v1877 = vpop.permute.xlu0 %1876
  %v1879 = vsel %vm1184, %v1873, %v1877
  %v1880 = vrot.slane %v1283, 4
  %v1882 = vrot.slane %v1286, 3
  %v1884 = vsel %vm1330, %v1880, %v1882
  %v1885 = vrot.slane %v1306, 3
  %v1887 = vrot.slane %v1309, 2
  %v1889 = vsel %vm1330, %v1885, %v1887
  %v1891 = vsel %vm64, %v1879, 0
  %1893 = vmatpush.msra.mxu0 0.0
  %1894 = vmatpush.msra.mxu0 0.0
  %1895 = vmatpush.msra.mxu0 0.0
  %1896 = vmatpush.msra.mxu0 0.0
  %1897 = vmatpush.msra.mxu0 0.0
  %1898 = vmatpush.msra.mxu0 0.0
  %1899 = vmatpush.msra.mxu0 0.0
  %1900 = vmatpush.msra.mxu0 0.0
  %1901 = vmatpush.msra.mxu0 %v1325
  %1902 = vmatpush.msra.mxu0 %v1323
  %1903 = vmatpush.msra.mxu0 %v1321
  %1904 = vmatpush.msra.mxu0 %v1319
  %1905 = vmatpush.msra.mxu0 %v1317
  %1906 = vmatpush.msra.mxu0 %v1315
  %1907 = vmatpush.msra.mxu0 %v1313
  %1908 = vmatpush.msra.mxu0 %v1311
  %1909 = vmatmul.f32.gmra.mxu0 %v1891
  %v1910 = vpop.f32.mrf.mxu0
  %v1911 = vadd.f32 0.0, %v1910
  %1912 = vdwg.mxu0
  %1913 = vmatpush.msra.mxu0 0.0
  %1914 = vmatpush.msra.mxu0 0.0
  %1915 = vmatpush.msra.mxu0 0.0
  %1916 = vmatpush.msra.mxu0 0.0
  %1917 = vmatpush.msra.mxu0 0.0
  %1918 = vmatpush.msra.mxu0 0.0
  %1919 = vmatpush.msra.mxu0 0.0
  %1920 = vmatpush.msra.mxu0 0.0
  %1921 = vmatpush.msra.mxu0 %v1326
  %1922 = vmatpush.msra.mxu0 %v1324
  %1923 = vmatpush.msra.mxu0 %v1322
  %1924 = vmatpush.msra.mxu0 %v1320
  %1925 = vmatpush.msra.mxu0 %v1318
  %1926 = vmatpush.msra.mxu0 %v1316
  %1927 = vmatpush.msra.mxu0 %v1314
  %1928 = vmatpush.msra.mxu0 %v1312
  %1929 = vmatmul.f32.gmra.mxu0 %v1891
  %v1930 = vpop.f32.mrf.mxu0
  %v1931 = vadd.f32 0.0, %v1930
  %1932 = vdwg.mxu0
  %v1933 = vadd.f32 %v1884, %v1911
  %v1934 = vadd.f32 %v1889, %v1931
  %v1935 = vxor.u32 %v1933, 2147483648
  %v1936 = vmul.f32 %v1935, 1.442695
  %v1937 = vpow.pop %v1936
  %v1938 = vadd.f32 %v1937, 1.0
  %v1939 = vrcp.pop %v1938
  %v1940 = vmul.f32 %v1938, %v1939
  %v1941 = vsub.f32 1.0, %v1940
  %v1942 = vmul.f32 %v1939, %v1941
  %v1943 = vadd.f32 %v1939, %v1942
  %vm1944 = vweird.f32 %v1938
  %vm1945 = vweird.f32 %v1939
  %vm1946 = vmor %vm1944, %vm1945
  %v1947 = vsel %vm1946, %v1939, %v1943
  %v1948 = vand.u32 2147483647, %v1938
  %vm1949 = vcmp.eq.f32.partialorder %v1948, 8.507059e+37
  %v1950 = vand.u32 %v1938, 2147483648
  %v1951 = vor.u32 1.1754944e-38, %v1950
  %v1952 = vsel %vm1949, %v1951, %v1947
  %v1953 = vmul.f32 1.0, %v1952
  %v1954 = vtanh.pop %v1933
  %v1955 = vxor.u32 %v1934, 2147483648
  %v1956 = vmul.f32 %v1955, 1.442695
  %v1957 = vpow.pop %v1956
  %v1958 = vadd.f32 %v1957, 1.0
  %v1959 = vrcp.pop %v1958
  %v1960 = vmul.f32 %v1958, %v1959
  %v1961 = vsub.f32 1.0, %v1960
  %v1962 = vmul.f32 %v1959, %v1961
  %v1963 = vadd.f32 %v1959, %v1962
  %vm1964 = vweird.f32 %v1958
  %vm1965 = vweird.f32 %v1959
  %vm1966 = vmor %vm1964, %vm1965
  %v1967 = vsel %vm1966, %v1959, %v1963
  %v1968 = vand.u32 2147483647, %v1958
  %vm1969 = vcmp.eq.f32.partialorder %v1968, 8.507059e+37
  %v1970 = vand.u32 %v1958, 2147483648
  %v1971 = vor.u32 1.1754944e-38, %v1970
  %v1972 = vsel %vm1969, %v1971, %v1967
  %v1973 = vmul.f32 1.0, %v1972
  %v1974 = vtanh.pop %v1934
  %v1975 = vmul.f32 %v1953, %v1847
  %1977 = vrot.lane.b32.xlu0 %v1954, 64
  %v1978 = vpop.permute.xlu0 %1977
  %v1980 = vmul.f32 %v1953, %v1978
  %1982 = vrot.lane.b32.xlu0 %v1980, 32
  %v1983 = vpop.permute.xlu0 %1982
  %v1985 = vadd.f32 %v1975, %v1983
  %v1986 = vmul.f32 %v1973, %v1858
  %1988 = vrot.lane.b32.xlu0 %v1974, 64
  %v1989 = vpop.permute.xlu0 %1988
  %v1991 = vmul.f32 %v1973, %v1989
  %1993 = vrot.lane.b32.xlu0 %v1991, 32
  %v1994 = vpop.permute.xlu0 %1993
  %v1996 = vadd.f32 %v1986, %v1994
  %v1997 = vtanh.pop %v1985
  %1999 = vrot.lane.b32.xlu0 %v1997, 64
  %v2000 = vpop.permute.xlu0 %1999
  %v2002 = vmul.f32 %v1953, %v2000
  %v2003 = vtanh.pop %v1996
  %2005 = vrot.lane.b32.xlu0 %v2003, 64
  %v2006 = vpop.permute.xlu0 %2005
  %v2008 = vmul.f32 %v1973, %v2006
  %2010 = vrot.lane.b32.xlu0 %v2002, 32
  %v2011 = vpop.permute.xlu0 %2010
  %2014 = vrot.lane.b32.xlu0 %v2008, 64
  %v2015 = vpop.permute.xlu0 %2014
  %v2017 = vsel %vm1184, %v2011, %v2015
  %v2018 = vrot.slane %v1283, 5
  %v2020 = vrot.slane %v1286, 4
  %v2022 = vsel %vm1330, %v2018, %v2020
  %v2023 = vrot.slane %v1306, 2
  %v2025 = vrot.slane %v1309, 1
  %v2027 = vsel %vm1330, %v2023, %v2025
  %v2029 = vsel %vm64, %v2017, 0
  %2031 = vmatpush.msra.mxu0 0.0
  %2032 = vmatpush.msra.mxu0 0.0
  %2033 = vmatpush.msra.mxu0 0.0
  %2034 = vmatpush.msra.mxu0 0.0
  %2035 = vmatpush.msra.mxu0 0.0
  %2036 = vmatpush.msra.mxu0 0.0
  %2037 = vmatpush.msra.mxu0 0.0
  %2038 = vmatpush.msra.mxu0 0.0
  %2039 = vmatpush.msra.mxu0 %v1325
  %2040 = vmatpush.msra.mxu0 %v1323
  %2041 = vmatpush.msra.mxu0 %v1321
  %2042 = vmatpush.msra.mxu0 %v1319
  %2043 = vmatpush.msra.mxu0 %v1317
  %2044 = vmatpush.msra.mxu0 %v1315
  %2045 = vmatpush.msra.mxu0 %v1313
  %2046 = vmatpush.msra.mxu0 %v1311
  %2047 = vmatmul.f32.gmra.mxu0 %v2029
  %v2048 = vpop.f32.mrf.mxu0
  %v2049 = vadd.f32 0.0, %v2048
  %2050 = vdwg.mxu0
  %2051 = vmatpush.msra.mxu0 0.0
  %2052 = vmatpush.msra.mxu0 0.0
  %2053 = vmatpush.msra.mxu0 0.0
  %2054 = vmatpush.msra.mxu0 0.0
  %2055 = vmatpush.msra.mxu0 0.0
  %2056 = vmatpush.msra.mxu0 0.0
  %2057 = vmatpush.msra.mxu0 0.0
  %2058 = vmatpush.msra.mxu0 0.0
  %2059 = vmatpush.msra.mxu0 %v1326
  %2060 = vmatpush.msra.mxu0 %v1324
  %2061 = vmatpush.msra.mxu0 %v1322
  %2062 = vmatpush.msra.mxu0 %v1320
  %2063 = vmatpush.msra.mxu0 %v1318
  %2064 = vmatpush.msra.mxu0 %v1316
  %2065 = vmatpush.msra.mxu0 %v1314
  %2066 = vmatpush.msra.mxu0 %v1312
  %2067 = vmatmul.f32.gmra.mxu0 %v2029
  %v2068 = vpop.f32.mrf.mxu0
  %v2069 = vadd.f32 0.0, %v2068
  %2070 = vdwg.mxu0
  %v2071 = vadd.f32 %v2022, %v2049
  %v2072 = vadd.f32 %v2027, %v2069
  %v2073 = vxor.u32 %v2071, 2147483648
  %v2074 = vmul.f32 %v2073, 1.442695
  %v2075 = vpow.pop %v2074
  %v2076 = vadd.f32 %v2075, 1.0
  %v2077 = vrcp.pop %v2076
  %v2078 = vmul.f32 %v2076, %v2077
  %v2079 = vsub.f32 1.0, %v2078
  %v2080 = vmul.f32 %v2077, %v2079
  %v2081 = vadd.f32 %v2077, %v2080
  %vm2082 = vweird.f32 %v2076
  %vm2083 = vweird.f32 %v2077
  %vm2084 = vmor %vm2082, %vm2083
  %v2085 = vsel %vm2084, %v2077, %v2081
  %v2086 = vand.u32 2147483647, %v2076
  %vm2087 = vcmp.eq.f32.partialorder %v2086, 8.507059e+37
  %v2088 = vand.u32 %v2076, 2147483648
  %v2089 = vor.u32 1.1754944e-38, %v2088
  %v2090 = vsel %vm2087, %v2089, %v2085
  %v2091 = vmul.f32 1.0, %v2090
  %v2092 = vtanh.pop %v2071
  %v2093 = vxor.u32 %v2072, 2147483648
  %v2094 = vmul.f32 %v2093, 1.442695
  %v2095 = vpow.pop %v2094
  %v2096 = vadd.f32 %v2095, 1.0
  %v2097 = vrcp.pop %v2096
  %v2098 = vmul.f32 %v2096, %v2097
  %v2099 = vsub.f32 1.0, %v2098
  %v2100 = vmul.f32 %v2097, %v2099
  %v2101 = vadd.f32 %v2097, %v2100
  %vm2102 = vweird.f32 %v2096
  %vm2103 = vweird.f32 %v2097
  %vm2104 = vmor %vm2102, %vm2103
  %v2105 = vsel %vm2104, %v2097, %v2101
  %v2106 = vand.u32 2147483647, %v2096
  %vm2107 = vcmp.eq.f32.partialorder %v2106, 8.507059e+37
  %v2108 = vand.u32 %v2096, 2147483648
  %v2109 = vor.u32 1.1754944e-38, %v2108
  %v2110 = vsel %vm2107, %v2109, %v2105
  %v2111 = vmul.f32 1.0, %v2110
  %v2112 = vtanh.pop %v2072
  %v2113 = vmul.f32 %v2091, %v1985
  %2115 = vrot.lane.b32.xlu0 %v2092, 64
  %v2116 = vpop.permute.xlu0 %2115
  %v2118 = vmul.f32 %v2091, %v2116
  %2120 = vrot.lane.b32.xlu0 %v2118, 32
  %v2121 = vpop.permute.xlu0 %2120
  %v2123 = vadd.f32 %v2113, %v2121
  %v2124 = vmul.f32 %v2111, %v1996
  %2126 = vrot.lane.b32.xlu0 %v2112, 64
  %v2127 = vpop.permute.xlu0 %2126
  %v2129 = vmul.f32 %v2111, %v2127
  %2131 = vrot.lane.b32.xlu0 %v2129, 32
  %v2132 = vpop.permute.xlu0 %2131
  %v2134 = vadd.f32 %v2124, %v2132
  %v2135 = vtanh.pop %v2123
  %2137 = vrot.lane.b32.xlu0 %v2135, 64
  %v2138 = vpop.permute.xlu0 %2137
  %v2140 = vmul.f32 %v2091, %v2138
  %v2141 = vtanh.pop %v2134
  %2143 = vrot.lane.b32.xlu0 %v2141, 64
  %v2144 = vpop.permute.xlu0 %2143
  %v2146 = vmul.f32 %v2111, %v2144
  %2148 = vrot.lane.b32.xlu0 %v2140, 32
  %v2149 = vpop.permute.xlu0 %2148
  %2152 = vrot.lane.b32.xlu0 %v2146, 64
  %v2153 = vpop.permute.xlu0 %2152
  %v2155 = vsel %vm1184, %v2149, %v2153
  %v2156 = vrot.slane %v1283, 6
  %v2158 = vrot.slane %v1286, 5
  %v2160 = vsel %vm1330, %v2156, %v2158
  %v2161 = vrot.slane %v1306, 1
  %v2163 = vsel %vm1330, %v2161, %v1309
  %v2165 = vsel %vm64, %v2155, 0
  %2167 = vmatpush.msra.mxu0 0.0
  %2168 = vmatpush.msra.mxu0 0.0
  %2169 = vmatpush.msra.mxu0 0.0
  %2170 = vmatpush.msra.mxu0 0.0
  %2171 = vmatpush.msra.mxu0 0.0
  %2172 = vmatpush.msra.mxu0 0.0
  %2173 = vmatpush.msra.mxu0 0.0
  %2174 = vmatpush.msra.mxu0 0.0
  %2175 = vmatpush.msra.mxu0 %v1325
  %2176 = vmatpush.msra.mxu0 %v1323
  %2177 = vmatpush.msra.mxu0 %v1321
  %2178 = vmatpush.msra.mxu0 %v1319
  %2179 = vmatpush.msra.mxu0 %v1317
  %2180 = vmatpush.msra.mxu0 %v1315
  %2181 = vmatpush.msra.mxu0 %v1313
  %2182 = vmatpush.msra.mxu0 %v1311
  %2183 = vmatmul.f32.gmra.mxu0 %v2165
  %v2184 = vpop.f32.mrf.mxu0
  %v2185 = vadd.f32 0.0, %v2184
  %2186 = vdwg.mxu0
  %2187 = vmatpush.msra.mxu0 0.0
  %2188 = vmatpush.msra.mxu0 0.0
  %2189 = vmatpush.msra.mxu0 0.0
  %2190 = vmatpush.msra.mxu0 0.0
  %2191 = vmatpush.msra.mxu0 0.0
  %2192 = vmatpush.msra.mxu0 0.0
  %2193 = vmatpush.msra.mxu0 0.0
  %2194 = vmatpush.msra.mxu0 0.0
  %2195 = vmatpush.msra.mxu0 %v1326
  %2196 = vmatpush.msra.mxu0 %v1324
  %2197 = vmatpush.msra.mxu0 %v1322
  %2198 = vmatpush.msra.mxu0 %v1320
  %2199 = vmatpush.msra.mxu0 %v1318
  %2200 = vmatpush.msra.mxu0 %v1316
  %2201 = vmatpush.msra.mxu0 %v1314
  %2202 = vmatpush.msra.mxu0 %v1312
  %2203 = vmatmul.f32.gmra.mxu0 %v2165
  %v2204 = vpop.f32.mrf.mxu0
  %v2205 = vadd.f32 0.0, %v2204
  %2206 = vdwg.mxu0
  %v2207 = vadd.f32 %v2160, %v2185
  %v2208 = vadd.f32 %v2163, %v2205
  %v2209 = vxor.u32 %v2207, 2147483648
  %v2210 = vmul.f32 %v2209, 1.442695
  %v2211 = vpow.pop %v2210
  %v2212 = vadd.f32 %v2211, 1.0
  %v2213 = vrcp.pop %v2212
  %v2214 = vmul.f32 %v2212, %v2213
  %v2215 = vsub.f32 1.0, %v2214
  %v2216 = vmul.f32 %v2213, %v2215
  %v2217 = vadd.f32 %v2213, %v2216
  %vm2218 = vweird.f32 %v2212
  %vm2219 = vweird.f32 %v2213
  %vm2220 = vmor %vm2218, %vm2219
  %v2221 = vsel %vm2220, %v2213, %v2217
  %v2222 = vand.u32 2147483647, %v2212
  %vm2223 = vcmp.eq.f32.partialorder %v2222, 8.507059e+37
  %v2224 = vand.u32 %v2212, 2147483648
  %v2225 = vor.u32 1.1754944e-38, %v2224
  %v2226 = vsel %vm2223, %v2225, %v2221
  %v2227 = vmul.f32 1.0, %v2226
  %v2228 = vtanh.pop %v2207
  %v2229 = vxor.u32 %v2208, 2147483648
  %v2230 = vmul.f32 %v2229, 1.442695
  %v2231 = vpow.pop %v2230
  %v2232 = vadd.f32 %v2231, 1.0
  %v2233 = vrcp.pop %v2232
  %v2234 = vmul.f32 %v2232, %v2233
  %v2235 = vsub.f32 1.0, %v2234
  %v2236 = vmul.f32 %v2233, %v2235
  %v2237 = vadd.f32 %v2233, %v2236
  %vm2238 = vweird.f32 %v2232
  %vm2239 = vweird.f32 %v2233
  %vm2240 = vmor %vm2238, %vm2239
  %v2241 = vsel %vm2240, %v2233, %v2237
  %v2242 = vand.u32 2147483647, %v2232
  %vm2243 = vcmp.eq.f32.partialorder %v2242, 8.507059e+37
  %v2244 = vand.u32 %v2232, 2147483648
  %v2245 = vor.u32 1.1754944e-38, %v2244
  %v2246 = vsel %vm2243, %v2245, %v2241
  %v2247 = vmul.f32 1.0, %v2246
  %v2248 = vtanh.pop %v2208
  %v2249 = vmul.f32 %v2227, %v2123
  %2251 = vrot.lane.b32.xlu0 %v2228, 64
  %v2252 = vpop.permute.xlu0 %2251
  %v2254 = vmul.f32 %v2227, %v2252
  %2256 = vrot.lane.b32.xlu0 %v2254, 32
  %v2257 = vpop.permute.xlu0 %2256
  %v2259 = vadd.f32 %v2249, %v2257
  %v2260 = vmul.f32 %v2247, %v2134
  %2262 = vrot.lane.b32.xlu0 %v2248, 64
  %v2263 = vpop.permute.xlu0 %2262
  %v2265 = vmul.f32 %v2247, %v2263
  %2267 = vrot.lane.b32.xlu0 %v2265, 32
  %v2268 = vpop.permute.xlu0 %2267
  %v2270 = vadd.f32 %v2260, %v2268
  %v2271 = vtanh.pop %v2259
  %2273 = vrot.lane.b32.xlu0 %v2271, 64
  %v2274 = vpop.permute.xlu0 %2273
  %v2276 = vmul.f32 %v2227, %v2274
  %v2277 = vtanh.pop %v2270
  %2279 = vrot.lane.b32.xlu0 %v2277, 64
  %v2280 = vpop.permute.xlu0 %2279
  %v2282 = vmul.f32 %v2247, %v2280
  %2284 = vrot.lane.b32.xlu0 %v2276, 32
  %v2285 = vpop.permute.xlu0 %2284
  %2288 = vrot.lane.b32.xlu0 %v2282, 64
  %v2289 = vpop.permute.xlu0 %2288
  %v2291 = vsel %vm1184, %v2285, %v2289
  %v2292 = vrot.slane %v1283, 7
  %v2294 = vrot.slane %v1286, 6
  %v2296 = vsel %vm1330, %v2292, %v2294
  %v2297 = vrot.slane %v1309, 7
  %v2299 = vsel %vm1330, %v1306, %v2297
  %v2301 = vsel %vm64, %v2291, 0
  %2303 = vmatpush.msra.mxu0 0.0
  %2304 = vmatpush.msra.mxu0 0.0
  %2305 = vmatpush.msra.mxu0 0.0
  %2306 = vmatpush.msra.mxu0 0.0
  %2307 = vmatpush.msra.mxu0 0.0
  %2308 = vmatpush.msra.mxu0 0.0
  %2309 = vmatpush.msra.mxu0 0.0
  %2310 = vmatpush.msra.mxu0 0.0
  %2311 = vmatpush.msra.mxu0 %v1325
  %2312 = vmatpush.msra.mxu0 %v1323
  %2313 = vmatpush.msra.mxu0 %v1321
  %2314 = vmatpush.msra.mxu0 %v1319
  %2315 = vmatpush.msra.mxu0 %v1317
  %2316 = vmatpush.msra.mxu0 %v1315
  %2317 = vmatpush.msra.mxu0 %v1313
  %2318 = vmatpush.msra.mxu0 %v1311
  %2319 = vmatmul.f32.gmra.mxu0 %v2301
  %v2320 = vpop.f32.mrf.mxu0
  %v2321 = vadd.f32 0.0, %v2320
  %2322 = vdwg.mxu0
  %2323 = vmatpush.msra.mxu0 0.0
  %2324 = vmatpush.msra.mxu0 0.0
  %2325 = vmatpush.msra.mxu0 0.0
  %2326 = vmatpush.msra.mxu0 0.0
  %2327 = vmatpush.msra.mxu0 0.0
  %2328 = vmatpush.msra.mxu0 0.0
  %2329 = vmatpush.msra.mxu0 0.0
  %2330 = vmatpush.msra.mxu0 0.0
  %2331 = vmatpush.msra.mxu0 %v1326
  %2332 = vmatpush.msra.mxu0 %v1324
  %2333 = vmatpush.msra.mxu0 %v1322
  %2334 = vmatpush.msra.mxu0 %v1320
  %2335 = vmatpush.msra.mxu0 %v1318
  %2336 = vmatpush.msra.mxu0 %v1316
  %2337 = vmatpush.msra.mxu0 %v1314
  %2338 = vmatpush.msra.mxu0 %v1312
  %2339 = vmatmul.f32.gmra.mxu0 %v2301
  %v2340 = vpop.f32.mrf.mxu0
  %v2341 = vadd.f32 0.0, %v2340
  %2342 = vdwg.mxu0
  %v2343 = vadd.f32 %v2296, %v2321
  %v2344 = vadd.f32 %v2299, %v2341
  %v2345 = vxor.u32 %v2343, 2147483648
  %v2346 = vmul.f32 %v2345, 1.442695
  %v2347 = vpow.pop %v2346
  %v2348 = vadd.f32 %v2347, 1.0
  %v2349 = vrcp.pop %v2348
  %v2350 = vmul.f32 %v2348, %v2349
  %v2351 = vsub.f32 1.0, %v2350
  %v2352 = vmul.f32 %v2349, %v2351
  %v2353 = vadd.f32 %v2349, %v2352
  %vm2354 = vweird.f32 %v2348
  %vm2355 = vweird.f32 %v2349
  %vm2356 = vmor %vm2354, %vm2355
  %v2357 = vsel %vm2356, %v2349, %v2353
  %v2358 = vand.u32 2147483647, %v2348
  %vm2359 = vcmp.eq.f32.partialorder %v2358, 8.507059e+37
  %v2360 = vand.u32 %v2348, 2147483648
  %v2361 = vor.u32 1.1754944e-38, %v2360
  %v2362 = vsel %vm2359, %v2361, %v2357
  %v2363 = vmul.f32 1.0, %v2362
  %v2364 = vtanh.pop %v2343
  %v2365 = vxor.u32 %v2344, 2147483648
  %v2366 = vmul.f32 %v2365, 1.442695
  %v2367 = vpow.pop %v2366
  %v2368 = vadd.f32 %v2367, 1.0
  %v2369 = vrcp.pop %v2368
  %v2370 = vmul.f32 %v2368, %v2369
  %v2371 = vsub.f32 1.0, %v2370
  %v2372 = vmul.f32 %v2369, %v2371
  %v2373 = vadd.f32 %v2369, %v2372
  %vm2374 = vweird.f32 %v2368
  %vm2375 = vweird.f32 %v2369
  %vm2376 = vmor %vm2374, %vm2375
  %v2377 = vsel %vm2376, %v2369, %v2373
  %v2378 = vand.u32 2147483647, %v2368
  %vm2379 = vcmp.eq.f32.partialorder %v2378, 8.507059e+37
  %v2380 = vand.u32 %v2368, 2147483648
  %v2381 = vor.u32 1.1754944e-38, %v2380
  %v2382 = vsel %vm2379, %v2381, %v2377
  %v2383 = vmul.f32 1.0, %v2382
  %v2384 = vtanh.pop %v2344
  %v2385 = vmul.f32 %v2363, %v2259
  %2387 = vrot.lane.b32.xlu0 %v2364, 64
  %v2388 = vpop.permute.xlu0 %2387
  %v2390 = vmul.f32 %v2363, %v2388
  %2392 = vrot.lane.b32.xlu0 %v2390, 32
  %v2393 = vpop.permute.xlu0 %2392
  %v2395 = vadd.f32 %v2385, %v2393
  %v2396 = vmul.f32 %v2383, %v2270
  %2398 = vrot.lane.b32.xlu0 %v2384, 64
  %v2399 = vpop.permute.xlu0 %2398
  %v2401 = vmul.f32 %v2383, %v2399
  %2403 = vrot.lane.b32.xlu0 %v2401, 32
  %v2404 = vpop.permute.xlu0 %2403
  %v2406 = vadd.f32 %v2396, %v2404
  %v2407 = vtanh.pop %v2395
  %2409 = vrot.lane.b32.xlu0 %v2407, 64
  %v2410 = vpop.permute.xlu0 %2409
  %v2412 = vmul.f32 %v2363, %v2410
  %v2413 = vtanh.pop %v2406
  %2415 = vrot.lane.b32.xlu0 %v2413, 64
  %v2416 = vpop.permute.xlu0 %2415
  %v2418 = vmul.f32 %v2383, %v2416
  %2420 = vrot.lane.b32.xlu0 %v2418, 64
  %v2421 = vpop.permute.xlu0 %2420
  %v2423 = vsel %vm1184, %v1460, %v2421
  %v2424 = vsel %vm1184, %v1597, %v2289
  %v2425 = vsel %vm1184, %v1735, %v2153
  %v2426 = vsel %vm1184, %v1873, %v2015
  %v2427 = vsel %vm1184, %v2011, %v1877
  %v2428 = vsel %vm1184, %v2149, %v1739
  %v2429 = vsel %vm1184, %v2285, %v1601
  %2431 = vrot.lane.b32.xlu0 %v2412, 32
  %v2432 = vpop.permute.xlu0 %2431
  %v2434 = vsel %vm1184, %v2432, %v1464
  %v2436 = vrot.slane %v2424, 7
  %v2439 = vrot.slane %v2425, 6
  %v2442 = vrot.slane %v2426, 5
  %v2445 = vrot.slane %v2427, 4
  %v2448 = vrot.slane %v2428, 3
  %v2451 = vrot.slane %v2429, 2
  %v2454 = vrot.slane %v2434, 1
  %v2457 = vrot.slane %v2423, 1
  %v2459 = vrot.slane %v2425, 7
  %v2461 = vrot.slane %v2426, 6
  %v2463 = vrot.slane %v2427, 5
  %v2465 = vrot.slane %v2428, 4
  %v2467 = vrot.slane %v2429, 3
  %v2469 = vrot.slane %v2434, 2
  %v2471 = vsel %vm1330, %v2423, %v2436
  %vm2472 = vcmask 1041408
  %v2473 = vsel %vm2472, %v2471, %v2439
  %vm2474 = vcmask 1042432
  %v2475 = vsel %vm2474, %v2473, %v2442
  %vm2476 = vcmask 1043456
  %v2477 = vsel %vm2476, %v2475, %v2445
  %vm2478 = vcmask 1044480
  %v2479 = vsel %vm2478, %v2477, %v2448
  %vm2480 = vcmask 1045504
  %v2481 = vsel %vm2480, %v2479, %v2451
  %vm2482 = vcmask 1046528
  %v2483 = vsel %vm2482, %v2481, %v2454
  %v2484 = vsel %vm1330, %v2457, %v2424
  %v2485 = vsel %vm2472, %v2484, %v2459
  %v2486 = vsel %vm2474, %v2485, %v2461
  %v2487 = vsel %vm2476, %v2486, %v2463
  %v2488 = vsel %vm2478, %v2487, %v2465
  %v2489 = vsel %vm2480, %v2488, %v2467
  %v2490 = vsel %vm2482, %v2489, %v2469
  %v2491 = vld [vmem:[%s8] sm:$0xff]
  %v2492 = vld [vmem:[%s8 + $0x8] sm:$0xff]
  %v2493 = vld [vmem:[%s8 + $0x10] sm:$0xff]
  %v2494 = vld [vmem:[%s8 + $0x18] sm:$0xff]
  %v2495 = vld [vmem:[%s8 + $0x20] sm:$0xff]
  %v2496 = vld [vmem:[%s8 + $0x28] sm:$0xff]
  %v2497 = vld [vmem:[%s8 + $0x30] sm:$0xff]
  %v2498 = vld [vmem:[%s8 + $0x38] sm:$0xff]
  %v2499 = vld [vmem:[%s8 + $0x40] sm:$0xff]
  %v2500 = vld [vmem:[%s8 + $0x48] sm:$0xff]
  %v2501 = vld [vmem:[%s8 + $0x50] sm:$0xff]
  %v2502 = vld [vmem:[%s8 + $0x58] sm:$0xff]
  %v2503 = vld [vmem:[%s8 + $0x60] sm:$0xff]
  %v2504 = vld [vmem:[%s8 + $0x68] sm:$0xff]
  %v2505 = vld [vmem:[%s8 + $0x70] sm:$0xff]
  %v2506 = vld [vmem:[%s8 + $0x78] sm:$0xff]
  %v2507 = vld [vmem:[%s8 + $0x80] sm:$0xff]
  %v2508 = vld [vmem:[%s8 + $0x88] sm:$0xff]
  %v2509 = vld [vmem:[%s8 + $0x90] sm:$0xff]
  %v2510 = vld [vmem:[%s8 + $0x98] sm:$0xff]
  %v2511 = vld [vmem:[%s8 + $0xa0] sm:$0xff]
  %v2512 = vld [vmem:[%s8 + $0xa8] sm:$0xff]
  %v2513 = vld [vmem:[%s8 + $0xb0] sm:$0xff]
  %v2514 = vld [vmem:[%s8 + $0xb8] sm:$0xff]
  %v2515 = vld [vmem:[%s9] sm:$0x7]
  %v2517 = vperm.slane %v2515, 0
  %v2518 = vperm.slane %v2515, 1
  %v2519 = vperm.slane %v2515, 2
  %v2524 = vsel %vm64, %v2483, 0
  %v2527 = vsel %vm64, %v2490, 0
  %2529 = vmatpush.msra.mxu0 0.0
  %2530 = vmatpush.msra.mxu0 0.0
  %2531 = vmatpush.msra.mxu0 0.0
  %2532 = vmatpush.msra.mxu0 0.0
  %2533 = vmatpush.msra.mxu0 0.0
  %2534 = vmatpush.msra.mxu0 0.0
  %2535 = vmatpush.msra.mxu0 0.0
  %2536 = vmatpush.msra.mxu0 0.0
  %2537 = vmatpush.msra.mxu0 %v2512
  %2538 = vmatpush.msra.mxu0 %v2509
  %2539 = vmatpush.msra.mxu0 %v2506
  %2540 = vmatpush.msra.mxu0 %v2503
  %2541 = vmatpush.msra.mxu0 %v2500
  %2542 = vmatpush.msra.mxu0 %v2497
  %2543 = vmatpush.msra.mxu0 %v2494
  %2544 = vmatpush.msra.mxu0 %v2491
  %2545 = vmatmul.f32.gmra.mxu0 %v2524
  %v2546 = vpop.f32.mrf.mxu0
  %v2547 = vadd.f32 %v2517, %v2546
  %2548 = vmatmul.f32.gmra.mxu0 %v2527
  %v2549 = vpop.f32.mrf.mxu0
  %v2550 = vadd.f32 %v2517, %v2549
  %2551 = vdwg.mxu0
  %2552 = vmatpush.msra.mxu0 0.0
  %2553 = vmatpush.msra.mxu0 0.0
  %2554 = vmatpush.msra.mxu0 0.0
  %2555 = vmatpush.msra.mxu0 0.0
  %2556 = vmatpush.msra.mxu0 0.0
  %2557 = vmatpush.msra.mxu0 0.0
  %2558 = vmatpush.msra.mxu0 0.0
  %2559 = vmatpush.msra.mxu0 0.0
  %2560 = vmatpush.msra.mxu0 %v2513
  %2561 = vmatpush.msra.mxu0 %v2510
  %2562 = vmatpush.msra.mxu0 %v2507
  %2563 = vmatpush.msra.mxu0 %v2504
  %2564 = vmatpush.msra.mxu0 %v2501
  %2565 = vmatpush.msra.mxu0 %v2498
  %2566 = vmatpush.msra.mxu0 %v2495
  %2567 = vmatpush.msra.mxu0 %v2492
  %2568 = vmatmul.f32.gmra.mxu0 %v2524
  %v2569 = vpop.f32.mrf.mxu0
  %v2570 = vadd.f32 %v2518, %v2569
  %2571 = vmatmul.f32.gmra.mxu0 %v2527
  %v2572 = vpop.f32.mrf.mxu0
  %v2573 = vadd.f32 %v2518, %v2572
  %2574 = vdwg.mxu0
  %2575 = vmatpush.msra.mxu0 0.0
  %2576 = vmatpush.msra.mxu0 0.0
  %2577 = vmatpush.msra.mxu0 0.0
  %2578 = vmatpush.msra.mxu0 0.0
  %2579 = vmatpush.msra.mxu0 0.0
  %2580 = vmatpush.msra.mxu0 0.0
  %2581 = vmatpush.msra.mxu0 0.0
  %2582 = vmatpush.msra.mxu0 0.0
  %2583 = vmatpush.msra.mxu0 %v2514
  %2584 = vmatpush.msra.mxu0 %v2511
  %2585 = vmatpush.msra.mxu0 %v2508
  %2586 = vmatpush.msra.mxu0 %v2505
  %2587 = vmatpush.msra.mxu0 %v2502
  %2588 = vmatpush.msra.mxu0 %v2499
  %2589 = vmatpush.msra.mxu0 %v2496
  %2590 = vmatpush.msra.mxu0 %v2493
  %2591 = vmatmul.f32.gmra.mxu0 %v2524
  %v2592 = vpop.f32.mrf.mxu0
  %v2593 = vadd.f32 %v2519, %v2592
  %2594 = vmatmul.f32.gmra.mxu0 %v2527
  %v2595 = vpop.f32.mrf.mxu0
  %v2596 = vadd.f32 %v2519, %v2595
  %2597 = vdwg.mxu0
  %v2598 = vld [vmem:[%s10] sm:$0xff]
  %v2599 = vld [vmem:[%s10 + $0x8] sm:$0xff]
  %v2600 = vld [vmem:[%s10 + $0x10] sm:$0xff]
  %v2601 = vld [vmem:[%s10 + $0x18] sm:$0xff]
  %v2602 = vld [vmem:[%s10 + $0x20] sm:$0xff]
  %v2603 = vld [vmem:[%s10 + $0x28] sm:$0xff]
  %v2604 = vmul.f32 %v2547, %v2598
  %v2605 = vmul.f32 %v2570, %v2599
  %v2606 = vmul.f32 %v2593, %v2600
  %v2607 = vmul.f32 %v2550, %v2601
  %v2608 = vmul.f32 %v2573, %v2602
  %v2609 = vmul.f32 %v2596, %v2603
  %v2610 = vld [vmem:[%s12] sm:$0xff]
  %v2611 = vld [vmem:[%s12 + $0x8] sm:$0xff]
  %v2612 = vld [vmem:[%s12 + $0x10] sm:$0xff]
  %v2613 = vld [vmem:[%s12 + $0x18] sm:$0xff]
  %v2614 = vld [vmem:[%s12 + $0x20] sm:$0xff]
  %v2615 = vld [vmem:[%s12 + $0x28] sm:$0xff]
  %v2616 = vld [vmem:[%s12 + $0x30] sm:$0xff]
  %v2617 = vld [vmem:[%s12 + $0x38] sm:$0xff]
  %v2618 = vld [vmem:[%s12 + $0x40] sm:$0xff]
  %v2619 = vld [vmem:[%s12 + $0x48] sm:$0xff]
  %v2620 = vld [vmem:[%s12 + $0x50] sm:$0xff]
  %v2621 = vld [vmem:[%s12 + $0x58] sm:$0xff]
  %v2622 = vld [vmem:[%s12 + $0x60] sm:$0xff]
  %v2623 = vld [vmem:[%s12 + $0x68] sm:$0xff]
  %v2624 = vld [vmem:[%s12 + $0x70] sm:$0xff]
  %v2625 = vld [vmem:[%s12 + $0x78] sm:$0xff]
  %v2626 = vld [vmem:[%s12 + $0x80] sm:$0xff]
  %v2627 = vld [vmem:[%s12 + $0x88] sm:$0xff]
  %v2628 = vld [vmem:[%s12 + $0x90] sm:$0xff]
  %v2629 = vld [vmem:[%s12 + $0x98] sm:$0xff]
  %v2630 = vld [vmem:[%s12 + $0xa0] sm:$0xff]
  %v2631 = vld [vmem:[%s12 + $0xa8] sm:$0xff]
  %v2632 = vld [vmem:[%s12 + $0xb0] sm:$0xff]
  %v2633 = vld [vmem:[%s12 + $0xb8] sm:$0xff]
  %v2634 = vld [vmem:[%s12 + $0xc0] sm:$0xff]
  %v2635 = vld [vmem:[%s12 + $0xc8] sm:$0xff]
  %v2636 = vld [vmem:[%s12 + $0xd0] sm:$0xff]
  %v2637 = vld [vmem:[%s12 + $0xd8] sm:$0xff]
  %v2638 = vld [vmem:[%s12 + $0xe0] sm:$0xff]
  %v2639 = vld [vmem:[%s12 + $0xe8] sm:$0xff]
  %v2640 = vld [vmem:[%s12 + $0xf0] sm:$0xff]
  %v2641 = vld [vmem:[%s12 + $0xf8] sm:$0xff]
  %v2642 = vld [vmem:[%s12 + $0x100] sm:$0xff]
  %v2643 = vld [vmem:[%s12 + $0x108] sm:$0xff]
  %v2644 = vld [vmem:[%s12 + $0x110] sm:$0xff]
  %v2645 = vld [vmem:[%s12 + $0x118] sm:$0xff]
  %v2646 = vld [vmem:[%s12 + $0x120] sm:$0xff]
  %v2647 = vld [vmem:[%s12 + $0x128] sm:$0xff]
  %v2648 = vld [vmem:[%s12 + $0x130] sm:$0xff]
  %v2649 = vld [vmem:[%s12 + $0x138] sm:$0xff]
  %v2650 = vld [vmem:[%s12 + $0x140] sm:$0xff]
  %v2651 = vld [vmem:[%s12 + $0x148] sm:$0xff]
  %v2652 = vld [vmem:[%s12 + $0x150] sm:$0xff]
  %v2653 = vld [vmem:[%s12 + $0x158] sm:$0xff]
  %v2654 = vld [vmem:[%s12 + $0x160] sm:$0xff]
  %v2655 = vld [vmem:[%s12 + $0x168] sm:$0xff]
  %v2656 = vld [vmem:[%s12 + $0x170] sm:$0xff]
  %v2657 = vld [vmem:[%s12 + $0x178] sm:$0xff]
  %v2658 = vld [vmem:[%s12 + $0x180] sm:$0xff]
  %v2659 = vld [vmem:[%s12 + $0x188] sm:$0xff]
  %v2660 = vld [vmem:[%s12 + $0x190] sm:$0xff]
  %v2661 = vld [vmem:[%s12 + $0x198] sm:$0xff]
  %v2662 = vld [vmem:[%s12 + $0x1a0] sm:$0xff]
  %v2663 = vld [vmem:[%s12 + $0x1a8] sm:$0xff]
  %v2664 = vld [vmem:[%s12 + $0x1b0] sm:$0xff]
  %v2665 = vld [vmem:[%s12 + $0x1b8] sm:$0xff]
  %v2666 = vld [vmem:[%s12 + $0x1c0] sm:$0xff]
  %v2667 = vld [vmem:[%s12 + $0x1c8] sm:$0xff]
  %v2668 = vld [vmem:[%s12 + $0x1d0] sm:$0xff]
  %v2669 = vld [vmem:[%s12 + $0x1d8] sm:$0xff]
  %v2670 = vld [vmem:[%s12 + $0x1e0] sm:$0xff]
  %v2671 = vld [vmem:[%s12 + $0x1e8] sm:$0xff]
  %v2672 = vld [vmem:[%s12 + $0x1f0] sm:$0xff]
  %v2673 = vld [vmem:[%s12 + $0x1f8] sm:$0xff]
  %v2674 = vld [vmem:[%s12 + $0x200] sm:$0xff]
  %v2675 = vld [vmem:[%s12 + $0x208] sm:$0xff]
  %v2676 = vld [vmem:[%s12 + $0x210] sm:$0xff]
  %v2677 = vld [vmem:[%s12 + $0x218] sm:$0xff]
  %v2678 = vld [vmem:[%s12 + $0x220] sm:$0xff]
  %v2679 = vld [vmem:[%s12 + $0x228] sm:$0xff]
  %v2680 = vld [vmem:[%s12 + $0x230] sm:$0xff]
  %v2681 = vld [vmem:[%s12 + $0x238] sm:$0xff]
  %v2682 = vld [vmem:[%s12 + $0x240] sm:$0xff]
  %v2683 = vld [vmem:[%s12 + $0x248] sm:$0xff]
  %v2684 = vld [vmem:[%s12 + $0x250] sm:$0xff]
  %v2685 = vld [vmem:[%s12 + $0x258] sm:$0xff]
  %v2686 = vld [vmem:[%s12 + $0x260] sm:$0xff]
  %v2687 = vld [vmem:[%s12 + $0x268] sm:$0xff]
  %v2688 = vld [vmem:[%s12 + $0x270] sm:$0xff]
  %v2689 = vld [vmem:[%s12 + $0x278] sm:$0xff]
  %v2690 = vld [vmem:[%s12 + $0x280] sm:$0xff]
  %v2691 = vld [vmem:[%s12 + $0x288] sm:$0xff]
  %v2692 = vld [vmem:[%s12 + $0x290] sm:$0xff]
  %v2693 = vld [vmem:[%s12 + $0x298] sm:$0xff]
  %v2694 = vld [vmem:[%s12 + $0x2a0] sm:$0xff]
  %v2695 = vld [vmem:[%s12 + $0x2a8] sm:$0xff]
  %v2696 = vld [vmem:[%s12 + $0x2b0] sm:$0xff]
  %v2697 = vld [vmem:[%s12 + $0x2b8] sm:$0xff]
  %v2698 = vld [vmem:[%s12 + $0x2c0] sm:$0xff]
  %v2699 = vld [vmem:[%s12 + $0x2c8] sm:$0xff]
  %v2700 = vld [vmem:[%s12 + $0x2d0] sm:$0xff]
  %v2701 = vld [vmem:[%s12 + $0x2d8] sm:$0xff]
  %v2702 = vld [vmem:[%s12 + $0x2e0] sm:$0xff]
  %v2703 = vld [vmem:[%s12 + $0x2e8] sm:$0xff]
  %v2704 = vld [vmem:[%s12 + $0x2f0] sm:$0xff]
  %v2705 = vld [vmem:[%s12 + $0x2f8] sm:$0xff]
  %v2706 = vld [vmem:[%s12 + $0x300] sm:$0xff]
  %v2707 = vld [vmem:[%s12 + $0x308] sm:$0xff]
  %v2708 = vld [vmem:[%s12 + $0x310] sm:$0xff]
  %v2709 = vld [vmem:[%s12 + $0x318] sm:$0xff]
  %v2710 = vld [vmem:[%s12 + $0x320] sm:$0xff]
  %v2711 = vld [vmem:[%s12 + $0x328] sm:$0xff]
  %v2712 = vld [vmem:[%s12 + $0x330] sm:$0xff]
  %v2713 = vld [vmem:[%s12 + $0x338] sm:$0xff]
  %v2714 = vld [vmem:[%s12 + $0x340] sm:$0xff]
  %v2715 = vld [vmem:[%s12 + $0x348] sm:$0xff]
  %v2716 = vld [vmem:[%s12 + $0x350] sm:$0xff]
  %v2717 = vld [vmem:[%s12 + $0x358] sm:$0xff]
  %v2718 = vld [vmem:[%s12 + $0x360] sm:$0xff]
  %v2719 = vld [vmem:[%s12 + $0x368] sm:$0xff]
  %v2720 = vld [vmem:[%s12 + $0x370] sm:$0xff]
  %v2721 = vld [vmem:[%s12 + $0x378] sm:$0xff]
  %v2722 = vld [vmem:[%s12 + $0x380] sm:$0xff]
  %v2723 = vld [vmem:[%s12 + $0x388] sm:$0xff]
  %v2724 = vld [vmem:[%s12 + $0x390] sm:$0xff]
  %v2725 = vld [vmem:[%s12 + $0x398] sm:$0xff]
  %v2726 = vld [vmem:[%s12 + $0x3a0] sm:$0xff]
  %v2727 = vld [vmem:[%s12 + $0x3a8] sm:$0xff]
  %v2728 = vld [vmem:[%s12 + $0x3b0] sm:$0xff]
  %v2729 = vld [vmem:[%s12 + $0x3b8] sm:$0xff]
  %v2730 = vld [vmem:[%s12 + $0x3c0] sm:$0xff]
  %v2731 = vld [vmem:[%s12 + $0x3c8] sm:$0xff]
  %v2732 = vld [vmem:[%s12 + $0x3d0] sm:$0xff]
  %v2733 = vld [vmem:[%s12 + $0x3d8] sm:$0xff]
  %v2734 = vld [vmem:[%s12 + $0x3e0] sm:$0xff]
  %v2735 = vld [vmem:[%s12 + $0x3e8] sm:$0xff]
  %v2736 = vld [vmem:[%s12 + $0x3f0] sm:$0xff]
  %v2737 = vld [vmem:[%s12 + $0x3f8] sm:$0xff]
  %v2738 = vld [vmem:[%s12 + $0x400] sm:$0xff]
  %v2739 = vld [vmem:[%s12 + $0x408] sm:$0xff]
  %v2740 = vld [vmem:[%s12 + $0x410] sm:$0xff]
  %v2741 = vld [vmem:[%s12 + $0x418] sm:$0xff]
  %v2742 = vld [vmem:[%s12 + $0x420] sm:$0xff]
  %v2743 = vld [vmem:[%s12 + $0x428] sm:$0xff]
  %v2744 = vld [vmem:[%s12 + $0x430] sm:$0xff]
  %v2745 = vld [vmem:[%s12 + $0x438] sm:$0xff]
  %v2746 = vld [vmem:[%s12 + $0x440] sm:$0xff]
  %v2747 = vld [vmem:[%s12 + $0x448] sm:$0xff]
  %v2748 = vld [vmem:[%s12 + $0x450] sm:$0xff]
  %v2749 = vld [vmem:[%s12 + $0x458] sm:$0xff]
  %v2750 = vld [vmem:[%s12 + $0x460] sm:$0xff]
  %v2751 = vld [vmem:[%s12 + $0x468] sm:$0xff]
  %v2752 = vld [vmem:[%s12 + $0x470] sm:$0xff]
  %v2753 = vld [vmem:[%s12 + $0x478] sm:$0xff]
  %2754 = vmatpush.msra.mxu0 %v2655
  %2755 = vmatpush.msra.mxu0 %v2652
  %2756 = vmatpush.msra.mxu0 %v2649
  %2757 = vmatpush.msra.mxu0 %v2646
  %2758 = vmatpush.msra.mxu0 %v2643
  %2759 = vmatpush.msra.mxu0 %v2640
  %2760 = vmatpush.msra.mxu0 %v2637
  %2761 = vmatpush.msra.mxu0 %v2634
  %2762 = vmatpush.msra.mxu0 %v2631
  %2763 = vmatpush.msra.mxu0 %v2628
  %2764 = vmatpush.msra.mxu0 %v2625
  %2765 = vmatpush.msra.mxu0 %v2622
  %2766 = vmatpush.msra.mxu0 %v2619
  %2767 = vmatpush.msra.mxu0 %v2616
  %2768 = vmatpush.msra.mxu0 %v2613
  %2769 = vmatpush.msra.mxu0 %v2610
  %2770 = vmatmul.f32.gmra.mxu0 %v2547
  %v2771 = vpop.f32.mrf.mxu0
  %v2772 = vadd.f32 0.0, %v2771
  %2773 = vmatmul.f32.gmra.mxu0 %v2550
  %v2774 = vpop.f32.mrf.mxu0
  %v2775 = vadd.f32 0.0, %v2774
  %2776 = vdwg.mxu0
  %2777 = vmatpush.msra.mxu0 %v2703
  %2778 = vmatpush.msra.mxu0 %v2700
  %2779 = vmatpush.msra.mxu0 %v2697
  %2780 = vmatpush.msra.mxu0 %v2694
  %2781 = vmatpush.msra.mxu0 %v2691
  %2782 = vmatpush.msra.mxu0 %v2688
  %2783 = vmatpush.msra.mxu0 %v2685
  %2784 = vmatpush.msra.mxu0 %v2682
  %2785 = vmatpush.msra.mxu0 %v2679
  %2786 = vmatpush.msra.mxu0 %v2676
  %2787 = vmatpush.msra.mxu0 %v2673
  %2788 = vmatpush.msra.mxu0 %v2670
  %2789 = vmatpush.msra.mxu0 %v2667
  %2790 = vmatpush.msra.mxu0 %v2664
  %2791 = vmatpush.msra.mxu0 %v2661
  %2792 = vmatpush.msra.mxu0 %v2658
  %2793 = vmatmul.f32.gmra.mxu0 %v2570
  %v2794 = vpop.f32.mrf.mxu0
  %v2795 = vadd.f32 %v2772, %v2794
  %2796 = vmatmul.f32.gmra.mxu0 %v2573
  %v2797 = vpop.f32.mrf.mxu0
  %v2798 = vadd.f32 %v2775, %v2797
  %2799 = vdwg.mxu0
  %2800 = vmatpush.msra.mxu0 %v2751
  %2801 = vmatpush.msra.mxu0 %v2748
  %2802 = vmatpush.msra.mxu0 %v2745
  %2803 = vmatpush.msra.mxu0 %v2742
  %2804 = vmatpush.msra.mxu0 %v2739
  %2805 = vmatpush.msra.mxu0 %v2736
  %2806 = vmatpush.msra.mxu0 %v2733
  %2807 = vmatpush.msra.mxu0 %v2730
  %2808 = vmatpush.msra.mxu0 %v2727
  %2809 = vmatpush.msra.mxu0 %v2724
  %2810 = vmatpush.msra.mxu0 %v2721
  %2811 = vmatpush.msra.mxu0 %v2718
  %2812 = vmatpush.msra.mxu0 %v2715
  %2813 = vmatpush.msra.mxu0 %v2712
  %2814 = vmatpush.msra.mxu0 %v2709
  %2815 = vmatpush.msra.mxu0 %v2706
  %2816 = vmatmul.f32.gmra.mxu0 %v2593
  %v2817 = vpop.f32.mrf.mxu0
  %v2818 = vadd.f32 %v2795, %v2817
  %2819 = vmatmul.f32.gmra.mxu0 %v2596
  %v2820 = vpop.f32.mrf.mxu0
  %v2821 = vadd.f32 %v2798, %v2820
  %2822 = vdwg.mxu0
  %2823 = vmatpush.msra.mxu0 %v2656
  %2824 = vmatpush.msra.mxu0 %v2653
  %2825 = vmatpush.msra.mxu0 %v2650
  %2826 = vmatpush.msra.mxu0 %v2647
  %2827 = vmatpush.msra.mxu0 %v2644
  %2828 = vmatpush.msra.mxu0 %v2641
  %2829 = vmatpush.msra.mxu0 %v2638
  %2830 = vmatpush.msra.mxu0 %v2635
  %2831 = vmatpush.msra.mxu0 %v2632
  %2832 = vmatpush.msra.mxu0 %v2629
  %2833 = vmatpush.msra.mxu0 %v2626
  %2834 = vmatpush.msra.mxu0 %v2623
  %2835 = vmatpush.msra.mxu0 %v2620
  %2836 = vmatpush.msra.mxu0 %v2617
  %2837 = vmatpush.msra.mxu0 %v2614
  %2838 = vmatpush.msra.mxu0 %v2611
  %2839 = vmatmul.f32.gmra.mxu0 %v2547
  %v2840 = vpop.f32.mrf.mxu0
  %v2841 = vadd.f32 0.0, %v2840
  %2842 = vmatmul.f32.gmra.mxu0 %v2550
  %v2843 = vpop.f32.mrf.mxu0
  %v2844 = vadd.f32 0.0, %v2843
  %2845 = vdwg.mxu0
  %2846 = vmatpush.msra.mxu0 %v2704
  %2847 = vmatpush.msra.mxu0 %v2701
  %2848 = vmatpush.msra.mxu0 %v2698
  %2849 = vmatpush.msra.mxu0 %v2695
  %2850 = vmatpush.msra.mxu0 %v2692
  %2851 = vmatpush.msra.mxu0 %v2689
  %2852 = vmatpush.msra.mxu0 %v2686
  %2853 = vmatpush.msra.mxu0 %v2683
  %2854 = vmatpush.msra.mxu0 %v2680
  %2855 = vmatpush.msra.mxu0 %v2677
  %2856 = vmatpush.msra.mxu0 %v2674
  %2857 = vmatpush.msra.mxu0 %v2671
  %2858 = vmatpush.msra.mxu0 %v2668
  %2859 = vmatpush.msra.mxu0 %v2665
  %2860 = vmatpush.msra.mxu0 %v2662
  %2861 = vmatpush.msra.mxu0 %v2659
  %2862 = vmatmul.f32.gmra.mxu0 %v2570
  %v2863 = vpop.f32.mrf.mxu0
  %v2864 = vadd.f32 %v2841, %v2863
  %2865 = vmatmul.f32.gmra.mxu0 %v2573
  %v2866 = vpop.f32.mrf.mxu0
  %v2867 = vadd.f32 %v2844, %v2866
  %2868 = vdwg.mxu0
  %2869 = vmatpush.msra.mxu0 %v2752
  %2870 = vmatpush.msra.mxu0 %v2749
  %2871 = vmatpush.msra.mxu0 %v2746
  %2872 = vmatpush.msra.mxu0 %v2743
  %2873 = vmatpush.msra.mxu0 %v2740
  %2874 = vmatpush.msra.mxu0 %v2737
  %2875 = vmatpush.msra.mxu0 %v2734
  %2876 = vmatpush.msra.mxu0 %v2731
  %2877 = vmatpush.msra.mxu0 %v2728
  %2878 = vmatpush.msra.mxu0 %v2725
  %2879 = vmatpush.msra.mxu0 %v2722
  %2880 = vmatpush.msra.mxu0 %v2719
  %2881 = vmatpush.msra.mxu0 %v2716
  %2882 = vmatpush.msra.mxu0 %v2713
  %2883 = vmatpush.msra.mxu0 %v2710
  %2884 = vmatpush.msra.mxu0 %v2707
  %2885 = vmatmul.f32.gmra.mxu0 %v2593
  %v2886 = vpop.f32.mrf.mxu0
  %v2887 = vadd.f32 %v2864, %v2886
  %2888 = vmatmul.f32.gmra.mxu0 %v2596
  %v2889 = vpop.f32.mrf.mxu0
  %v2890 = vadd.f32 %v2867, %v2889
  %2891 = vdwg.mxu0
  %2892 = vmatpush.msra.mxu0 %v2657
  %2893 = vmatpush.msra.mxu0 %v2654
  %2894 = vmatpush.msra.mxu0 %v2651
  %2895 = vmatpush.msra.mxu0 %v2648
  %2896 = vmatpush.msra.mxu0 %v2645
  %2897 = vmatpush.msra.mxu0 %v2642
  %2898 = vmatpush.msra.mxu0 %v2639
  %2899 = vmatpush.msra.mxu0 %v2636
  %2900 = vmatpush.msra.mxu0 %v2633
  %2901 = vmatpush.msra.mxu0 %v2630
  %2902 = vmatpush.msra.mxu0 %v2627
  %2903 = vmatpush.msra.mxu0 %v2624
  %2904 = vmatpush.msra.mxu0 %v2621
  %2905 = vmatpush.msra.mxu0 %v2618
  %2906 = vmatpush.msra.mxu0 %v2615
  %2907 = vmatpush.msra.mxu0 %v2612
  %2908 = vmatmul.f32.gmra.mxu0 %v2547
  %v2909 = vpop.f32.mrf.mxu0
  %v2910 = vadd.f32 0.0, %v2909
  %2911 = vmatmul.f32.gmra.mxu0 %v2550
  %v2912 = vpop.f32.mrf.mxu0
  %v2913 = vadd.f32 0.0, %v2912
  %2914 = vdwg.mxu0
  %2915 = vmatpush.msra.mxu0 %v2705
  %2916 = vmatpush.msra.mxu0 %v2702
  %2917 = vmatpush.msra.mxu0 %v2699
  %2918 = vmatpush.msra.mxu0 %v2696
  %2919 = vmatpush.msra.mxu0 %v2693
  %2920 = vmatpush.msra.mxu0 %v2690
  %2921 = vmatpush.msra.mxu0 %v2687
  %2922 = vmatpush.msra.mxu0 %v2684
  %2923 = vmatpush.msra.mxu0 %v2681
  %2924 = vmatpush.msra.mxu0 %v2678
  %2925 = vmatpush.msra.mxu0 %v2675
  %2926 = vmatpush.msra.mxu0 %v2672
  %2927 = vmatpush.msra.mxu0 %v2669
  %2928 = vmatpush.msra.mxu0 %v2666
  %2929 = vmatpush.msra.mxu0 %v2663
  %2930 = vmatpush.msra.mxu0 %v2660
  %2931 = vmatmul.f32.gmra.mxu0 %v2570
  %v2932 = vpop.f32.mrf.mxu0
  %v2933 = vadd.f32 %v2910, %v2932
  %2934 = vmatmul.f32.gmra.mxu0 %v2573
  %v2935 = vpop.f32.mrf.mxu0
  %v2936 = vadd.f32 %v2913, %v2935
  %2937 = vdwg.mxu0
  %2938 = vmatpush.msra.mxu0 %v2753
  %2939 = vmatpush.msra.mxu0 %v2750
  %2940 = vmatpush.msra.mxu0 %v2747
  %2941 = vmatpush.msra.mxu0 %v2744
  %2942 = vmatpush.msra.mxu0 %v2741
  %2943 = vmatpush.msra.mxu0 %v2738
  %2944 = vmatpush.msra.mxu0 %v2735
  %2945 = vmatpush.msra.mxu0 %v2732
  %2946 = vmatpush.msra.mxu0 %v2729
  %2947 = vmatpush.msra.mxu0 %v2726
  %2948 = vmatpush.msra.mxu0 %v2723
  %2949 = vmatpush.msra.mxu0 %v2720
  %2950 = vmatpush.msra.mxu0 %v2717
  %2951 = vmatpush.msra.mxu0 %v2714
  %2952 = vmatpush.msra.mxu0 %v2711
  %2953 = vmatpush.msra.mxu0 %v2708
  %2954 = vmatmul.f32.gmra.mxu0 %v2593
  %v2955 = vpop.f32.mrf.mxu0
  %v2956 = vadd.f32 %v2933, %v2955
  %2957 = vmatmul.f32.gmra.mxu0 %v2596
  %v2958 = vpop.f32.mrf.mxu0
  %v2959 = vadd.f32 %v2936, %v2958
  %2960 = vdwg.mxu0
  %v2961 = vld [vmem:[%s11] sm:$0xff]
  %v2962 = vld [vmem:[%s11 + $0x8] sm:$0xff]
  %v2963 = vld [vmem:[%s11 + $0x10] sm:$0xff]
  %v2964 = vld [vmem:[%s11 + $0x18] sm:$0xff]
  %v2965 = vld [vmem:[%s11 + $0x20] sm:$0xff]
  %v2966 = vld [vmem:[%s11 + $0x28] sm:$0xff]
  %v2967 = vmul.f32 %v2818, %v2961
  %v2968 = vmul.f32 %v2887, %v2962
  %v2969 = vmul.f32 %v2956, %v2963
  %v2970 = vmul.f32 %v2821, %v2964
  %v2971 = vmul.f32 %v2890, %v2965
  %v2972 = vmul.f32 %v2959, %v2966
  %v2973 = vadd.f32 %v2604, %v2967
  %v2974 = vadd.f32 %v2605, %v2968
  %v2975 = vadd.f32 %v2606, %v2969
  %v2976 = vadd.f32 %v2607, %v2970
  %v2977 = vadd.f32 %v2608, %v2971
  %v2978 = vadd.f32 %v2609, %v2972
  %2981 = vrot.lane.b32.xlu0 %v2973, 64
  %v2982 = vpop.permute.xlu0 %2981
  %2983 = vrot.lane.b32.xlu0 %v2976, 64
  %v2984 = vpop.permute.xlu0 %2983
  %v2985 = vsel %vm64, %v2973, 0
  %v2987 = vsel %vm64, %v2976, 0
  %v2989 = vsel %vm64, %v2982, 0
  %v2991 = vsel %vm64, %v2984, 0
  %2993 = vmatpush.xpose.msra.mxu0 0.0
  %2994 = vmatpush.xpose.msra.mxu0 0.0
  %2995 = vmatpush.xpose.msra.mxu0 0.0
  %2996 = vmatpush.xpose.msra.mxu0 0.0
  %2997 = vmatpush.xpose.msra.mxu0 0.0
  %2998 = vmatpush.xpose.msra.mxu0 0.0
  %2999 = vmatpush.xpose.msra.mxu0 0.0
  %3000 = vmatpush.xpose.msra.mxu0 0.0
  %3001 = vmatpush.xpose.msra.mxu0 0.0
  %3002 = vmatpush.xpose.msra.mxu0 0.0
  %3003 = vmatpush.xpose.msra.mxu0 0.0
  %3004 = vmatpush.xpose.msra.mxu0 0.0
  %3005 = vmatpush.xpose.msra.mxu0 0.0
  %3006 = vmatpush.xpose.msra.mxu0 0.0
  %3007 = vmatpush.xpose.msra.mxu0 %v2991
  %3008 = vmatpush.xpose.msra.mxu0 %v2989
  %3009 = vmatmul.f32.gmra.mxu0 %v2985
  %v3010 = vpop.f32.mrf.mxu0
  %v3011 = vadd.f32 0.0, %v3010
  %3012 = vmatmul.f32.gmra.mxu0 %v2987
  %v3013 = vpop.f32.mrf.mxu0
  %v3014 = vadd.f32 0.0, %v3013
  %3015 = vdwg.mxu0
  %v3016 = vmul.f32 %v3011, 0.125
  %v3017 = vmul.f32 %v3014, 0.125
  %3018 = vst.msk [vmem:[%s13] sm:$0xff] %vm123, %v3016
  %3020 = vrot.lane.b32.xlu0 %v3017, 120
  %v3021 = vpop.permute.xlu0 %3020
  %3023 = vst.msk [vmem:[%s13 + $0x8] sm:$0xff] %vm123, %v3021
  %3026 = vrot.lane.b32.xlu0 %v2974, 64
  %v3027 = vpop.permute.xlu0 %3026
  %3028 = vrot.lane.b32.xlu0 %v2977, 64
  %v3029 = vpop.permute.xlu0 %3028
  %v3030 = vsel %vm64, %v2974, 0
  %v3032 = vsel %vm64, %v2977, 0
  %v3034 = vsel %vm64, %v3027, 0
  %v3036 = vsel %vm64, %v3029, 0
  %3038 = vmatpush.xpose.msra.mxu0 0.0
  %3039 = vmatpush.xpose.msra.mxu0 0.0
  %3040 = vmatpush.xpose.msra.mxu0 0.0
  %3041 = vmatpush.xpose.msra.mxu0 0.0
  %3042 = vmatpush.xpose.msra.mxu0 0.0
  %3043 = vmatpush.xpose.msra.mxu0 0.0
  %3044 = vmatpush.xpose.msra.mxu0 0.0
  %3045 = vmatpush.xpose.msra.mxu0 0.0
  %3046 = vmatpush.xpose.msra.mxu0 0.0
  %3047 = vmatpush.xpose.msra.mxu0 0.0
  %3048 = vmatpush.xpose.msra.mxu0 0.0
  %3049 = vmatpush.xpose.msra.mxu0 0.0
  %3050 = vmatpush.xpose.msra.mxu0 0.0
  %3051 = vmatpush.xpose.msra.mxu0 0.0
  %3052 = vmatpush.xpose.msra.mxu0 %v3036
  %3053 = vmatpush.xpose.msra.mxu0 %v3034
  %3054 = vmatmul.f32.gmra.mxu0 %v3030
  %v3055 = vpop.f32.mrf.mxu0
  %v3056 = vadd.f32 0.0, %v3055
  %3057 = vmatmul.f32.gmra.mxu0 %v3032
  %v3058 = vpop.f32.mrf.mxu0
  %v3059 = vadd.f32 0.0, %v3058
  %3060 = vdwg.mxu0
  %v3061 = vmul.f32 %v3056, 0.125
  %v3062 = vmul.f32 %v3059, 0.125
  %3064 = vrot.lane.b32.xlu0 %v3061, 8
  %v3065 = vpop.permute.xlu0 %3064
  %vm3067 = vcmask 130112
  %3068 = vst.msk [vmem:[%s13] sm:$0xff] %vm3067, %v3065
  %3069 = vst.msk [vmem:[%s13 + $0x8] sm:$0xff] %vm3067, %v3062
  %3072 = vrot.lane.b32.xlu0 %v2975, 64
  %v3073 = vpop.permute.xlu0 %3072
  %3074 = vrot.lane.b32.xlu0 %v2978, 64
  %v3075 = vpop.permute.xlu0 %3074
  %v3076 = vsel %vm64, %v2975, 0
  %v3078 = vsel %vm64, %v2978, 0
  %v3080 = vsel %vm64, %v3073, 0
  %v3082 = vsel %vm64, %v3075, 0
  %3084 = vmatpush.xpose.msra.mxu0 0.0
  %3085 = vmatpush.xpose.msra.mxu0 0.0
  %3086 = vmatpush.xpose.msra.mxu0 0.0
  %3087 = vmatpush.xpose.msra.mxu0 0.0
  %3088 = vmatpush.xpose.msra.mxu0 0.0
  %3089 = vmatpush.xpose.msra.mxu0 0.0
  %3090 = vmatpush.xpose.msra.mxu0 0.0
  %3091 = vmatpush.xpose.msra.mxu0 0.0
  %3092 = vmatpush.xpose.msra.mxu0 0.0
  %3093 = vmatpush.xpose.msra.mxu0 0.0
  %3094 = vmatpush.xpose.msra.mxu0 0.0
  %3095 = vmatpush.xpose.msra.mxu0 0.0
  %3096 = vmatpush.xpose.msra.mxu0 0.0
  %3097 = vmatpush.xpose.msra.mxu0 0.0
  %3098 = vmatpush.xpose.msra.mxu0 %v3082
  %3099 = vmatpush.xpose.msra.mxu0 %v3080
  %3100 = vmatmul.f32.gmra.mxu0 %v3076
  %v3101 = vpop.f32.mrf.mxu0
  %v3102 = vadd.f32 0.0, %v3101
  %3103 = vmatmul.f32.gmra.mxu0 %v3078
  %v3104 = vpop.f32.mrf.mxu0
  %v3105 = vadd.f32 0.0, %v3104
  %3106 = vdwg.mxu0
  %v3107 = vmul.f32 %v3102, 0.125
  %v3108 = vmul.f32 %v3105, 0.125
  %3110 = vrot.lane.b32.xlu0 %v3107, 16
  %v3111 = vpop.permute.xlu0 %3110
  %vm3113 = vcmask 195712
  %3114 = vst.msk [vmem:[%s13] sm:$0xff] %vm3113, %v3111
  %3116 = vrot.lane.b32.xlu0 %v3108, 8
  %v3117 = vpop.permute.xlu0 %3116
  %3119 = vst.msk [vmem:[%s13 + $0x8] sm:$0xff] %vm3113, %v3117
  // Predicated region
  $region54: #{model_forward.1} parent=0 // pred_check
    _
  $region55: #{model_forward.1} parent=0 // pred_check_branch
    %3121 = sbr.rel (0) target = $region57
  $region56: #{model_forward.1} parent=0 // pred_region
    _
  $region57: #{model_forward.1} parent=0 // pred_fallthru
    _
  // Predicated region
  $region58: #{model_forward.1} parent=0 // pred_check
    _
  $region59: #{model_forward.1} parent=0 // pred_check_branch
    %3123 = sbr.rel (0) target = $region61
  $region60: #{model_forward.1} parent=0 // pred_region
    _
  $region61: #{model_forward.1} parent=0 // pred_fallthru
    _

</llo_original>
